<compile_context>
chip_gen: v5e
topology: v5e:2x2
jax: 0.10.0
libtpu: 0.0.40
codegen_flags: <defaults>
</compile_context>

<pallas_src>
import functools

import jax
import jax.numpy as jnp
from jax import lax
from jax.experimental import pallas as pl
from jax.experimental.pallas import tpu as pltpu


def _round_up(x, m):
    return (x + m - 1) // m * m


# ----------------------------- Fused LSTM + head kernel -----------------------------

def _fused_lstm_head_kernel(x_ref, w_ref, b_ref, wo_ref, bo_ref, out_ref, seq_sc,
                            *, num_layers, seq_cls):
    """Runs all LSTM layers over the whole sequence plus the output projection.

    x_ref:   (T, Bp, P)        padded time-major inputs
    w_ref:   (L, 2P, 4P)       fused [W_ih; W_hh] per layer, gate blocks of width P
    b_ref:   (L, 1, 4P)        fused b_ih + b_hh per layer
    wo_ref:  (P, Op)           padded output projection
    bo_ref:  (1, Op)           padded output bias
    out_ref: (Bp, Op) if seq_cls else (T, Bp, Op)
    seq_sc:  (T, Bp, P) VMEM   current layer's input sequence, overwritten in place
                               with its output sequence (safe: step t only reads
                               entries >= t that have not been rewritten yet).
    """
    T, Bp, P = x_ref.shape

    seq_sc[...] = x_ref[...]

    h_last = jnp.zeros((Bp, P), jnp.float32)
    for l in range(num_layers):
        w_l = w_ref[l]          # (2P, 4P) -- loaded once per layer, VMEM resident
        b_l = b_ref[l]          # (1, 4P)

        def step(t, carry, _w=w_l, _b=b_l):
            h, c = carry
            x_t = seq_sc[t]                                   # (Bp, P)
            xh = jnp.concatenate([x_t, h], axis=-1)           # (Bp, 2P)
            gates = jnp.dot(xh, _w, preferred_element_type=jnp.float32) + _b  # (Bp, 4P)
            # PyTorch gate order i, f, g, o; each gate block is 128-lane aligned.
            i_g = jax.nn.sigmoid(gates[:, 0 * P:1 * P])
            f_g = jax.nn.sigmoid(gates[:, 1 * P:2 * P])
            g_g = jnp.tanh(gates[:, 2 * P:3 * P])
            o_g = jax.nn.sigmoid(gates[:, 3 * P:4 * P])
            c = f_g * c + i_g * g_g
            h = o_g * jnp.tanh(c)
            seq_sc[t] = h
            return (h, c)

        zeros = jnp.zeros((Bp, P), jnp.float32)               # zero-init h0/c0 per layer
        h_last, _ = lax.fori_loop(0, T, step, (zeros, zeros), unroll=True)

    if seq_cls:
        # Only the last time step of the last layer is needed -> single lane-dense store.
        out_ref[...] = (
            jnp.dot(h_last, wo_ref[...], preferred_element_type=jnp.float32)
            + bo_ref[...]
        )
    else:
        flat = seq_sc[...].reshape(T * Bp, P)
        logits = (
            jnp.dot(flat, wo_ref[...], preferred_element_type=jnp.float32)
            + bo_ref[...]
        )
        out_ref[...] = logits.reshape(T, Bp, logits.shape[-1])


def fused_lstm_head(x_tbp, w_layers, b_layers, w_out_p, b_out_p, *, seq_cls):
    T, Bp, P = x_tbp.shape
    L = w_layers.shape[0]
    Op = w_out_p.shape[1]

    kernel = functools.partial(_fused_lstm_head_kernel, num_layers=L, seq_cls=seq_cls)

    if seq_cls:
        out_shape = jax.ShapeDtypeStruct((Bp, Op), jnp.float32)
        out_spec = pl.BlockSpec((Bp, Op), lambda i: (0, 0))
    else:
        out_shape = jax.ShapeDtypeStruct((T, Bp, Op), jnp.float32)
        out_spec = pl.BlockSpec((T, Bp, Op), lambda i: (0, 0, 0))

    return pl.pallas_call(
        kernel,
        out_shape=out_shape,
        grid_spec=pltpu.PrefetchScalarGridSpec(
            num_scalar_prefetch=0,
            grid=(1,),                                   # single invocation; loops live in-kernel
            in_specs=[
                pl.BlockSpec((T, Bp, P), lambda i: (0, 0, 0)),
                pl.BlockSpec((L, 2 * P, 4 * P), lambda i: (0, 0, 0)),
                pl.BlockSpec((L, 1, 4 * P), lambda i: (0, 0, 0)),
                pl.BlockSpec((P, Op), lambda i: (0, 0)),
                pl.BlockSpec((1, Op), lambda i: (0, 0)),
            ],
            out_specs=out_spec,
            scratch_shapes=[pltpu.VMEM((T, Bp, P), jnp.float32)],
        ),
        compiler_params=pltpu.CompilerParams(
            dimension_semantics=("arbitrary",),
        ),
    )(x_tbp, w_layers, b_layers, w_out_p, b_out_p)


# ----------------------------- Full module forward -----------------------------

def lstm_module_forward(params, input_ids, *, output_size, is_sequence_classifier):
    """Mirrors LSTMModule.forward in eval mode (dropout = identity, zero-init h0/c0).

    input_ids: (B, T) int32
    returns: (B, 1, output_size) if is_sequence_classifier else (B, T, output_size)
    """
    B, T = input_ids.shape

    # Embedding lookup directly in time-major layout (no activation transpose).
    emb = jnp.take(params["embedding_p"], input_ids.T, axis=0)        # (T, B, P)
    P = emb.shape[-1]

    # Pad batch to a full sublane group so every vector op uses whole vregs.
    Bp = _round_up(max(B, 8), 8)
    x = jnp.pad(emb, ((0, 0), (0, Bp - B), (0, 0)))                    # (T, Bp, P)

    # TODO(synk): nn.Dropout between layers is identity at inference; no stochastic masking.
    out_p = fused_lstm_head(
        x, params["w_layers"], params["b_layers"],
        params["w_out_p"], params["b_out_p"],
        seq_cls=is_sequence_classifier,
    )

    O = output_size
    if is_sequence_classifier:
        return out_p[:B, :O].reshape(B, 1, O)
    return jnp.transpose(out_p[:, :B, :O], (1, 0, 2))                  # (B, T, O)


# ----------------------------- Parameter init / packing -----------------------------

def init_params(key, vocab_size, input_size, hidden_size, num_layers, output_size):
    """Raw (unpadded) parameters, PyTorch layout/init conventions."""
    keys = jax.random.split(key, 3 + 4 * num_layers)
    k = hidden_size ** -0.5

    raw = {"embedding": jax.random.normal(keys[0], (vocab_size, input_size), jnp.float32)}

    layers = []
    for l in range(num_layers):
        d_in = input_size if l == 0 else hidden_size
        kw = keys[3 + 4 * l: 3 + 4 * (l + 1)]
        w_ih = jax.random.uniform(kw[0], (4 * hidden_size, d_in), jnp.float32, -k, k)
        w_hh = jax.random.uniform(kw[1], (4 * hidden_size, hidden_size), jnp.float32, -k, k)
        b_ih = jax.random.uniform(kw[2], (4 * hidden_size,), jnp.float32, -k, k)
        b_hh = jax.random.uniform(kw[3], (4 * hidden_size,), jnp.float32, -k, k)
        layers.append({"w_ih_t": w_ih.T, "w_hh_t": w_hh.T, "b": b_ih + b_hh})
    raw["lstm"] = layers

    w_out = jax.random.uniform(keys[1], (output_size, hidden_size), jnp.float32, -k, k)
    b_out = jax.random.uniform(keys[2], (output_size,), jnp.float32, -k, k)
    raw["w_out_t"] = w_out.T                                  # (H, O)
    raw["b_out"] = b_out                                      # (O,)
    return raw


def pack_params(raw, lane=128):
    """Build the lane-padded, gate-fused parameter arrays consumed by the kernel (done once)."""
    V, D = raw["embedding"].shape
    H = raw["lstm"][0]["w_hh_t"].shape[0]
    O = raw["w_out_t"].shape[1]
    L = len(raw["lstm"])
    P = _round_up(max(D, H), lane)     # common padded width for inputs and hidden
    Op = _round_up(O, lane)

    emb_p = jnp.zeros((V, P), jnp.float32).at[:, :D].set(raw["embedding"])

    w_layers = jnp.zeros((L, 2 * P, 4 * P), jnp.float32)
    b_layers = jnp.zeros((L, 1, 4 * P), jnp.float32)
    for l, layer in enumerate(raw["lstm"]):
        w_ih_t, w_hh_t, b = layer["w_ih_t"], layer["w_hh_t"], layer["b"]
        d_in = w_ih_t.shape[0]
        for g in range(4):
            w_layers = w_layers.at[l, :d_in, g * P:g * P + H].set(w_ih_t[:, g * H:(g + 1) * H])
            w_layers = w_layers.at[l, P:P + H, g * P:g * P + H].set(w_hh_t[:, g * H:(g + 1) * H])
            b_layers = b_layers.at[l, 0, g * P:g * P + H].set(b[g * H:(g + 1) * H])
    # Padded gate lanes get zero weights/bias -> i=f=o=0.5, g=0, so padded h/c lanes stay exactly 0.

    w_out_p = jnp.zeros((P, Op), jnp.float32).at[:H, :O].set(raw["w_out_t"])
    b_out_p = jnp.zeros((1, Op), jnp.float32).at[0, :O].set(raw["b_out"])

    return {
        "embedding_p": emb_p,
        "w_layers": w_layers,
        "b_layers": b_layers,
        "w_out_p": w_out_p,
        "b_out_p": b_out_p,
    }


# ----------------------------- Pure-JAX reference (for correctness check) -----------------------------

def reference_forward(raw, input_ids, is_sequence_classifier):
    emb = jnp.take(raw["embedding"], input_ids, axis=0)       # (B, T, D)
    x = jnp.transpose(emb, (1, 0, 2)).astype(jnp.float32)     # (T, B, D)
    T, B, _ = x.shape
    for layer in raw["lstm"]:
        w_ih_t, w_hh_t, b = layer["w_ih_t"], layer["w_hh_t"], layer["b"]
        H = w_hh_t.shape[0]
        h = jnp.zeros((B, H), jnp.float32)
        c = jnp.zeros((B, H), jnp.float32)
        hs = []
        for t in range(T):
            gates = x[t] @ w_ih_t + h @ w_hh_t + b
            i_g = jax.nn.sigmoid(gates[:, :H])
            f_g = jax.nn.sigmoid(gates[:, H:2 * H])
            g_g = jnp.tanh(gates[:, 2 * H:3 * H])
            o_g = jax.nn.sigmoid(gates[:, 3 * H:])
            c = f_g * c + i_g * g_g
            h = o_g * jnp.tanh(c)
            hs.append(h)
        x = jnp.stack(hs, axis=0)
    out = jnp.transpose(x, (1, 0, 2))                          # (B, T, H)
    if is_sequence_classifier:
        out = out[:, -1:, :]
    Bo, S, H = out.shape
    logits = out.reshape(Bo * S, H) @ raw["w_out_t"] + raw["b_out"]
    return logits.reshape(Bo, S, -1)


# ----------------------------- Main -----------------------------

if __name__ == "__main__":
    vocab_size = 50
    output_size = 8
    input_size = 32
    hidden_size = 32
    num_layers = 2
    batch_size = 2
    seq_len = 8
    is_sequence_classifier = True

    key = jax.random.PRNGKey(0)
    pkey, ikey = jax.random.split(key)

    raw = init_params(pkey, vocab_size, input_size, hidden_size, num_layers, output_size)
    params = pack_params(raw)
    input_ids = jax.random.randint(ikey, (batch_size, seq_len), 0, vocab_size, dtype=jnp.int32)

    fwd = jax.jit(
        functools.partial(
            lstm_module_forward,
            output_size=output_size,
            is_sequence_classifier=is_sequence_classifier,
        )
    )
    out = fwd(params, input_ids)
    jax.block_until_ready(out)

    expected_shape = (batch_size, 1 if is_sequence_classifier else seq_len, output_size)
    assert out.shape == expected_shape, (out.shape, expected_shape)
    assert jnp.all(jnp.isfinite(out))

    with jax.default_matmul_precision("highest"):
        ref = reference_forward(raw, input_ids, is_sequence_classifier)
    assert jnp.allclose(out, ref, atol=1e-2, rtol=1e-2), float(jnp.max(jnp.abs(out - ref)))

    print("KERNEL_OK")
</pallas_src>

<mosaic_0001>
module attributes {stable_mosaic.version = 11 : i64} {
  func.func @_fused_lstm_head_kernel(%arg0: i32, %arg1: memref<8x8x128xf32, #tpu.memory_space<vmem>>, %arg2: memref<2x256x512xf32, #tpu.memory_space<vmem>>, %arg3: memref<2x1x512xf32, #tpu.memory_space<vmem>>, %arg4: memref<128x128xf32, #tpu.memory_space<vmem>>, %arg5: memref<1x128xf32, #tpu.memory_space<vmem>>, %arg6: memref<8x128xf32, #tpu.memory_space<vmem>>, %arg7: memref<8x8x128xf32, #tpu.memory_space<vmem>>) attributes {dimension_semantics = [#tpu.dimension_semantics<arbitrary>], iteration_bounds = array<i64: 1>, scalar_prefetch = 0 : i64, scratch_operands = 1 : i64, tpu.core_type = #tpu.core_type<tc>, window_params = [{pipeline_mode = #tpu.pipeline_mode<synchronous>, transform_indices = @transform_0, window_bounds = array<i64: 8, 8, 128>}, {pipeline_mode = #tpu.pipeline_mode<synchronous>, transform_indices = @transform_1, window_bounds = array<i64: 2, 256, 512>}, {pipeline_mode = #tpu.pipeline_mode<synchronous>, transform_indices = @transform_2, window_bounds = array<i64: 2, 1, 512>}, {pipeline_mode = #tpu.pipeline_mode<synchronous>, transform_indices = @transform_3, window_bounds = array<i64: 128, 128>}, {pipeline_mode = #tpu.pipeline_mode<synchronous>, transform_indices = @transform_4, window_bounds = array<i64: 1, 128>}, {pipeline_mode = #tpu.pipeline_mode<synchronous>, transform_indices = @transform_5, window_bounds = array<i64: 8, 128>}]} {
    %c0 = arith.constant 0 : index
    %c0_0 = arith.constant 0 : index
    %c0_1 = arith.constant 0 : index
    %0 = vector.load %arg1[%c0, %c0_0, %c0_1] : memref<8x8x128xf32, #tpu.memory_space<vmem>>, vector<8x8x128xf32>
    %c0_2 = arith.constant 0 : index
    %c0_3 = arith.constant 0 : index
    %c0_4 = arith.constant 0 : index
    %1 = vector.load %arg7[%c0_2, %c0_3, %c0_4] : memref<8x8x128xf32, #tpu.memory_space<vmem>>, vector<8x8x128xf32>
    tpu.vector_store %arg7[%c0_2, %c0_3, %c0_4], %0 {strides = array<i32>} : memref<8x8x128xf32, #tpu.memory_space<vmem>>, vector<8x8x128xf32>,
    %c0_5 = arith.constant 0 : index
    %c0_6 = arith.constant 0 : index
    %c0_7 = arith.constant 0 : index
    %2 = vector.load %arg2[%c0_5, %c0_6, %c0_7] : memref<2x256x512xf32, #tpu.memory_space<vmem>>, vector<1x256x512xf32>
    %3 = vector.shape_cast %2 : vector<1x256x512xf32> to vector<256x512xf32>
    %c0_8 = arith.constant 0 : index
    %c0_9 = arith.constant 0 : index
    %c0_10 = arith.constant 0 : index
    %4 = vector.load %arg3[%c0_8, %c0_9, %c0_10] : memref<2x1x512xf32, #tpu.memory_space<vmem>>, vector<1x1x512xf32>
    %5 = vector.shape_cast %4 : vector<1x1x512xf32> to vector<1x512xf32>
    %cst = arith.constant 0.000000e+00 : f32
    %6 = vector.broadcast %cst : f32 to vector<8x128xf32>
    %c0_i32 = arith.constant 0 : i32
    %7 = arith.index_cast %c0_i32 : i32 to index
    %c0_11 = arith.constant 0 : index
    %c0_12 = arith.constant 0 : index
    %8 = vector.load %arg7[%7, %c0_11, %c0_12] : memref<8x8x128xf32, #tpu.memory_space<vmem>>, vector<1x8x128xf32>
    %9 = vector.shape_cast %8 : vector<1x8x128xf32> to vector<8x128xf32>
    %10 = tpu.concatenate %9, %6 in 1 : vector<8x128xf32>, vector<8x128xf32> -> vector<8x256xf32>
    %cst_13 = arith.constant dense<0.000000e+00> : vector<8x512xf32>
    %11 = tpu.matmul %10, %3, %cst_13 {dimension_numbers = #tpu.dot_dimension_numbers<[1], [0], [0], [1], [0, 0, 1, 1], [], []>} : vector<8x256xf32>, vector<256x512xf32>, vector<8x512xf32> -> vector<8x512xf32>
    %12 = vector.broadcast %5 : vector<1x512xf32> to vector<8x512xf32>
    %13 = arith.addf %11, %12 : vector<8x512xf32>
    %14 = vector.extract_strided_slice %13 {offsets = [0, 0], sizes = [8, 128], strides = [1, 1]} : vector<8x512xf32> to vector<8x128xf32>
    %15 = arith.negf %14 : vector<8x128xf32>
    %16 = math.exp %15 : vector<8x128xf32>
    %cst_14 = arith.constant 1.000000e+00 : f32
    %17 = vector.broadcast %cst_14 : f32 to vector<8x128xf32>
    %18 = arith.addf %17, %16 : vector<8x128xf32>
    %19 = arith.divf %17, %18 : vector<8x128xf32>
    %20 = vector.extract_strided_slice %13 {offsets = [0, 128], sizes = [8, 128], strides = [1, 1]} : vector<8x512xf32> to vector<8x128xf32>
    %21 = arith.negf %20 : vector<8x128xf32>
    %22 = math.exp %21 : vector<8x128xf32>
    %cst_15 = arith.constant 1.000000e+00 : f32
    %23 = vector.broadcast %cst_15 : f32 to vector<8x128xf32>
    %24 = arith.addf %23, %22 : vector<8x128xf32>
    %25 = arith.divf %23, %24 : vector<8x128xf32>
    %26 = vector.extract_strided_slice %13 {offsets = [0, 256], sizes = [8, 128], strides = [1, 1]} : vector<8x512xf32> to vector<8x128xf32>
    %27 = math.tanh %26 : vector<8x128xf32>
    %28 = vector.extract_strided_slice %13 {offsets = [0, 384], sizes = [8, 128], strides = [1, 1]} : vector<8x512xf32> to vector<8x128xf32>
    %29 = arith.negf %28 : vector<8x128xf32>
    %30 = math.exp %29 : vector<8x128xf32>
    %cst_16 = arith.constant 1.000000e+00 : f32
    %31 = vector.broadcast %cst_16 : f32 to vector<8x128xf32>
    %32 = arith.addf %31, %30 : vector<8x128xf32>
    %33 = arith.divf %31, %32 : vector<8x128xf32>
    %34 = arith.mulf %25, %6 : vector<8x128xf32>
    %35 = arith.mulf %19, %27 : vector<8x128xf32>
    %36 = arith.addf %34, %35 : vector<8x128xf32>
    %37 = math.tanh %36 : vector<8x128xf32>
    %38 = arith.mulf %33, %37 : vector<8x128xf32>
    %39 = arith.index_cast %c0_i32 : i32 to index
    %c0_17 = arith.constant 0 : index
    %c0_18 = arith.constant 0 : index
    %40 = vector.load %arg7[%39, %c0_17, %c0_18] : memref<8x8x128xf32, #tpu.memory_space<vmem>>, vector<1x8x128xf32>
    %41 = vector.shape_cast %40 : vector<1x8x128xf32> to vector<8x128xf32>
    %42 = vector.shape_cast %38 : vector<8x128xf32> to vector<1x8x128xf32>
    tpu.vector_store %arg7[%39, %c0_17, %c0_18], %42 {strides = array<i32>} : memref<8x8x128xf32, #tpu.memory_space<vmem>>, vector<1x8x128xf32>,
    %c1_i32 = arith.constant 1 : i32
    %43 = arith.index_cast %c1_i32 : i32 to index
    %c0_19 = arith.constant 0 : index
    %c0_20 = arith.constant 0 : index
    %44 = vector.load %arg7[%43, %c0_19, %c0_20] : memref<8x8x128xf32, #tpu.memory_space<vmem>>, vector<1x8x128xf32>
    %45 = vector.shape_cast %44 : vector<1x8x128xf32> to vector<8x128xf32>
    %46 = tpu.concatenate %45, %38 in 1 : vector<8x128xf32>, vector<8x128xf32> -> vector<8x256xf32>
    %cst_21 = arith.constant dense<0.000000e+00> : vector<8x512xf32>
    %47 = tpu.matmul %46, %3, %cst_21 {dimension_numbers = #tpu.dot_dimension_numbers<[1], [0], [0], [1], [0, 0, 1, 1], [], []>} : vector<8x256xf32>, vector<256x512xf32>, vector<8x512xf32> -> vector<8x512xf32>
    %48 = vector.broadcast %5 : vector<1x512xf32> to vector<8x512xf32>
    %49 = arith.addf %47, %48 : vector<8x512xf32>
    %50 = vector.extract_strided_slice %49 {offsets = [0, 0], sizes = [8, 128], strides = [1, 1]} : vector<8x512xf32> to vector<8x128xf32>
    %51 = arith.negf %50 : vector<8x128xf32>
    %52 = math.exp %51 : vector<8x128xf32>
    %cst_22 = arith.constant 1.000000e+00 : f32
    %53 = vector.broadcast %cst_22 : f32 to vector<8x128xf32>
    %54 = arith.addf %53, %52 : vector<8x128xf32>
    %55 = arith.divf %53, %54 : vector<8x128xf32>
    %56 = vector.extract_strided_slice %49 {offsets = [0, 128], sizes = [8, 128], strides = [1, 1]} : vector<8x512xf32> to vector<8x128xf32>
    %57 = arith.negf %56 : vector<8x128xf32>
    %58 = math.exp %57 : vector<8x128xf32>
    %cst_23 = arith.constant 1.000000e+00 : f32
    %59 = vector.broadcast %cst_23 : f32 to vector<8x128xf32>
    %60 = arith.addf %59, %58 : vector<8x128xf32>
    %61 = arith.divf %59, %60 : vector<8x128xf32>
    %62 = vector.extract_strided_slice %49 {offsets = [0, 256], sizes = [8, 128], strides = [1, 1]} : vector<8x512xf32> to vector<8x128xf32>
    %63 = math.tanh %62 : vector<8x128xf32>
    %64 = vector.extract_strided_slice %49 {offsets = [0, 384], sizes = [8, 128], strides = [1, 1]} : vector<8x512xf32> to vector<8x128xf32>
    %65 = arith.negf %64 : vector<8x128xf32>
    %66 = math.exp %65 : vector<8x128xf32>
    %cst_24 = arith.constant 1.000000e+00 : f32
    %67 = vector.broadcast %cst_24 : f32 to vector<8x128xf32>
    %68 = arith.addf %67, %66 : vector<8x128xf32>
    %69 = arith.divf %67, %68 : vector<8x128xf32>
    %70 = arith.mulf %61, %36 : vector<8x128xf32>
    %71 = arith.mulf %55, %63 : vector<8x128xf32>
    %72 = arith.addf %70, %71 : vector<8x128xf32>
    %73 = math.tanh %72 : vector<8x128xf32>
    %74 = arith.mulf %69, %73 : vector<8x128xf32>
    %75 = arith.index_cast %c1_i32 : i32 to index
    %c0_25 = arith.constant 0 : index
    %c0_26 = arith.constant 0 : index
    %76 = vector.load %arg7[%75, %c0_25, %c0_26] : memref<8x8x128xf32, #tpu.memory_space<vmem>>, vector<1x8x128xf32>
    %77 = vector.shape_cast %76 : vector<1x8x128xf32> to vector<8x128xf32>
    %78 = vector.shape_cast %74 : vector<8x128xf32> to vector<1x8x128xf32>
    tpu.vector_store %arg7[%75, %c0_25, %c0_26], %78 {strides = array<i32>} : memref<8x8x128xf32, #tpu.memory_space<vmem>>, vector<1x8x128xf32>,
    %c2_i32 = arith.constant 2 : i32
    %79 = arith.index_cast %c2_i32 : i32 to index
    %c0_27 = arith.constant 0 : index
    %c0_28 = arith.constant 0 : index
    %80 = vector.load %arg7[%79, %c0_27, %c0_28] : memref<8x8x128xf32, #tpu.memory_space<vmem>>, vector<1x8x128xf32>
    %81 = vector.shape_cast %80 : vector<1x8x128xf32> to vector<8x128xf32>
    %82 = tpu.concatenate %81, %74 in 1 : vector<8x128xf32>, vector<8x128xf32> -> vector<8x256xf32>
    %cst_29 = arith.constant dense<0.000000e+00> : vector<8x512xf32>
    %83 = tpu.matmul %82, %3, %cst_29 {dimension_numbers = #tpu.dot_dimension_numbers<[1], [0], [0], [1], [0, 0, 1, 1], [], []>} : vector<8x256xf32>, vector<256x512xf32>, vector<8x512xf32> -> vector<8x512xf32>
    %84 = vector.broadcast %5 : vector<1x512xf32> to vector<8x512xf32>
    %85 = arith.addf %83, %84 : vector<8x512xf32>
    %86 = vector.extract_strided_slice %85 {offsets = [0, 0], sizes = [8, 128], strides = [1, 1]} : vector<8x512xf32> to vector<8x128xf32>
    %87 = arith.negf %86 : vector<8x128xf32>
    %88 = math.exp %87 : vector<8x128xf32>
    %cst_30 = arith.constant 1.000000e+00 : f32
    %89 = vector.broadcast %cst_30 : f32 to vector<8x128xf32>
    %90 = arith.addf %89, %88 : vector<8x128xf32>
    %91 = arith.divf %89, %90 : vector<8x128xf32>
    %92 = vector.extract_strided_slice %85 {offsets = [0, 128], sizes = [8, 128], strides = [1, 1]} : vector<8x512xf32> to vector<8x128xf32>
    %93 = arith.negf %92 : vector<8x128xf32>
    %94 = math.exp %93 : vector<8x128xf32>
    %cst_31 = arith.constant 1.000000e+00 : f32
    %95 = vector.broadcast %cst_31 : f32 to vector<8x128xf32>
    %96 = arith.addf %95, %94 : vector<8x128xf32>
    %97 = arith.divf %95, %96 : vector<8x128xf32>
    %98 = vector.extract_strided_slice %85 {offsets = [0, 256], sizes = [8, 128], strides = [1, 1]} : vector<8x512xf32> to vector<8x128xf32>
    %99 = math.tanh %98 : vector<8x128xf32>
    %100 = vector.extract_strided_slice %85 {offsets = [0, 384], sizes = [8, 128], strides = [1, 1]} : vector<8x512xf32> to vector<8x128xf32>
    %101 = arith.negf %100 : vector<8x128xf32>
    %102 = math.exp %101 : vector<8x128xf32>
    %cst_32 = arith.constant 1.000000e+00 : f32
    %103 = vector.broadcast %cst_32 : f32 to vector<8x128xf32>
    %104 = arith.addf %103, %102 : vector<8x128xf32>
    %105 = arith.divf %103, %104 : vector<8x128xf32>
    %106 = arith.mulf %97, %72 : vector<8x128xf32>
    %107 = arith.mulf %91, %99 : vector<8x128xf32>
    %108 = arith.addf %106, %107 : vector<8x128xf32>
    %109 = math.tanh %108 : vector<8x128xf32>
    %110 = arith.mulf %105, %109 : vector<8x128xf32>
    %111 = arith.index_cast %c2_i32 : i32 to index
    %c0_33 = arith.constant 0 : index
    %c0_34 = arith.constant 0 : index
    %112 = vector.load %arg7[%111, %c0_33, %c0_34] : memref<8x8x128xf32, #tpu.memory_space<vmem>>, vector<1x8x128xf32>
    %113 = vector.shape_cast %112 : vector<1x8x128xf32> to vector<8x128xf32>
    %114 = vector.shape_cast %110 : vector<8x128xf32> to vector<1x8x128xf32>
    tpu.vector_store %arg7[%111, %c0_33, %c0_34], %114 {strides = array<i32>} : memref<8x8x128xf32, #tpu.memory_space<vmem>>, vector<1x8x128xf32>,
    %c3_i32 = arith.constant 3 : i32
    %115 = arith.index_cast %c3_i32 : i32 to index
    %c0_35 = arith.constant 0 : index
    %c0_36 = arith.constant 0 : index
    %116 = vector.load %arg7[%115, %c0_35, %c0_36] : memref<8x8x128xf32, #tpu.memory_space<vmem>>, vector<1x8x128xf32>
    %117 = vector.shape_cast %116 : vector<1x8x128xf32> to vector<8x128xf32>
    %118 = tpu.concatenate %117, %110 in 1 : vector<8x128xf32>, vector<8x128xf32> -> vector<8x256xf32>
    %cst_37 = arith.constant dense<0.000000e+00> : vector<8x512xf32>
    %119 = tpu.matmul %118, %3, %cst_37 {dimension_numbers = #tpu.dot_dimension_numbers<[1], [0], [0], [1], [0, 0, 1, 1], [], []>} : vector<8x256xf32>, vector<256x512xf32>, vector<8x512xf32> -> vector<8x512xf32>
    %120 = vector.broadcast %5 : vector<1x512xf32> to vector<8x512xf32>
    %121 = arith.addf %119, %120 : vector<8x512xf32>
    %122 = vector.extract_strided_slice %121 {offsets = [0, 0], sizes = [8, 128], strides = [1, 1]} : vector<8x512xf32> to vector<8x128xf32>
    %123 = arith.negf %122 : vector<8x128xf32>
    %124 = math.exp %123 : vector<8x128xf32>
    %cst_38 = arith.constant 1.000000e+00 : f32
    %125 = vector.broadcast %cst_38 : f32 to vector<8x128xf32>
    %126 = arith.addf %125, %124 : vector<8x128xf32>
    %127 = arith.divf %125, %126 : vector<8x128xf32>
    %128 = vector.extract_strided_slice %121 {offsets = [0, 128], sizes = [8, 128], strides = [1, 1]} : vector<8x512xf32> to vector<8x128xf32>
    %129 = arith.negf %128 : vector<8x128xf32>
    %130 = math.exp %129 : vector<8x128xf32>
    %cst_39 = arith.constant 1.000000e+00 : f32
    %131 = vector.broadcast %cst_39 : f32 to vector<8x128xf32>
    %132 = arith.addf %131, %130 : vector<8x128xf32>
    %133 = arith.divf %131, %132 : vector<8x128xf32>
    %134 = vector.extract_strided_slice %121 {offsets = [0, 256], sizes = [8, 128], strides = [1, 1]} : vector<8x512xf32> to vector<8x128xf32>
    %135 = math.tanh %134 : vector<8x128xf32>
    %136 = vector.extract_strided_slice %121 {offsets = [0, 384], sizes = [8, 128], strides = [1, 1]} : vector<8x512xf32> to vector<8x128xf32>
    %137 = arith.negf %136 : vector<8x128xf32>
    %138 = math.exp %137 : vector<8x128xf32>
    %cst_40 = arith.constant 1.000000e+00 : f32
    %139 = vector.broadcast %cst_40 : f32 to vector<8x128xf32>
    %140 = arith.addf %139, %138 : vector<8x128xf32>
    %141 = arith.divf %139, %140 : vector<8x128xf32>
    %142 = arith.mulf %133, %108 : vector<8x128xf32>
    %143 = arith.mulf %127, %135 : vector<8x128xf32>
    %144 = arith.addf %142, %143 : vector<8x128xf32>
    %145 = math.tanh %144 : vector<8x128xf32>
    %146 = arith.mulf %141, %145 : vector<8x128xf32>
    %147 = arith.index_cast %c3_i32 : i32 to index
    %c0_41 = arith.constant 0 : index
    %c0_42 = arith.constant 0 : index
    %148 = vector.load %arg7[%147, %c0_41, %c0_42] : memref<8x8x128xf32, #tpu.memory_space<vmem>>, vector<1x8x128xf32>
    %149 = vector.shape_cast %148 : vector<1x8x128xf32> to vector<8x128xf32>
    %150 = vector.shape_cast %146 : vector<8x128xf32> to vector<1x8x128xf32>
    tpu.vector_store %arg7[%147, %c0_41, %c0_42], %150 {strides = array<i32>} : memref<8x8x128xf32, #tpu.memory_space<vmem>>, vector<1x8x128xf32>,
    %c4_i32 = arith.constant 4 : i32
    %151 = arith.index_cast %c4_i32 : i32 to index
    %c0_43 = arith.constant 0 : index
    %c0_44 = arith.constant 0 : index
    %152 = vector.load %arg7[%151, %c0_43, %c0_44] : memref<8x8x128xf32, #tpu.memory_space<vmem>>, vector<1x8x128xf32>
    %153 = vector.shape_cast %152 : vector<1x8x128xf32> to vector<8x128xf32>
    %154 = tpu.concatenate %153, %146 in 1 : vector<8x128xf32>, vector<8x128xf32> -> vector<8x256xf32>
    %cst_45 = arith.constant dense<0.000000e+00> : vector<8x512xf32>
    %155 = tpu.matmul %154, %3, %cst_45 {dimension_numbers = #tpu.dot_dimension_numbers<[1], [0], [0], [1], [0, 0, 1, 1], [], []>} : vector<8x256xf32>, vector<256x512xf32>, vector<8x512xf32> -> vector<8x512xf32>
    %156 = vector.broadcast %5 : vector<1x512xf32> to vector<8x512xf32>
    %157 = arith.addf %155, %156 : vector<8x512xf32>
    %158 = vector.extract_strided_slice %157 {offsets = [0, 0], sizes = [8, 128], strides = [1, 1]} : vector<8x512xf32> to vector<8x128xf32>
    %159 = arith.negf %158 : vector<8x128xf32>
    %160 = math.exp %159 : vector<8x128xf32>
    %cst_46 = arith.constant 1.000000e+00 : f32
    %161 = vector.broadcast %cst_46 : f32 to vector<8x128xf32>
    %162 = arith.addf %161, %160 : vector<8x128xf32>
    %163 = arith.divf %161, %162 : vector<8x128xf32>
    %164 = vector.extract_strided_slice %157 {offsets = [0, 128], sizes = [8, 128], strides = [1, 1]} : vector<8x512xf32> to vector<8x128xf32>
    %165 = arith.negf %164 : vector<8x128xf32>
    %166 = math.exp %165 : vector<8x128xf32>
    %cst_47 = arith.constant 1.000000e+00 : f32
    %167 = vector.broadcast %cst_47 : f32 to vector<8x128xf32>
    %168 = arith.addf %167, %166 : vector<8x128xf32>
    %169 = arith.divf %167, %168 : vector<8x128xf32>
    %170 = vector.extract_strided_slice %157 {offsets = [0, 256], sizes = [8, 128], strides = [1, 1]} : vector<8x512xf32> to vector<8x128xf32>
    %171 = math.tanh %170 : vector<8x128xf32>
    %172 = vector.extract_strided_slice %157 {offsets = [0, 384], sizes = [8, 128], strides = [1, 1]} : vector<8x512xf32> to vector<8x128xf32>
    %173 = arith.negf %172 : vector<8x128xf32>
    %174 = math.exp %173 : vector<8x128xf32>
    %cst_48 = arith.constant 1.000000e+00 : f32
    %175 = vector.broadcast %cst_48 : f32 to vector<8x128xf32>
    %176 = arith.addf %175, %174 : vector<8x128xf32>
    %177 = arith.divf %175, %176 : vector<8x128xf32>
    %178 = arith.mulf %169, %144 : vector<8x128xf32>
    %179 = arith.mulf %163, %171 : vector<8x128xf32>
    %180 = arith.addf %178, %179 : vector<8x128xf32>
    %181 = math.tanh %180 : vector<8x128xf32>
    %182 = arith.mulf %177, %181 : vector<8x128xf32>
    %183 = arith.index_cast %c4_i32 : i32 to index
    %c0_49 = arith.constant 0 : index
    %c0_50 = arith.constant 0 : index
    %184 = vector.load %arg7[%183, %c0_49, %c0_50] : memref<8x8x128xf32, #tpu.memory_space<vmem>>, vector<1x8x128xf32>
    %185 = vector.shape_cast %184 : vector<1x8x128xf32> to vector<8x128xf32>
    %186 = vector.shape_cast %182 : vector<8x128xf32> to vector<1x8x128xf32>
    tpu.vector_store %arg7[%183, %c0_49, %c0_50], %186 {strides = array<i32>} : memref<8x8x128xf32, #tpu.memory_space<vmem>>, vector<1x8x128xf32>,
    %c5_i32 = arith.constant 5 : i32
    %187 = arith.index_cast %c5_i32 : i32 to index
    %c0_51 = arith.constant 0 : index
    %c0_52 = arith.constant 0 : index
    %188 = vector.load %arg7[%187, %c0_51, %c0_52] : memref<8x8x128xf32, #tpu.memory_space<vmem>>, vector<1x8x128xf32>
    %189 = vector.shape_cast %188 : vector<1x8x128xf32> to vector<8x128xf32>
    %190 = tpu.concatenate %189, %182 in 1 : vector<8x128xf32>, vector<8x128xf32> -> vector<8x256xf32>
    %cst_53 = arith.constant dense<0.000000e+00> : vector<8x512xf32>
    %191 = tpu.matmul %190, %3, %cst_53 {dimension_numbers = #tpu.dot_dimension_numbers<[1], [0], [0], [1], [0, 0, 1, 1], [], []>} : vector<8x256xf32>, vector<256x512xf32>, vector<8x512xf32> -> vector<8x512xf32>
    %192 = vector.broadcast %5 : vector<1x512xf32> to vector<8x512xf32>
    %193 = arith.addf %191, %192 : vector<8x512xf32>
    %194 = vector.extract_strided_slice %193 {offsets = [0, 0], sizes = [8, 128], strides = [1, 1]} : vector<8x512xf32> to vector<8x128xf32>
    %195 = arith.negf %194 : vector<8x128xf32>
    %196 = math.exp %195 : vector<8x128xf32>
    %cst_54 = arith.constant 1.000000e+00 : f32
    %197 = vector.broadcast %cst_54 : f32 to vector<8x128xf32>
    %198 = arith.addf %197, %196 : vector<8x128xf32>
    %199 = arith.divf %197, %198 : vector<8x128xf32>
    %200 = vector.extract_strided_slice %193 {offsets = [0, 128], sizes = [8, 128], strides = [1, 1]} : vector<8x512xf32> to vector<8x128xf32>
    %201 = arith.negf %200 : vector<8x128xf32>
    %202 = math.exp %201 : vector<8x128xf32>
    %cst_55 = arith.constant 1.000000e+00 : f32
    %203 = vector.broadcast %cst_55 : f32 to vector<8x128xf32>
    %204 = arith.addf %203, %202 : vector<8x128xf32>
    %205 = arith.divf %203, %204 : vector<8x128xf32>
    %206 = vector.extract_strided_slice %193 {offsets = [0, 256], sizes = [8, 128], strides = [1, 1]} : vector<8x512xf32> to vector<8x128xf32>
    %207 = math.tanh %206 : vector<8x128xf32>
    %208 = vector.extract_strided_slice %193 {offsets = [0, 384], sizes = [8, 128], strides = [1, 1]} : vector<8x512xf32> to vector<8x128xf32>
    %209 = arith.negf %208 : vector<8x128xf32>
    %210 = math.exp %209 : vector<8x128xf32>
    %cst_56 = arith.constant 1.000000e+00 : f32
    %211 = vector.broadcast %cst_56 : f32 to vector<8x128xf32>
    %212 = arith.addf %211, %210 : vector<8x128xf32>
    %213 = arith.divf %211, %212 : vector<8x128xf32>
    %214 = arith.mulf %205, %180 : vector<8x128xf32>
    %215 = arith.mulf %199, %207 : vector<8x128xf32>
    %216 = arith.addf %214, %215 : vector<8x128xf32>
    %217 = math.tanh %216 : vector<8x128xf32>
    %218 = arith.mulf %213, %217 : vector<8x128xf32>
    %219 = arith.index_cast %c5_i32 : i32 to index
    %c0_57 = arith.constant 0 : index
    %c0_58 = arith.constant 0 : index
    %220 = vector.load %arg7[%219, %c0_57, %c0_58] : memref<8x8x128xf32, #tpu.memory_space<vmem>>, vector<1x8x128xf32>
    %221 = vector.shape_cast %220 : vector<1x8x128xf32> to vector<8x128xf32>
    %222 = vector.shape_cast %218 : vector<8x128xf32> to vector<1x8x128xf32>
    tpu.vector_store %arg7[%219, %c0_57, %c0_58], %222 {strides = array<i32>} : memref<8x8x128xf32, #tpu.memory_space<vmem>>, vector<1x8x128xf32>,
    %c6_i32 = arith.constant 6 : i32
    %223 = arith.index_cast %c6_i32 : i32 to index
    %c0_59 = arith.constant 0 : index
    %c0_60 = arith.constant 0 : index
    %224 = vector.load %arg7[%223, %c0_59, %c0_60] : memref<8x8x128xf32, #tpu.memory_space<vmem>>, vector<1x8x128xf32>
    %225 = vector.shape_cast %224 : vector<1x8x128xf32> to vector<8x128xf32>
    %226 = tpu.concatenate %225, %218 in 1 : vector<8x128xf32>, vector<8x128xf32> -> vector<8x256xf32>
    %cst_61 = arith.constant dense<0.000000e+00> : vector<8x512xf32>
    %227 = tpu.matmul %226, %3, %cst_61 {dimension_numbers = #tpu.dot_dimension_numbers<[1], [0], [0], [1], [0, 0, 1, 1], [], []>} : vector<8x256xf32>, vector<256x512xf32>, vector<8x512xf32> -> vector<8x512xf32>
    %228 = vector.broadcast %5 : vector<1x512xf32> to vector<8x512xf32>
    %229 = arith.addf %227, %228 : vector<8x512xf32>
    %230 = vector.extract_strided_slice %229 {offsets = [0, 0], sizes = [8, 128], strides = [1, 1]} : vector<8x512xf32> to vector<8x128xf32>
    %231 = arith.negf %230 : vector<8x128xf32>
    %232 = math.exp %231 : vector<8x128xf32>
    %cst_62 = arith.constant 1.000000e+00 : f32
    %233 = vector.broadcast %cst_62 : f32 to vector<8x128xf32>
    %234 = arith.addf %233, %232 : vector<8x128xf32>
    %235 = arith.divf %233, %234 : vector<8x128xf32>
    %236 = vector.extract_strided_slice %229 {offsets = [0, 128], sizes = [8, 128], strides = [1, 1]} : vector<8x512xf32> to vector<8x128xf32>
    %237 = arith.negf %236 : vector<8x128xf32>
    %238 = math.exp %237 : vector<8x128xf32>
    %cst_63 = arith.constant 1.000000e+00 : f32
    %239 = vector.broadcast %cst_63 : f32 to vector<8x128xf32>
    %240 = arith.addf %239, %238 : vector<8x128xf32>
    %241 = arith.divf %239, %240 : vector<8x128xf32>
    %242 = vector.extract_strided_slice %229 {offsets = [0, 256], sizes = [8, 128], strides = [1, 1]} : vector<8x512xf32> to vector<8x128xf32>
    %243 = math.tanh %242 : vector<8x128xf32>
    %244 = vector.extract_strided_slice %229 {offsets = [0, 384], sizes = [8, 128], strides = [1, 1]} : vector<8x512xf32> to vector<8x128xf32>
    %245 = arith.negf %244 : vector<8x128xf32>
    %246 = math.exp %245 : vector<8x128xf32>
    %cst_64 = arith.constant 1.000000e+00 : f32
    %247 = vector.broadcast %cst_64 : f32 to vector<8x128xf32>
    %248 = arith.addf %247, %246 : vector<8x128xf32>
    %249 = arith.divf %247, %248 : vector<8x128xf32>
    %250 = arith.mulf %241, %216 : vector<8x128xf32>
    %251 = arith.mulf %235, %243 : vector<8x128xf32>
    %252 = arith.addf %250, %251 : vector<8x128xf32>
    %253 = math.tanh %252 : vector<8x128xf32>
    %254 = arith.mulf %249, %253 : vector<8x128xf32>
    %255 = arith.index_cast %c6_i32 : i32 to index
    %c0_65 = arith.constant 0 : index
    %c0_66 = arith.constant 0 : index
    %256 = vector.load %arg7[%255, %c0_65, %c0_66] : memref<8x8x128xf32, #tpu.memory_space<vmem>>, vector<1x8x128xf32>
    %257 = vector.shape_cast %256 : vector<1x8x128xf32> to vector<8x128xf32>
    %258 = vector.shape_cast %254 : vector<8x128xf32> to vector<1x8x128xf32>
    tpu.vector_store %arg7[%255, %c0_65, %c0_66], %258 {strides = array<i32>} : memref<8x8x128xf32, #tpu.memory_space<vmem>>, vector<1x8x128xf32>,
    %c7_i32 = arith.constant 7 : i32
    %259 = arith.index_cast %c7_i32 : i32 to index
    %c0_67 = arith.constant 0 : index
    %c0_68 = arith.constant 0 : index
    %260 = vector.load %arg7[%259, %c0_67, %c0_68] : memref<8x8x128xf32, #tpu.memory_space<vmem>>, vector<1x8x128xf32>
    %261 = vector.shape_cast %260 : vector<1x8x128xf32> to vector<8x128xf32>
    %262 = tpu.concatenate %261, %254 in 1 : vector<8x128xf32>, vector<8x128xf32> -> vector<8x256xf32>
    %cst_69 = arith.constant dense<0.000000e+00> : vector<8x512xf32>
    %263 = tpu.matmul %262, %3, %cst_69 {dimension_numbers = #tpu.dot_dimension_numbers<[1], [0], [0], [1], [0, 0, 1, 1], [], []>} : vector<8x256xf32>, vector<256x512xf32>, vector<8x512xf32> -> vector<8x512xf32>
    %264 = vector.broadcast %5 : vector<1x512xf32> to vector<8x512xf32>
    %265 = arith.addf %263, %264 : vector<8x512xf32>
    %266 = vector.extract_strided_slice %265 {offsets = [0, 0], sizes = [8, 128], strides = [1, 1]} : vector<8x512xf32> to vector<8x128xf32>
    %267 = arith.negf %266 : vector<8x128xf32>
    %268 = math.exp %267 : vector<8x128xf32>
    %cst_70 = arith.constant 1.000000e+00 : f32
    %269 = vector.broadcast %cst_70 : f32 to vector<8x128xf32>
    %270 = arith.addf %269, %268 : vector<8x128xf32>
    %271 = arith.divf %269, %270 : vector<8x128xf32>
    %272 = vector.extract_strided_slice %265 {offsets = [0, 128], sizes = [8, 128], strides = [1, 1]} : vector<8x512xf32> to vector<8x128xf32>
    %273 = arith.negf %272 : vector<8x128xf32>
    %274 = math.exp %273 : vector<8x128xf32>
    %cst_71 = arith.constant 1.000000e+00 : f32
    %275 = vector.broadcast %cst_71 : f32 to vector<8x128xf32>
    %276 = arith.addf %275, %274 : vector<8x128xf32>
    %277 = arith.divf %275, %276 : vector<8x128xf32>
    %278 = vector.extract_strided_slice %265 {offsets = [0, 256], sizes = [8, 128], strides = [1, 1]} : vector<8x512xf32> to vector<8x128xf32>
    %279 = math.tanh %278 : vector<8x128xf32>
    %280 = vector.extract_strided_slice %265 {offsets = [0, 384], sizes = [8, 128], strides = [1, 1]} : vector<8x512xf32> to vector<8x128xf32>
    %281 = arith.negf %280 : vector<8x128xf32>
    %282 = math.exp %281 : vector<8x128xf32>
    %cst_72 = arith.constant 1.000000e+00 : f32
    %283 = vector.broadcast %cst_72 : f32 to vector<8x128xf32>
    %284 = arith.addf %283, %282 : vector<8x128xf32>
    %285 = arith.divf %283, %284 : vector<8x128xf32>
    %286 = arith.mulf %277, %252 : vector<8x128xf32>
    %287 = arith.mulf %271, %279 : vector<8x128xf32>
    %288 = arith.addf %286, %287 : vector<8x128xf32>
    %289 = math.tanh %288 : vector<8x128xf32>
    %290 = arith.mulf %285, %289 : vector<8x128xf32>
    %291 = arith.index_cast %c7_i32 : i32 to index
    %c0_73 = arith.constant 0 : index
    %c0_74 = arith.constant 0 : index
    %292 = vector.load %arg7[%291, %c0_73, %c0_74] : memref<8x8x128xf32, #tpu.memory_space<vmem>>, vector<1x8x128xf32>
    %293 = vector.shape_cast %292 : vector<1x8x128xf32> to vector<8x128xf32>
    %294 = vector.shape_cast %290 : vector<8x128xf32> to vector<1x8x128xf32>
    tpu.vector_store %arg7[%291, %c0_73, %c0_74], %294 {strides = array<i32>} : memref<8x8x128xf32, #tpu.memory_space<vmem>>, vector<1x8x128xf32>,
    %c8_i32 = arith.constant 8 : i32
    %c1 = arith.constant 1 : index
    %c0_75 = arith.constant 0 : index
    %c0_76 = arith.constant 0 : index
    %295 = vector.load %arg2[%c1, %c0_75, %c0_76] : memref<2x256x512xf32, #tpu.memory_space<vmem>>, vector<1x256x512xf32>
    %296 = vector.shape_cast %295 : vector<1x256x512xf32> to vector<256x512xf32>
    %c1_77 = arith.constant 1 : index
    %c0_78 = arith.constant 0 : index
    %c0_79 = arith.constant 0 : index
    %297 = vector.load %arg3[%c1_77, %c0_78, %c0_79] : memref<2x1x512xf32, #tpu.memory_space<vmem>>, vector<1x1x512xf32>
    %298 = vector.shape_cast %297 : vector<1x1x512xf32> to vector<1x512xf32>
    %cst_80 = arith.constant 0.000000e+00 : f32
    %299 = vector.broadcast %cst_80 : f32 to vector<8x128xf32>
    %c0_i32_81 = arith.constant 0 : i32
    %300 = arith.index_cast %c0_i32_81 : i32 to index
    %c0_82 = arith.constant 0 : index
    %c0_83 = arith.constant 0 : index
    %301 = vector.load %arg7[%300, %c0_82, %c0_83] : memref<8x8x128xf32, #tpu.memory_space<vmem>>, vector<1x8x128xf32>
    %302 = vector.shape_cast %301 : vector<1x8x128xf32> to vector<8x128xf32>
    %303 = tpu.concatenate %302, %299 in 1 : vector<8x128xf32>, vector<8x128xf32> -> vector<8x256xf32>
    %cst_84 = arith.constant dense<0.000000e+00> : vector<8x512xf32>
    %304 = tpu.matmul %303, %296, %cst_84 {dimension_numbers = #tpu.dot_dimension_numbers<[1], [0], [0], [1], [0, 0, 1, 1], [], []>} : vector<8x256xf32>, vector<256x512xf32>, vector<8x512xf32> -> vector<8x512xf32>
    %305 = vector.broadcast %298 : vector<1x512xf32> to vector<8x512xf32>
    %306 = arith.addf %304, %305 : vector<8x512xf32>
    %307 = vector.extract_strided_slice %306 {offsets = [0, 0], sizes = [8, 128], strides = [1, 1]} : vector<8x512xf32> to vector<8x128xf32>
    %308 = arith.negf %307 : vector<8x128xf32>
    %309 = math.exp %308 : vector<8x128xf32>
    %cst_85 = arith.constant 1.000000e+00 : f32
    %310 = vector.broadcast %cst_85 : f32 to vector<8x128xf32>
    %311 = arith.addf %310, %309 : vector<8x128xf32>
    %312 = arith.divf %310, %311 : vector<8x128xf32>
    %313 = vector.extract_strided_slice %306 {offsets = [0, 128], sizes = [8, 128], strides = [1, 1]} : vector<8x512xf32> to vector<8x128xf32>
    %314 = arith.negf %313 : vector<8x128xf32>
    %315 = math.exp %314 : vector<8x128xf32>
    %cst_86 = arith.constant 1.000000e+00 : f32
    %316 = vector.broadcast %cst_86 : f32 to vector<8x128xf32>
    %317 = arith.addf %316, %315 : vector<8x128xf32>
    %318 = arith.divf %316, %317 : vector<8x128xf32>
    %319 = vector.extract_strided_slice %306 {offsets = [0, 256], sizes = [8, 128], strides = [1, 1]} : vector<8x512xf32> to vector<8x128xf32>
    %320 = math.tanh %319 : vector<8x128xf32>
    %321 = vector.extract_strided_slice %306 {offsets = [0, 384], sizes = [8, 128], strides = [1, 1]} : vector<8x512xf32> to vector<8x128xf32>
    %322 = arith.negf %321 : vector<8x128xf32>
    %323 = math.exp %322 : vector<8x128xf32>
    %cst_87 = arith.constant 1.000000e+00 : f32
    %324 = vector.broadcast %cst_87 : f32 to vector<8x128xf32>
    %325 = arith.addf %324, %323 : vector<8x128xf32>
    %326 = arith.divf %324, %325 : vector<8x128xf32>
    %327 = arith.mulf %318, %299 : vector<8x128xf32>
    %328 = arith.mulf %312, %320 : vector<8x128xf32>
    %329 = arith.addf %327, %328 : vector<8x128xf32>
    %330 = math.tanh %329 : vector<8x128xf32>
    %331 = arith.mulf %326, %330 : vector<8x128xf32>
    %332 = arith.index_cast %c0_i32_81 : i32 to index
    %c0_88 = arith.constant 0 : index
    %c0_89 = arith.constant 0 : index
    %333 = vector.load %arg7[%332, %c0_88, %c0_89] : memref<8x8x128xf32, #tpu.memory_space<vmem>>, vector<1x8x128xf32>
    %334 = vector.shape_cast %333 : vector<1x8x128xf32> to vector<8x128xf32>
    %335 = vector.shape_cast %331 : vector<8x128xf32> to vector<1x8x128xf32>
    tpu.vector_store %arg7[%332, %c0_88, %c0_89], %335 {strides = array<i32>} : memref<8x8x128xf32, #tpu.memory_space<vmem>>, vector<1x8x128xf32>,
    %c1_i32_90 = arith.constant 1 : i32
    %336 = arith.index_cast %c1_i32_90 : i32 to index
    %c0_91 = arith.constant 0 : index
    %c0_92 = arith.constant 0 : index
    %337 = vector.load %arg7[%336, %c0_91, %c0_92] : memref<8x8x128xf32, #tpu.memory_space<vmem>>, vector<1x8x128xf32>
    %338 = vector.shape_cast %337 : vector<1x8x128xf32> to vector<8x128xf32>
    %339 = tpu.concatenate %338, %331 in 1 : vector<8x128xf32>, vector<8x128xf32> -> vector<8x256xf32>
    %cst_93 = arith.constant dense<0.000000e+00> : vector<8x512xf32>
    %340 = tpu.matmul %339, %296, %cst_93 {dimension_numbers = #tpu.dot_dimension_numbers<[1], [0], [0], [1], [0, 0, 1, 1], [], []>} : vector<8x256xf32>, vector<256x512xf32>, vector<8x512xf32> -> vector<8x512xf32>
    %341 = vector.broadcast %298 : vector<1x512xf32> to vector<8x512xf32>
    %342 = arith.addf %340, %341 : vector<8x512xf32>
    %343 = vector.extract_strided_slice %342 {offsets = [0, 0], sizes = [8, 128], strides = [1, 1]} : vector<8x512xf32> to vector<8x128xf32>
    %344 = arith.negf %343 : vector<8x128xf32>
    %345 = math.exp %344 : vector<8x128xf32>
    %cst_94 = arith.constant 1.000000e+00 : f32
    %346 = vector.broadcast %cst_94 : f32 to vector<8x128xf32>
    %347 = arith.addf %346, %345 : vector<8x128xf32>
    %348 = arith.divf %346, %347 : vector<8x128xf32>
    %349 = vector.extract_strided_slice %342 {offsets = [0, 128], sizes = [8, 128], strides = [1, 1]} : vector<8x512xf32> to vector<8x128xf32>
    %350 = arith.negf %349 : vector<8x128xf32>
    %351 = math.exp %350 : vector<8x128xf32>
    %cst_95 = arith.constant 1.000000e+00 : f32
    %352 = vector.broadcast %cst_95 : f32 to vector<8x128xf32>
    %353 = arith.addf %352, %351 : vector<8x128xf32>
    %354 = arith.divf %352, %353 : vector<8x128xf32>
    %355 = vector.extract_strided_slice %342 {offsets = [0, 256], sizes = [8, 128], strides = [1, 1]} : vector<8x512xf32> to vector<8x128xf32>
    %356 = math.tanh %355 : vector<8x128xf32>
    %357 = vector.extract_strided_slice %342 {offsets = [0, 384], sizes = [8, 128], strides = [1, 1]} : vector<8x512xf32> to vector<8x128xf32>
    %358 = arith.negf %357 : vector<8x128xf32>
    %359 = math.exp %358 : vector<8x128xf32>
    %cst_96 = arith.constant 1.000000e+00 : f32
    %360 = vector.broadcast %cst_96 : f32 to vector<8x128xf32>
    %361 = arith.addf %360, %359 : vector<8x128xf32>
    %362 = arith.divf %360, %361 : vector<8x128xf32>
    %363 = arith.mulf %354, %329 : vector<8x128xf32>
    %364 = arith.mulf %348, %356 : vector<8x128xf32>
    %365 = arith.addf %363, %364 : vector<8x128xf32>
    %366 = math.tanh %365 : vector<8x128xf32>
    %367 = arith.mulf %362, %366 : vector<8x128xf32>
    %368 = arith.index_cast %c1_i32_90 : i32 to index
    %c0_97 = arith.constant 0 : index
    %c0_98 = arith.constant 0 : index
    %369 = vector.load %arg7[%368, %c0_97, %c0_98] : memref<8x8x128xf32, #tpu.memory_space<vmem>>, vector<1x8x128xf32>
    %370 = vector.shape_cast %369 : vector<1x8x128xf32> to vector<8x128xf32>
    %371 = vector.shape_cast %367 : vector<8x128xf32> to vector<1x8x128xf32>
    tpu.vector_store %arg7[%368, %c0_97, %c0_98], %371 {strides = array<i32>} : memref<8x8x128xf32, #tpu.memory_space<vmem>>, vector<1x8x128xf32>,
    %c2_i32_99 = arith.constant 2 : i32
    %372 = arith.index_cast %c2_i32_99 : i32 to index
    %c0_100 = arith.constant 0 : index
    %c0_101 = arith.constant 0 : index
    %373 = vector.load %arg7[%372, %c0_100, %c0_101] : memref<8x8x128xf32, #tpu.memory_space<vmem>>, vector<1x8x128xf32>
    %374 = vector.shape_cast %373 : vector<1x8x128xf32> to vector<8x128xf32>
    %375 = tpu.concatenate %374, %367 in 1 : vector<8x128xf32>, vector<8x128xf32> -> vector<8x256xf32>
    %cst_102 = arith.constant dense<0.000000e+00> : vector<8x512xf32>
    %376 = tpu.matmul %375, %296, %cst_102 {dimension_numbers = #tpu.dot_dimension_numbers<[1], [0], [0], [1], [0, 0, 1, 1], [], []>} : vector<8x256xf32>, vector<256x512xf32>, vector<8x512xf32> -> vector<8x512xf32>
    %377 = vector.broadcast %298 : vector<1x512xf32> to vector<8x512xf32>
    %378 = arith.addf %376, %377 : vector<8x512xf32>
    %379 = vector.extract_strided_slice %378 {offsets = [0, 0], sizes = [8, 128], strides = [1, 1]} : vector<8x512xf32> to vector<8x128xf32>
    %380 = arith.negf %379 : vector<8x128xf32>
    %381 = math.exp %380 : vector<8x128xf32>
    %cst_103 = arith.constant 1.000000e+00 : f32
    %382 = vector.broadcast %cst_103 : f32 to vector<8x128xf32>
    %383 = arith.addf %382, %381 : vector<8x128xf32>
    %384 = arith.divf %382, %383 : vector<8x128xf32>
    %385 = vector.extract_strided_slice %378 {offsets = [0, 128], sizes = [8, 128], strides = [1, 1]} : vector<8x512xf32> to vector<8x128xf32>
    %386 = arith.negf %385 : vector<8x128xf32>
    %387 = math.exp %386 : vector<8x128xf32>
    %cst_104 = arith.constant 1.000000e+00 : f32
    %388 = vector.broadcast %cst_104 : f32 to vector<8x128xf32>
    %389 = arith.addf %388, %387 : vector<8x128xf32>
    %390 = arith.divf %388, %389 : vector<8x128xf32>
    %391 = vector.extract_strided_slice %378 {offsets = [0, 256], sizes = [8, 128], strides = [1, 1]} : vector<8x512xf32> to vector<8x128xf32>
    %392 = math.tanh %391 : vector<8x128xf32>
    %393 = vector.extract_strided_slice %378 {offsets = [0, 384], sizes = [8, 128], strides = [1, 1]} : vector<8x512xf32> to vector<8x128xf32>
    %394 = arith.negf %393 : vector<8x128xf32>
    %395 = math.exp %394 : vector<8x128xf32>
    %cst_105 = arith.constant 1.000000e+00 : f32
    %396 = vector.broadcast %cst_105 : f32 to vector<8x128xf32>
    %397 = arith.addf %396, %395 : vector<8x128xf32>
    %398 = arith.divf %396, %397 : vector<8x128xf32>
    %399 = arith.mulf %390, %365 : vector<8x128xf32>
    %400 = arith.mulf %384, %392 : vector<8x128xf32>
    %401 = arith.addf %399, %400 : vector<8x128xf32>
    %402 = math.tanh %401 : vector<8x128xf32>
    %403 = arith.mulf %398, %402 : vector<8x128xf32>
    %404 = arith.index_cast %c2_i32_99 : i32 to index
    %c0_106 = arith.constant 0 : index
    %c0_107 = arith.constant 0 : index
    %405 = vector.load %arg7[%404, %c0_106, %c0_107] : memref<8x8x128xf32, #tpu.memory_space<vmem>>, vector<1x8x128xf32>
    %406 = vector.shape_cast %405 : vector<1x8x128xf32> to vector<8x128xf32>
    %407 = vector.shape_cast %403 : vector<8x128xf32> to vector<1x8x128xf32>
    tpu.vector_store %arg7[%404, %c0_106, %c0_107], %407 {strides = array<i32>} : memref<8x8x128xf32, #tpu.memory_space<vmem>>, vector<1x8x128xf32>,
    %c3_i32_108 = arith.constant 3 : i32
    %408 = arith.index_cast %c3_i32_108 : i32 to index
    %c0_109 = arith.constant 0 : index
    %c0_110 = arith.constant 0 : index
    %409 = vector.load %arg7[%408, %c0_109, %c0_110] : memref<8x8x128xf32, #tpu.memory_space<vmem>>, vector<1x8x128xf32>
    %410 = vector.shape_cast %409 : vector<1x8x128xf32> to vector<8x128xf32>
    %411 = tpu.concatenate %410, %403 in 1 : vector<8x128xf32>, vector<8x128xf32> -> vector<8x256xf32>
    %cst_111 = arith.constant dense<0.000000e+00> : vector<8x512xf32>
    %412 = tpu.matmul %411, %296, %cst_111 {dimension_numbers = #tpu.dot_dimension_numbers<[1], [0], [0], [1], [0, 0, 1, 1], [], []>} : vector<8x256xf32>, vector<256x512xf32>, vector<8x512xf32> -> vector<8x512xf32>
    %413 = vector.broadcast %298 : vector<1x512xf32> to vector<8x512xf32>
    %414 = arith.addf %412, %413 : vector<8x512xf32>
    %415 = vector.extract_strided_slice %414 {offsets = [0, 0], sizes = [8, 128], strides = [1, 1]} : vector<8x512xf32> to vector<8x128xf32>
    %416 = arith.negf %415 : vector<8x128xf32>
    %417 = math.exp %416 : vector<8x128xf32>
    %cst_112 = arith.constant 1.000000e+00 : f32
    %418 = vector.broadcast %cst_112 : f32 to vector<8x128xf32>
    %419 = arith.addf %418, %417 : vector<8x128xf32>
    %420 = arith.divf %418, %419 : vector<8x128xf32>
    %421 = vector.extract_strided_slice %414 {offsets = [0, 128], sizes = [8, 128], strides = [1, 1]} : vector<8x512xf32> to vector<8x128xf32>
    %422 = arith.negf %421 : vector<8x128xf32>
    %423 = math.exp %422 : vector<8x128xf32>
    %cst_113 = arith.constant 1.000000e+00 : f32
    %424 = vector.broadcast %cst_113 : f32 to vector<8x128xf32>
    %425 = arith.addf %424, %423 : vector<8x128xf32>
    %426 = arith.divf %424, %425 : vector<8x128xf32>
    %427 = vector.extract_strided_slice %414 {offsets = [0, 256], sizes = [8, 128], strides = [1, 1]} : vector<8x512xf32> to vector<8x128xf32>
    %428 = math.tanh %427 : vector<8x128xf32>
    %429 = vector.extract_strided_slice %414 {offsets = [0, 384], sizes = [8, 128], strides = [1, 1]} : vector<8x512xf32> to vector<8x128xf32>
    %430 = arith.negf %429 : vector<8x128xf32>
    %431 = math.exp %430 : vector<8x128xf32>
    %cst_114 = arith.constant 1.000000e+00 : f32
    %432 = vector.broadcast %cst_114 : f32 to vector<8x128xf32>
    %433 = arith.addf %432, %431 : vector<8x128xf32>
    %434 = arith.divf %432, %433 : vector<8x128xf32>
    %435 = arith.mulf %426, %401 : vector<8x128xf32>
    %436 = arith.mulf %420, %428 : vector<8x128xf32>
    %437 = arith.addf %435, %436 : vector<8x128xf32>
    %438 = math.tanh %437 : vector<8x128xf32>
    %439 = arith.mulf %434, %438 : vector<8x128xf32>
    %440 = arith.index_cast %c3_i32_108 : i32 to index
    %c0_115 = arith.constant 0 : index
    %c0_116 = arith.constant 0 : index
    %441 = vector.load %arg7[%440, %c0_115, %c0_116] : memref<8x8x128xf32, #tpu.memory_space<vmem>>, vector<1x8x128xf32>
    %442 = vector.shape_cast %441 : vector<1x8x128xf32> to vector<8x128xf32>
    %443 = vector.shape_cast %439 : vector<8x128xf32> to vector<1x8x128xf32>
    tpu.vector_store %arg7[%440, %c0_115, %c0_116], %443 {strides = array<i32>} : memref<8x8x128xf32, #tpu.memory_space<vmem>>, vector<1x8x128xf32>,
    %c4_i32_117 = arith.constant 4 : i32
    %444 = arith.index_cast %c4_i32_117 : i32 to index
    %c0_118 = arith.constant 0 : index
    %c0_119 = arith.constant 0 : index
    %445 = vector.load %arg7[%444, %c0_118, %c0_119] : memref<8x8x128xf32, #tpu.memory_space<vmem>>, vector<1x8x128xf32>
    %446 = vector.shape_cast %445 : vector<1x8x128xf32> to vector<8x128xf32>
    %447 = tpu.concatenate %446, %439 in 1 : vector<8x128xf32>, vector<8x128xf32> -> vector<8x256xf32>
    %cst_120 = arith.constant dense<0.000000e+00> : vector<8x512xf32>
    %448 = tpu.matmul %447, %296, %cst_120 {dimension_numbers = #tpu.dot_dimension_numbers<[1], [0], [0], [1], [0, 0, 1, 1], [], []>} : vector<8x256xf32>, vector<256x512xf32>, vector<8x512xf32> -> vector<8x512xf32>
    %449 = vector.broadcast %298 : vector<1x512xf32> to vector<8x512xf32>
    %450 = arith.addf %448, %449 : vector<8x512xf32>
    %451 = vector.extract_strided_slice %450 {offsets = [0, 0], sizes = [8, 128], strides = [1, 1]} : vector<8x512xf32> to vector<8x128xf32>
    %452 = arith.negf %451 : vector<8x128xf32>
    %453 = math.exp %452 : vector<8x128xf32>
    %cst_121 = arith.constant 1.000000e+00 : f32
    %454 = vector.broadcast %cst_121 : f32 to vector<8x128xf32>
    %455 = arith.addf %454, %453 : vector<8x128xf32>
    %456 = arith.divf %454, %455 : vector<8x128xf32>
    %457 = vector.extract_strided_slice %450 {offsets = [0, 128], sizes = [8, 128], strides = [1, 1]} : vector<8x512xf32> to vector<8x128xf32>
    %458 = arith.negf %457 : vector<8x128xf32>
    %459 = math.exp %458 : vector<8x128xf32>
    %cst_122 = arith.constant 1.000000e+00 : f32
    %460 = vector.broadcast %cst_122 : f32 to vector<8x128xf32>
    %461 = arith.addf %460, %459 : vector<8x128xf32>
    %462 = arith.divf %460, %461 : vector<8x128xf32>
    %463 = vector.extract_strided_slice %450 {offsets = [0, 256], sizes = [8, 128], strides = [1, 1]} : vector<8x512xf32> to vector<8x128xf32>
    %464 = math.tanh %463 : vector<8x128xf32>
    %465 = vector.extract_strided_slice %450 {offsets = [0, 384], sizes = [8, 128], strides = [1, 1]} : vector<8x512xf32> to vector<8x128xf32>
    %466 = arith.negf %465 : vector<8x128xf32>
    %467 = math.exp %466 : vector<8x128xf32>
    %cst_123 = arith.constant 1.000000e+00 : f32
    %468 = vector.broadcast %cst_123 : f32 to vector<8x128xf32>
    %469 = arith.addf %468, %467 : vector<8x128xf32>
    %470 = arith.divf %468, %469 : vector<8x128xf32>
    %471 = arith.mulf %462, %437 : vector<8x128xf32>
    %472 = arith.mulf %456, %464 : vector<8x128xf32>
    %473 = arith.addf %471, %472 : vector<8x128xf32>
    %474 = math.tanh %473 : vector<8x128xf32>
    %475 = arith.mulf %470, %474 : vector<8x128xf32>
    %476 = arith.index_cast %c4_i32_117 : i32 to index
    %c0_124 = arith.constant 0 : index
    %c0_125 = arith.constant 0 : index
    %477 = vector.load %arg7[%476, %c0_124, %c0_125] : memref<8x8x128xf32, #tpu.memory_space<vmem>>, vector<1x8x128xf32>
    %478 = vector.shape_cast %477 : vector<1x8x128xf32> to vector<8x128xf32>
    %479 = vector.shape_cast %475 : vector<8x128xf32> to vector<1x8x128xf32>
    tpu.vector_store %arg7[%476, %c0_124, %c0_125], %479 {strides = array<i32>} : memref<8x8x128xf32, #tpu.memory_space<vmem>>, vector<1x8x128xf32>,
    %c5_i32_126 = arith.constant 5 : i32
    %480 = arith.index_cast %c5_i32_126 : i32 to index
    %c0_127 = arith.constant 0 : index
    %c0_128 = arith.constant 0 : index
    %481 = vector.load %arg7[%480, %c0_127, %c0_128] : memref<8x8x128xf32, #tpu.memory_space<vmem>>, vector<1x8x128xf32>
    %482 = vector.shape_cast %481 : vector<1x8x128xf32> to vector<8x128xf32>
    %483 = tpu.concatenate %482, %475 in 1 : vector<8x128xf32>, vector<8x128xf32> -> vector<8x256xf32>
    %cst_129 = arith.constant dense<0.000000e+00> : vector<8x512xf32>
    %484 = tpu.matmul %483, %296, %cst_129 {dimension_numbers = #tpu.dot_dimension_numbers<[1], [0], [0], [1], [0, 0, 1, 1], [], []>} : vector<8x256xf32>, vector<256x512xf32>, vector<8x512xf32> -> vector<8x512xf32>
    %485 = vector.broadcast %298 : vector<1x512xf32> to vector<8x512xf32>
    %486 = arith.addf %484, %485 : vector<8x512xf32>
    %487 = vector.extract_strided_slice %486 {offsets = [0, 0], sizes = [8, 128], strides = [1, 1]} : vector<8x512xf32> to vector<8x128xf32>
    %488 = arith.negf %487 : vector<8x128xf32>
    %489 = math.exp %488 : vector<8x128xf32>
    %cst_130 = arith.constant 1.000000e+00 : f32
    %490 = vector.broadcast %cst_130 : f32 to vector<8x128xf32>
    %491 = arith.addf %490, %489 : vector<8x128xf32>
    %492 = arith.divf %490, %491 : vector<8x128xf32>
    %493 = vector.extract_strided_slice %486 {offsets = [0, 128], sizes = [8, 128], strides = [1, 1]} : vector<8x512xf32> to vector<8x128xf32>
    %494 = arith.negf %493 : vector<8x128xf32>
    %495 = math.exp %494 : vector<8x128xf32>
    %cst_131 = arith.constant 1.000000e+00 : f32
    %496 = vector.broadcast %cst_131 : f32 to vector<8x128xf32>
    %497 = arith.addf %496, %495 : vector<8x128xf32>
    %498 = arith.divf %496, %497 : vector<8x128xf32>
    %499 = vector.extract_strided_slice %486 {offsets = [0, 256], sizes = [8, 128], strides = [1, 1]} : vector<8x512xf32> to vector<8x128xf32>
    %500 = math.tanh %499 : vector<8x128xf32>
    %501 = vector.extract_strided_slice %486 {offsets = [0, 384], sizes = [8, 128], strides = [1, 1]} : vector<8x512xf32> to vector<8x128xf32>
    %502 = arith.negf %501 : vector<8x128xf32>
    %503 = math.exp %502 : vector<8x128xf32>
    %cst_132 = arith.constant 1.000000e+00 : f32
    %504 = vector.broadcast %cst_132 : f32 to vector<8x128xf32>
    %505 = arith.addf %504, %503 : vector<8x128xf32>
    %506 = arith.divf %504, %505 : vector<8x128xf32>
    %507 = arith.mulf %498, %473 : vector<8x128xf32>
    %508 = arith.mulf %492, %500 : vector<8x128xf32>
    %509 = arith.addf %507, %508 : vector<8x128xf32>
    %510 = math.tanh %509 : vector<8x128xf32>
    %511 = arith.mulf %506, %510 : vector<8x128xf32>
    %512 = arith.index_cast %c5_i32_126 : i32 to index
    %c0_133 = arith.constant 0 : index
    %c0_134 = arith.constant 0 : index
    %513 = vector.load %arg7[%512, %c0_133, %c0_134] : memref<8x8x128xf32, #tpu.memory_space<vmem>>, vector<1x8x128xf32>
    %514 = vector.shape_cast %513 : vector<1x8x128xf32> to vector<8x128xf32>
    %515 = vector.shape_cast %511 : vector<8x128xf32> to vector<1x8x128xf32>
    tpu.vector_store %arg7[%512, %c0_133, %c0_134], %515 {strides = array<i32>} : memref<8x8x128xf32, #tpu.memory_space<vmem>>, vector<1x8x128xf32>,
    %c6_i32_135 = arith.constant 6 : i32
    %516 = arith.index_cast %c6_i32_135 : i32 to index
    %c0_136 = arith.constant 0 : index
    %c0_137 = arith.constant 0 : index
    %517 = vector.load %arg7[%516, %c0_136, %c0_137] : memref<8x8x128xf32, #tpu.memory_space<vmem>>, vector<1x8x128xf32>
    %518 = vector.shape_cast %517 : vector<1x8x128xf32> to vector<8x128xf32>
    %519 = tpu.concatenate %518, %511 in 1 : vector<8x128xf32>, vector<8x128xf32> -> vector<8x256xf32>
    %cst_138 = arith.constant dense<0.000000e+00> : vector<8x512xf32>
    %520 = tpu.matmul %519, %296, %cst_138 {dimension_numbers = #tpu.dot_dimension_numbers<[1], [0], [0], [1], [0, 0, 1, 1], [], []>} : vector<8x256xf32>, vector<256x512xf32>, vector<8x512xf32> -> vector<8x512xf32>
    %521 = vector.broadcast %298 : vector<1x512xf32> to vector<8x512xf32>
    %522 = arith.addf %520, %521 : vector<8x512xf32>
    %523 = vector.extract_strided_slice %522 {offsets = [0, 0], sizes = [8, 128], strides = [1, 1]} : vector<8x512xf32> to vector<8x128xf32>
    %524 = arith.negf %523 : vector<8x128xf32>
    %525 = math.exp %524 : vector<8x128xf32>
    %cst_139 = arith.constant 1.000000e+00 : f32
    %526 = vector.broadcast %cst_139 : f32 to vector<8x128xf32>
    %527 = arith.addf %526, %525 : vector<8x128xf32>
    %528 = arith.divf %526, %527 : vector<8x128xf32>
    %529 = vector.extract_strided_slice %522 {offsets = [0, 128], sizes = [8, 128], strides = [1, 1]} : vector<8x512xf32> to vector<8x128xf32>
    %530 = arith.negf %529 : vector<8x128xf32>
    %531 = math.exp %530 : vector<8x128xf32>
    %cst_140 = arith.constant 1.000000e+00 : f32
    %532 = vector.broadcast %cst_140 : f32 to vector<8x128xf32>
    %533 = arith.addf %532, %531 : vector<8x128xf32>
    %534 = arith.divf %532, %533 : vector<8x128xf32>
    %535 = vector.extract_strided_slice %522 {offsets = [0, 256], sizes = [8, 128], strides = [1, 1]} : vector<8x512xf32> to vector<8x128xf32>
    %536 = math.tanh %535 : vector<8x128xf32>
    %537 = vector.extract_strided_slice %522 {offsets = [0, 384], sizes = [8, 128], strides = [1, 1]} : vector<8x512xf32> to vector<8x128xf32>
    %538 = arith.negf %537 : vector<8x128xf32>
    %539 = math.exp %538 : vector<8x128xf32>
    %cst_141 = arith.constant 1.000000e+00 : f32
    %540 = vector.broadcast %cst_141 : f32 to vector<8x128xf32>
    %541 = arith.addf %540, %539 : vector<8x128xf32>
    %542 = arith.divf %540, %541 : vector<8x128xf32>
    %543 = arith.mulf %534, %509 : vector<8x128xf32>
    %544 = arith.mulf %528, %536 : vector<8x128xf32>
    %545 = arith.addf %543, %544 : vector<8x128xf32>
    %546 = math.tanh %545 : vector<8x128xf32>
    %547 = arith.mulf %542, %546 : vector<8x128xf32>
    %548 = arith.index_cast %c6_i32_135 : i32 to index
    %c0_142 = arith.constant 0 : index
    %c0_143 = arith.constant 0 : index
    %549 = vector.load %arg7[%548, %c0_142, %c0_143] : memref<8x8x128xf32, #tpu.memory_space<vmem>>, vector<1x8x128xf32>
    %550 = vector.shape_cast %549 : vector<1x8x128xf32> to vector<8x128xf32>
    %551 = vector.shape_cast %547 : vector<8x128xf32> to vector<1x8x128xf32>
    tpu.vector_store %arg7[%548, %c0_142, %c0_143], %551 {strides = array<i32>} : memref<8x8x128xf32, #tpu.memory_space<vmem>>, vector<1x8x128xf32>,
    %c7_i32_144 = arith.constant 7 : i32
    %552 = arith.index_cast %c7_i32_144 : i32 to index
    %c0_145 = arith.constant 0 : index
    %c0_146 = arith.constant 0 : index
    %553 = vector.load %arg7[%552, %c0_145, %c0_146] : memref<8x8x128xf32, #tpu.memory_space<vmem>>, vector<1x8x128xf32>
    %554 = vector.shape_cast %553 : vector<1x8x128xf32> to vector<8x128xf32>
    %555 = tpu.concatenate %554, %547 in 1 : vector<8x128xf32>, vector<8x128xf32> -> vector<8x256xf32>
    %cst_147 = arith.constant dense<0.000000e+00> : vector<8x512xf32>
    %556 = tpu.matmul %555, %296, %cst_147 {dimension_numbers = #tpu.dot_dimension_numbers<[1], [0], [0], [1], [0, 0, 1, 1], [], []>} : vector<8x256xf32>, vector<256x512xf32>, vector<8x512xf32> -> vector<8x512xf32>
    %557 = vector.broadcast %298 : vector<1x512xf32> to vector<8x512xf32>
    %558 = arith.addf %556, %557 : vector<8x512xf32>
    %559 = vector.extract_strided_slice %558 {offsets = [0, 0], sizes = [8, 128], strides = [1, 1]} : vector<8x512xf32> to vector<8x128xf32>
    %560 = arith.negf %559 : vector<8x128xf32>
    %561 = math.exp %560 : vector<8x128xf32>
    %cst_148 = arith.constant 1.000000e+00 : f32
    %562 = vector.broadcast %cst_148 : f32 to vector<8x128xf32>
    %563 = arith.addf %562, %561 : vector<8x128xf32>
    %564 = arith.divf %562, %563 : vector<8x128xf32>
    %565 = vector.extract_strided_slice %558 {offsets = [0, 128], sizes = [8, 128], strides = [1, 1]} : vector<8x512xf32> to vector<8x128xf32>
    %566 = arith.negf %565 : vector<8x128xf32>
    %567 = math.exp %566 : vector<8x128xf32>
    %cst_149 = arith.constant 1.000000e+00 : f32
    %568 = vector.broadcast %cst_149 : f32 to vector<8x128xf32>
    %569 = arith.addf %568, %567 : vector<8x128xf32>
    %570 = arith.divf %568, %569 : vector<8x128xf32>
    %571 = vector.extract_strided_slice %558 {offsets = [0, 256], sizes = [8, 128], strides = [1, 1]} : vector<8x512xf32> to vector<8x128xf32>
    %572 = math.tanh %571 : vector<8x128xf32>
    %573 = vector.extract_strided_slice %558 {offsets = [0, 384], sizes = [8, 128], strides = [1, 1]} : vector<8x512xf32> to vector<8x128xf32>
    %574 = arith.negf %573 : vector<8x128xf32>
    %575 = math.exp %574 : vector<8x128xf32>
    %cst_150 = arith.constant 1.000000e+00 : f32
    %576 = vector.broadcast %cst_150 : f32 to vector<8x128xf32>
    %577 = arith.addf %576, %575 : vector<8x128xf32>
    %578 = arith.divf %576, %577 : vector<8x128xf32>
    %579 = arith.mulf %570, %545 : vector<8x128xf32>
    %580 = arith.mulf %564, %572 : vector<8x128xf32>
    %581 = arith.addf %579, %580 : vector<8x128xf32>
    %582 = math.tanh %581 : vector<8x128xf32>
    %583 = arith.mulf %578, %582 : vector<8x128xf32>
    %584 = arith.index_cast %c7_i32_144 : i32 to index
    %c0_151 = arith.constant 0 : index
    %c0_152 = arith.constant 0 : index
    %585 = vector.load %arg7[%584, %c0_151, %c0_152] : memref<8x8x128xf32, #tpu.memory_space<vmem>>, vector<1x8x128xf32>
    %586 = vector.shape_cast %585 : vector<1x8x128xf32> to vector<8x128xf32>
    %587 = vector.shape_cast %583 : vector<8x128xf32> to vector<1x8x128xf32>
    tpu.vector_store %arg7[%584, %c0_151, %c0_152], %587 {strides = array<i32>} : memref<8x8x128xf32, #tpu.memory_space<vmem>>, vector<1x8x128xf32>,
    %c8_i32_153 = arith.constant 8 : i32
    %c0_154 = arith.constant 0 : index
    %c0_155 = arith.constant 0 : index
    %588 = vector.load %arg4[%c0_154, %c0_155] : memref<128x128xf32, #tpu.memory_space<vmem>>, vector<128x128xf32>
    %cst_156 = arith.constant dense<0.000000e+00> : vector<8x128xf32>
    %589 = tpu.matmul %583, %588, %cst_156 {dimension_numbers = #tpu.dot_dimension_numbers<[1], [0], [0], [1], [0, 0, 1, 1], [], []>} : vector<8x128xf32>, vector<128x128xf32>, vector<8x128xf32> -> vector<8x128xf32>
    %c0_157 = arith.constant 0 : index
    %c0_158 = arith.constant 0 : index
    %590 = vector.load %arg5[%c0_157, %c0_158] : memref<1x128xf32, #tpu.memory_space<vmem>>, vector<1x128xf32>
    %591 = vector.broadcast %590 : vector<1x128xf32> to vector<8x128xf32>
    %592 = arith.addf %589, %591 : vector<8x128xf32>
    %c0_159 = arith.constant 0 : index
    %c0_160 = arith.constant 0 : index
    %593 = vector.load %arg6[%c0_159, %c0_160] : memref<8x128xf32, #tpu.memory_space<vmem>>, vector<8x128xf32>
    tpu.vector_store %arg6[%c0_159, %c0_160], %592 {strides = array<i32>} : memref<8x128xf32, #tpu.memory_space<vmem>>, vector<8x128xf32>,
    return
  }
  func.func @transform_0(%arg0: i32) -> (i32, i32, i32) {
    %c0_i32 = arith.constant 0 : i32
    %c0_i32_0 = arith.constant 0 : i32
    %c0_i32_1 = arith.constant 0 : i32
    %c0_i32_2 = arith.constant 0 : i32
    return %c0_i32, %c0_i32_0, %c0_i32_1 : i32, i32, i32
  }
  func.func @transform_1(%arg0: i32) -> (i32, i32, i32) {
    %c0_i32 = arith.constant 0 : i32
    %c0_i32_0 = arith.constant 0 : i32
    %c0_i32_1 = arith.constant 0 : i32
    %c0_i32_2 = arith.constant 0 : i32
    return %c0_i32, %c0_i32_0, %c0_i32_1 : i32, i32, i32
  }
  func.func @transform_2(%arg0: i32) -> (i32, i32, i32) {
    %c0_i32 = arith.constant 0 : i32
    %c0_i32_0 = arith.constant 0 : i32
    %c0_i32_1 = arith.constant 0 : i32
    %c0_i32_2 = arith.constant 0 : i32
    return %c0_i32, %c0_i32_0, %c0_i32_1 : i32, i32, i32
  }
  func.func @transform_3(%arg0: i32) -> (i32, i32) {
    %c0_i32 = arith.constant 0 : i32
    %c0_i32_0 = arith.constant 0 : i32
    %c0_i32_1 = arith.constant 0 : i32
    return %c0_i32, %c0_i32_0 : i32, i32
  }
  func.func @transform_4(%arg0: i32) -> (i32, i32) {
    %c0_i32 = arith.constant 0 : i32
    %c0_i32_0 = arith.constant 0 : i32
    %c0_i32_1 = arith.constant 0 : i32
    return %c0_i32, %c0_i32_0 : i32, i32
  }
  func.func @transform_5(%arg0: i32) -> (i32, i32) {
    %c0_i32 = arith.constant 0 : i32
    %c0_i32_0 = arith.constant 0 : i32
    %c0_i32_1 = arith.constant 0 : i32
    return %c0_i32, %c0_i32_0 : i32, i32
  }
}

</mosaic_0001>

<llo_original>
// kernel: lstm_module_forward.1
$region0: #{lstm_module_forward.1}
  #allocation0 [shape = 'u32[]', space=smem, size = 0x4, offset = 0x4, fixed_abs, tag = 'smem constant byte address 0x4 - core index']
  #allocation1 [shape = 'u32[72,128]{1,0:T(1,128)}', space=vmem, size = 0x9000, scoped, tag = 'internal scratch']
  #allocation2 [shape = 'f32[8,8,128]{2,1,0:T(8,128)}', space=vmem, size = 0x8000, scoped, tag = 'scratch operand']
  %s0 = inlined_call_operand.vmem [shape: f32[8,8,128], index: 0, kind: input, shape index: {}]
  %s1 = inlined_call_operand.hbm [shape: f32[2,256,512], index: 1, kind: input, shape index: {}]
  %s2 = inlined_call_operand.vmem [shape: f32[2,1,512], index: 2, kind: input, shape index: {}]
  %s3 = inlined_call_operand.vmem [shape: f32[128,128], index: 3, kind: input, shape index: {}]
  %s4 = inlined_call_operand.vmem [shape: f32[1,128], index: 4, kind: input, shape index: {}]
  %s5 = inlined_call_operand.vmem [shape: f32[8,128], index: 5, kind: output, shape index: {}]
  %s6 = sld [smem:[#allocation0]]
  $region34: #{lstm_module_forward.1} parent=0
    _
  %s8 = ssub.s32 1, %s6
  %s9 = scalar_select 0, %s8, %s6
  $region1: #{lstm_module_forward.1} parent=0
    #allocation3 [shape = 'u8[1048576]{0}', space=vmem, size = 0x100000, scoped, tag = 'input window, operand 1, single buffered']
    #allocation4 [shape = 's32[1]{0}', space=sflag, size = 0x4, scoped, tag = 'scoped memory for lstm_module_forward.1']
    %10 = vsyncpa [#allocation4], 0
    // Predicated region
    $region2: #{lstm_module_forward.1} parent=1 // pred_check
      _
    $region3: #{lstm_module_forward.1} parent=1 // pred_check_branch
      %12 = sbr.rel (0) target = $region5
    $region4: #{lstm_module_forward.1} parent=1 // pred_region
      _
    $region5: #{lstm_module_forward.1} parent=1 // pred_fallthru
      _
    // Predicated region
    $region6: #{lstm_module_forward.1} parent=1 // pred_check
      _
    $region7: #{lstm_module_forward.1} parent=1 // pred_check_branch
      %14 = sbr.rel (0) target = $region9
    $region8: #{lstm_module_forward.1} parent=1 // pred_region
      %16 = vsyncadd [#allocation4], 0
      %s17 = sshll.u32 %s1, 4
      %s18 = int_to_ptr.hbm [resolvable:$true] %s17
      %s19 = sshll.u32 [#allocation3], 4
      %s20 = int_to_ptr.vmem [resolvable:$true] %s19
      %25 = dma.hbm_to_vmem [thread:$0]  %s18, 32768, %s20, [#allocation4], 512, 512, 32
    $region9: #{lstm_module_forward.1} parent=1 // pred_fallthru
      _
    // Predicated region
    $region10: #{lstm_module_forward.1} parent=1 // pred_check
      _
    $region11: #{lstm_module_forward.1} parent=1 // pred_check_branch
      %27 = sbr.rel (0) target = $region13
    $region12: #{lstm_module_forward.1} parent=1 // pred_region
      _
    $region13: #{lstm_module_forward.1} parent=1 // pred_fallthru
      _
    // Predicated region
    $region14: #{lstm_module_forward.1} parent=1 // pred_check
      _
    $region15: #{lstm_module_forward.1} parent=1 // pred_check_branch
      %29 = sbr.rel (0) target = $region17
    $region16: #{lstm_module_forward.1} parent=1 // pred_region
      _
    $region17: #{lstm_module_forward.1} parent=1 // pred_fallthru
      _
    // Predicated region
    $region18: #{lstm_module_forward.1} parent=1 // pred_check
      _
    $region19: #{lstm_module_forward.1} parent=1 // pred_check_branch
      %31 = sbr.rel (0) target = $region21
    $region20: #{lstm_module_forward.1} parent=1 // pred_region
      _
    $region21: #{lstm_module_forward.1} parent=1 // pred_fallthru
      _
    // Predicated region
    $region22: #{lstm_module_forward.1} parent=1 // pred_check
      _
    $region23: #{lstm_module_forward.1} parent=1 // pred_check_branch
      %33 = sbr.rel (0) target = $region25
    $region24: #{lstm_module_forward.1} parent=1 // pred_region
      %35 = dma.done [#allocation4], 32768
    $region25: #{lstm_module_forward.1} parent=1 // pred_fallthru
      _
    %v36 = vld [vmem:[%s0] sm:$0xff]
    %v37 = vld [vmem:[%s0 + $0x8] sm:$0xff]
    %v38 = vld [vmem:[%s0 + $0x10] sm:$0xff]
    %v39 = vld [vmem:[%s0 + $0x18] sm:$0xff]
    %v40 = vld [vmem:[%s0 + $0x20] sm:$0xff]
    %v41 = vld [vmem:[%s0 + $0x28] sm:$0xff]
    %v42 = vld [vmem:[%s0 + $0x30] sm:$0xff]
    %v43 = vld [vmem:[%s0 + $0x38] sm:$0xff]
    %44 = vst [vmem:[#allocation2] sm:$0xff] %v36
    %45 = vst [vmem:[#allocation2 + $0x8] sm:$0xff] %v37
    %46 = vst [vmem:[#allocation2 + $0x10] sm:$0xff] %v38
    %47 = vst [vmem:[#allocation2 + $0x18] sm:$0xff] %v39
    %48 = vst [vmem:[#allocation2 + $0x20] sm:$0xff] %v40
    %49 = vst [vmem:[#allocation2 + $0x28] sm:$0xff] %v41
    %50 = vst [vmem:[#allocation2 + $0x30] sm:$0xff] %v42
    %51 = vst [vmem:[#allocation2 + $0x38] sm:$0xff] %v43
    %v52 = vld [vmem:[#allocation3] sm:$0xff]
    %v53 = vld [vmem:[#allocation3 + $0x8] sm:$0xff]
    %v54 = vld [vmem:[#allocation3 + $0x10] sm:$0xff]
    %v55 = vld [vmem:[#allocation3 + $0x18] sm:$0xff]
    %v56 = vld [vmem:[#allocation3 + $0x20] sm:$0xff]
    %v57 = vld [vmem:[#allocation3 + $0x28] sm:$0xff]
    %v58 = vld [vmem:[#allocation3 + $0x30] sm:$0xff]
    %v59 = vld [vmem:[#allocation3 + $0x38] sm:$0xff]
    %v60 = vld [vmem:[#allocation3 + $0x40] sm:$0xff]
    %v61 = vld [vmem:[#allocation3 + $0x48] sm:$0xff]
    %v62 = vld [vmem:[#allocation3 + $0x50] sm:$0xff]
    %v63 = vld [vmem:[#allocation3 + $0x58] sm:$0xff]
    %v64 = vld [vmem:[#allocation3 + $0x60] sm:$0xff]
    %v65 = vld [vmem:[#allocation3 + $0x68] sm:$0xff]
    %v66 = vld [vmem:[#allocation3 + $0x70] sm:$0xff]
    %v67 = vld [vmem:[#allocation3 + $0x78] sm:$0xff]
    %v68 = vld [vmem:[#allocation3 + $0x80] sm:$0xff]
    %v69 = vld [vmem:[#allocation3 + $0x88] sm:$0xff]
    %v70 = vld [vmem:[#allocation3 + $0x90] sm:$0xff]
    %v71 = vld [vmem:[#allocation3 + $0x98] sm:$0xff]
    %v72 = vld [vmem:[#allocation3 + $0xa0] sm:$0xff]
    %v73 = vld [vmem:[#allocation3 + $0xa8] sm:$0xff]
    %v74 = vld [vmem:[#allocation3 + $0xb0] sm:$0xff]
    %v75 = vld [vmem:[#allocation3 + $0xb8] sm:$0xff]
    %v76 = vld [vmem:[#allocation3 + $0xc0] sm:$0xff]
    %v77 = vld [vmem:[#allocation3 + $0xc8] sm:$0xff]
    %v78 = vld [vmem:[#allocation3 + $0xd0] sm:$0xff]
    %v79 = vld [vmem:[#allocation3 + $0xd8] sm:$0xff]
    %v80 = vld [vmem:[#allocation3 + $0xe0] sm:$0xff]
    %v81 = vld [vmem:[#allocation3 + $0xe8] sm:$0xff]
    %v82 = vld [vmem:[#allocation3 + $0xf0] sm:$0xff]
    %v83 = vld [vmem:[#allocation3 + $0xf8] sm:$0xff]
    %v84 = vld [vmem:[#allocation3 + $0x100] sm:$0xff]
    %v85 = vld [vmem:[#allocation3 + $0x108] sm:$0xff]
    %v86 = vld [vmem:[#allocation3 + $0x110] sm:$0xff]
    %v87 = vld [vmem:[#allocation3 + $0x118] sm:$0xff]
    %v88 = vld [vmem:[#allocation3 + $0x120] sm:$0xff]
    %v89 = vld [vmem:[#allocation3 + $0x128] sm:$0xff]
    %v90 = vld [vmem:[#allocation3 + $0x130] sm:$0xff]
    %v91 = vld [vmem:[#allocation3 + $0x138] sm:$0xff]
    %v92 = vld [vmem:[#allocation3 + $0x140] sm:$0xff]
    %v93 = vld [vmem:[#allocation3 + $0x148] sm:$0xff]
    %v94 = vld [vmem:[#allocation3 + $0x150] sm:$0xff]
    %v95 = vld [vmem:[#allocation3 + $0x158] sm:$0xff]
    %v96 = vld [vmem:[#allocation3 + $0x160] sm:$0xff]
    %v97 = vld [vmem:[#allocation3 + $0x168] sm:$0xff]
    %v98 = vld [vmem:[#allocation3 + $0x170] sm:$0xff]
    %v99 = vld [vmem:[#allocation3 + $0x178] sm:$0xff]
    %v100 = vld [vmem:[#allocation3 + $0x180] sm:$0xff]
    %v101 = vld [vmem:[#allocation3 + $0x188] sm:$0xff]
    %v102 = vld [vmem:[#allocation3 + $0x190] sm:$0xff]
    %v103 = vld [vmem:[#allocation3 + $0x198] sm:$0xff]
    %v104 = vld [vmem:[#allocation3 + $0x1a0] sm:$0xff]
    %v105 = vld [vmem:[#allocation3 + $0x1a8] sm:$0xff]
    %v106 = vld [vmem:[#allocation3 + $0x1b0] sm:$0xff]
    %v107 = vld [vmem:[#allocation3 + $0x1b8] sm:$0xff]
    %v108 = vld [vmem:[#allocation3 + $0x1c0] sm:$0xff]
    %v109 = vld [vmem:[#allocation3 + $0x1c8] sm:$0xff]
    %v110 = vld [vmem:[#allocation3 + $0x1d0] sm:$0xff]
    %v111 = vld [vmem:[#allocation3 + $0x1d8] sm:$0xff]
    %v112 = vld [vmem:[#allocation3 + $0x1e0] sm:$0xff]
    %v113 = vld [vmem:[#allocation3 + $0x1e8] sm:$0xff]
    %v114 = vld [vmem:[#allocation3 + $0x1f0] sm:$0xff]
    %v115 = vld [vmem:[#allocation3 + $0x1f8] sm:$0xff]
    %v116 = vld [vmem:[#allocation3 + $0x200] sm:$0xff]
    %v117 = vld [vmem:[#allocation3 + $0x208] sm:$0xff]
    %v118 = vld [vmem:[#allocation3 + $0x210] sm:$0xff]
    %v119 = vld [vmem:[#allocation3 + $0x218] sm:$0xff]
    %v120 = vld [vmem:[#allocation3 + $0x220] sm:$0xff]
    %v121 = vld [vmem:[#allocation3 + $0x228] sm:$0xff]
    %v122 = vld [vmem:[#allocation3 + $0x230] sm:$0xff]
    %v123 = vld [vmem:[#allocation3 + $0x238] sm:$0xff]
    %v124 = vld [vmem:[#allocation3 + $0x240] sm:$0xff]
    %v125 = vld [vmem:[#allocation3 + $0x248] sm:$0xff]
    %v126 = vld [vmem:[#allocation3 + $0x250] sm:$0xff]
    %v127 = vld [vmem:[#allocation3 + $0x258] sm:$0xff]
    %v128 = vld [vmem:[#allocation3 + $0x260] sm:$0xff]
    %v129 = vld [vmem:[#allocation3 + $0x268] sm:$0xff]
    %v130 = vld [vmem:[#allocation3 + $0x270] sm:$0xff]
    %v131 = vld [vmem:[#allocation3 + $0x278] sm:$0xff]
    %v132 = vld [vmem:[#allocation3 + $0x280] sm:$0xff]
    %v133 = vld [vmem:[#allocation3 + $0x288] sm:$0xff]
    %v134 = vld [vmem:[#allocation3 + $0x290] sm:$0xff]
    %v135 = vld [vmem:[#allocation3 + $0x298] sm:$0xff]
    %v136 = vld [vmem:[#allocation3 + $0x2a0] sm:$0xff]
    %v137 = vld [vmem:[#allocation3 + $0x2a8] sm:$0xff]
    %v138 = vld [vmem:[#allocation3 + $0x2b0] sm:$0xff]
    %v139 = vld [vmem:[#allocation3 + $0x2b8] sm:$0xff]
    %v140 = vld [vmem:[#allocation3 + $0x2c0] sm:$0xff]
    %v141 = vld [vmem:[#allocation3 + $0x2c8] sm:$0xff]
    %v142 = vld [vmem:[#allocation3 + $0x2d0] sm:$0xff]
    %v143 = vld [vmem:[#allocation3 + $0x2d8] sm:$0xff]
    %v144 = vld [vmem:[#allocation3 + $0x2e0] sm:$0xff]
    %v145 = vld [vmem:[#allocation3 + $0x2e8] sm:$0xff]
    %v146 = vld [vmem:[#allocation3 + $0x2f0] sm:$0xff]
    %v147 = vld [vmem:[#allocation3 + $0x2f8] sm:$0xff]
    %v148 = vld [vmem:[#allocation3 + $0x300] sm:$0xff]
    %v149 = vld [vmem:[#allocation3 + $0x308] sm:$0xff]
    %v150 = vld [vmem:[#allocation3 + $0x310] sm:$0xff]
    %v151 = vld [vmem:[#allocation3 + $0x318] sm:$0xff]
    %v152 = vld [vmem:[#allocation3 + $0x320] sm:$0xff]
    %v153 = vld [vmem:[#allocation3 + $0x328] sm:$0xff]
    %v154 = vld [vmem:[#allocation3 + $0x330] sm:$0xff]
    %v155 = vld [vmem:[#allocation3 + $0x338] sm:$0xff]
    %v156 = vld [vmem:[#allocation3 + $0x340] sm:$0xff]
    %v157 = vld [vmem:[#allocation3 + $0x348] sm:$0xff]
    %v158 = vld [vmem:[#allocation3 + $0x350] sm:$0xff]
    %v159 = vld [vmem:[#allocation3 + $0x358] sm:$0xff]
    %v160 = vld [vmem:[#allocation3 + $0x360] sm:$0xff]
    %v161 = vld [vmem:[#allocation3 + $0x368] sm:$0xff]
    %v162 = vld [vmem:[#allocation3 + $0x370] sm:$0xff]
    %v163 = vld [vmem:[#allocation3 + $0x378] sm:$0xff]
    %v164 = vld [vmem:[#allocation3 + $0x380] sm:$0xff]
    %v165 = vld [vmem:[#allocation3 + $0x388] sm:$0xff]
    %v166 = vld [vmem:[#allocation3 + $0x390] sm:$0xff]
    %v167 = vld [vmem:[#allocation3 + $0x398] sm:$0xff]
    %v168 = vld [vmem:[#allocation3 + $0x3a0] sm:$0xff]
    %v169 = vld [vmem:[#allocation3 + $0x3a8] sm:$0xff]
    %v170 = vld [vmem:[#allocation3 + $0x3b0] sm:$0xff]
    %v171 = vld [vmem:[#allocation3 + $0x3b8] sm:$0xff]
    %v172 = vld [vmem:[#allocation3 + $0x3c0] sm:$0xff]
    %v173 = vld [vmem:[#allocation3 + $0x3c8] sm:$0xff]
    %v174 = vld [vmem:[#allocation3 + $0x3d0] sm:$0xff]
    %v175 = vld [vmem:[#allocation3 + $0x3d8] sm:$0xff]
    %v176 = vld [vmem:[#allocation3 + $0x3e0] sm:$0xff]
    %v177 = vld [vmem:[#allocation3 + $0x3e8] sm:$0xff]
    %v178 = vld [vmem:[#allocation3 + $0x3f0] sm:$0xff]
    %v179 = vld [vmem:[#allocation3 + $0x3f8] sm:$0xff]
    %v180 = vld [vmem:[%s2] sm:$0xf]
    %v181 = vld [vmem:[#allocation2] sm:$0xff]
    %v183 = vperm.slane %v180, 0
    %v184 = vperm.slane %v180, 1
    %v185 = vperm.slane %v180, 2
    %v186 = vperm.slane %v180, 3
    %191 = vmatpush.msra.mxu0 %v112
    %192 = vmatpush.msra.mxu0 %v108
    %193 = vmatpush.msra.mxu0 %v104
    %194 = vmatpush.msra.mxu0 %v100
    %195 = vmatpush.msra.mxu0 %v96
    %196 = vmatpush.msra.mxu0 %v92
    %197 = vmatpush.msra.mxu0 %v88
    %198 = vmatpush.msra.mxu0 %v84
    %199 = vmatpush.msra.mxu0 %v80
    %200 = vmatpush.msra.mxu0 %v76
    %201 = vmatpush.msra.mxu0 %v72
    %202 = vmatpush.msra.mxu0 %v68
    %203 = vmatpush.msra.mxu0 %v64
    %204 = vmatpush.msra.mxu0 %v60
    %205 = vmatpush.msra.mxu0 %v56
    %206 = vmatpush.msra.mxu0 %v52
    %207 = vmatmul.f32.gmra.mxu0 %v181
    %v208 = vpop.f32.mrf.mxu0
    %v209 = vadd.f32 %v183, %v208
    %210 = vdwg.mxu0
    %211 = vmatpush.msra.mxu0 %v176
    %212 = vmatpush.msra.mxu0 %v172
    %213 = vmatpush.msra.mxu0 %v168
    %214 = vmatpush.msra.mxu0 %v164
    %215 = vmatpush.msra.mxu0 %v160
    %216 = vmatpush.msra.mxu0 %v156
    %217 = vmatpush.msra.mxu0 %v152
    %218 = vmatpush.msra.mxu0 %v148
    %219 = vmatpush.msra.mxu0 %v144
    %220 = vmatpush.msra.mxu0 %v140
    %221 = vmatpush.msra.mxu0 %v136
    %222 = vmatpush.msra.mxu0 %v132
    %223 = vmatpush.msra.mxu0 %v128
    %224 = vmatpush.msra.mxu0 %v124
    %225 = vmatpush.msra.mxu0 %v120
    %226 = vmatpush.msra.mxu0 %v116
    %227 = vmatmul.f32.gmra.mxu0 0.0
    %v228 = vpop.f32.mrf.mxu0
    %v229 = vadd.f32 %v209, %v228
    %230 = vdwg.mxu0
    %231 = vmatpush.msra.mxu0 %v113
    %232 = vmatpush.msra.mxu0 %v109
    %233 = vmatpush.msra.mxu0 %v105
    %234 = vmatpush.msra.mxu0 %v101
    %235 = vmatpush.msra.mxu0 %v97
    %236 = vmatpush.msra.mxu0 %v93
    %237 = vmatpush.msra.mxu0 %v89
    %238 = vmatpush.msra.mxu0 %v85
    %239 = vmatpush.msra.mxu0 %v81
    %240 = vmatpush.msra.mxu0 %v77
    %241 = vmatpush.msra.mxu0 %v73
    %242 = vmatpush.msra.mxu0 %v69
    %243 = vmatpush.msra.mxu0 %v65
    %244 = vmatpush.msra.mxu0 %v61
    %245 = vmatpush.msra.mxu0 %v57
    %246 = vmatpush.msra.mxu0 %v53
    %247 = vmatmul.f32.gmra.mxu0 %v181
    %v248 = vpop.f32.mrf.mxu0
    %v249 = vadd.f32 %v184, %v248
    %250 = vdwg.mxu0
    %251 = vmatpush.msra.mxu0 %v177
    %252 = vmatpush.msra.mxu0 %v173
    %253 = vmatpush.msra.mxu0 %v169
    %254 = vmatpush.msra.mxu0 %v165
    %255 = vmatpush.msra.mxu0 %v161
    %256 = vmatpush.msra.mxu0 %v157
    %257 = vmatpush.msra.mxu0 %v153
    %258 = vmatpush.msra.mxu0 %v149
    %259 = vmatpush.msra.mxu0 %v145
    %260 = vmatpush.msra.mxu0 %v141
    %261 = vmatpush.msra.mxu0 %v137
    %262 = vmatpush.msra.mxu0 %v133
    %263 = vmatpush.msra.mxu0 %v129
    %264 = vmatpush.msra.mxu0 %v125
    %265 = vmatpush.msra.mxu0 %v121
    %266 = vmatpush.msra.mxu0 %v117
    %267 = vmatmul.f32.gmra.mxu0 0.0
    %v268 = vpop.f32.mrf.mxu0
    %v269 = vadd.f32 %v249, %v268
    %270 = vdwg.mxu0
    %271 = vmatpush.msra.mxu0 %v114
    %272 = vmatpush.msra.mxu0 %v110
    %273 = vmatpush.msra.mxu0 %v106
    %274 = vmatpush.msra.mxu0 %v102
    %275 = vmatpush.msra.mxu0 %v98
    %276 = vmatpush.msra.mxu0 %v94
    %277 = vmatpush.msra.mxu0 %v90
    %278 = vmatpush.msra.mxu0 %v86
    %279 = vmatpush.msra.mxu0 %v82
    %280 = vmatpush.msra.mxu0 %v78
    %281 = vmatpush.msra.mxu0 %v74
    %282 = vmatpush.msra.mxu0 %v70
    %283 = vmatpush.msra.mxu0 %v66
    %284 = vmatpush.msra.mxu0 %v62
    %285 = vmatpush.msra.mxu0 %v58
    %286 = vmatpush.msra.mxu0 %v54
    %287 = vmatmul.f32.gmra.mxu0 %v181
    %v288 = vpop.f32.mrf.mxu0
    %v289 = vadd.f32 %v185, %v288
    %290 = vdwg.mxu0
    %291 = vmatpush.msra.mxu0 %v178
    %292 = vmatpush.msra.mxu0 %v174
    %293 = vmatpush.msra.mxu0 %v170
    %294 = vmatpush.msra.mxu0 %v166
    %295 = vmatpush.msra.mxu0 %v162
    %296 = vmatpush.msra.mxu0 %v158
    %297 = vmatpush.msra.mxu0 %v154
    %298 = vmatpush.msra.mxu0 %v150
    %299 = vmatpush.msra.mxu0 %v146
    %300 = vmatpush.msra.mxu0 %v142
    %301 = vmatpush.msra.mxu0 %v138
    %302 = vmatpush.msra.mxu0 %v134
    %303 = vmatpush.msra.mxu0 %v130
    %304 = vmatpush.msra.mxu0 %v126
    %305 = vmatpush.msra.mxu0 %v122
    %306 = vmatpush.msra.mxu0 %v118
    %307 = vmatmul.f32.gmra.mxu0 0.0
    %v308 = vpop.f32.mrf.mxu0
    %v309 = vadd.f32 %v289, %v308
    %310 = vdwg.mxu0
    %311 = vmatpush.msra.mxu0 %v115
    %312 = vmatpush.msra.mxu0 %v111
    %313 = vmatpush.msra.mxu0 %v107
    %314 = vmatpush.msra.mxu0 %v103
    %315 = vmatpush.msra.mxu0 %v99
    %316 = vmatpush.msra.mxu0 %v95
    %317 = vmatpush.msra.mxu0 %v91
    %318 = vmatpush.msra.mxu0 %v87
    %319 = vmatpush.msra.mxu0 %v83
    %320 = vmatpush.msra.mxu0 %v79
    %321 = vmatpush.msra.mxu0 %v75
    %322 = vmatpush.msra.mxu0 %v71
    %323 = vmatpush.msra.mxu0 %v67
    %324 = vmatpush.msra.mxu0 %v63
    %325 = vmatpush.msra.mxu0 %v59
    %326 = vmatpush.msra.mxu0 %v55
    %327 = vmatmul.f32.gmra.mxu0 %v181
    %v328 = vpop.f32.mrf.mxu0
    %v329 = vadd.f32 %v186, %v328
    %330 = vdwg.mxu0
    %331 = vmatpush.msra.mxu0 %v179
    %332 = vmatpush.msra.mxu0 %v175
    %333 = vmatpush.msra.mxu0 %v171
    %334 = vmatpush.msra.mxu0 %v167
    %335 = vmatpush.msra.mxu0 %v163
    %336 = vmatpush.msra.mxu0 %v159
    %337 = vmatpush.msra.mxu0 %v155
    %338 = vmatpush.msra.mxu0 %v151
    %339 = vmatpush.msra.mxu0 %v147
    %340 = vmatpush.msra.mxu0 %v143
    %341 = vmatpush.msra.mxu0 %v139
    %342 = vmatpush.msra.mxu0 %v135
    %343 = vmatpush.msra.mxu0 %v131
    %344 = vmatpush.msra.mxu0 %v127
    %345 = vmatpush.msra.mxu0 %v123
    %346 = vmatpush.msra.mxu0 %v119
    %347 = vmatmul.f32.gmra.mxu0 0.0
    %v348 = vpop.f32.mrf.mxu0
    %v349 = vadd.f32 %v329, %v348
    %350 = vdwg.mxu0
    %v351 = vxor.u32 %v229, 2147483648
    %v352 = vmul.f32 %v351, 1.442695
    %v353 = vpow.pop %v352
    %v354 = vadd.f32 %v353, 1.0
    %v355 = vrcp.pop %v354
    %v356 = vmul.f32 %v354, %v355
    %v357 = vsub.f32 1.0, %v356
    %v358 = vmul.f32 %v355, %v357
    %v359 = vadd.f32 %v355, %v358
    %vm360 = vweird.f32 %v354
    %vm361 = vweird.f32 %v355
    %vm362 = vmor %vm360, %vm361
    %v363 = vsel %vm362, %v355, %v359
    %v364 = vand.u32 2147483647, %v354
    %vm365 = vcmp.eq.f32.partialorder %v364, 8.507059e+37
    %v366 = vand.u32 %v354, 2147483648
    %v367 = vor.u32 1.1754944e-38, %v366
    %v368 = vsel %vm365, %v367, %v363
    %v369 = vmul.f32 1.0, %v368
    %v370 = vxor.u32 %v269, 2147483648
    %v371 = vmul.f32 %v370, 1.442695
    %v372 = vpow.pop %v371
    %v373 = vadd.f32 %v372, 1.0
    %v374 = vrcp.pop %v373
    %v375 = vmul.f32 %v373, %v374
    %v376 = vsub.f32 1.0, %v375
    %v377 = vmul.f32 %v374, %v376
    %v378 = vadd.f32 %v374, %v377
    %vm379 = vweird.f32 %v373
    %vm380 = vweird.f32 %v374
    %vm381 = vmor %vm379, %vm380
    %v382 = vsel %vm381, %v374, %v378
    %v383 = vand.u32 2147483647, %v373
    %vm384 = vcmp.eq.f32.partialorder %v383, 8.507059e+37
    %v385 = vand.u32 %v373, 2147483648
    %v386 = vor.u32 1.1754944e-38, %v385
    %v387 = vsel %vm384, %v386, %v382
    %v388 = vmul.f32 1.0, %v387
    %v389 = vtanh.pop %v309
    %v390 = vxor.u32 %v349, 2147483648
    %v391 = vmul.f32 %v390, 1.442695
    %v392 = vpow.pop %v391
    %v393 = vadd.f32 %v392, 1.0
    %v394 = vrcp.pop %v393
    %v395 = vmul.f32 %v393, %v394
    %v396 = vsub.f32 1.0, %v395
    %v397 = vmul.f32 %v394, %v396
    %v398 = vadd.f32 %v394, %v397
    %vm399 = vweird.f32 %v393
    %vm400 = vweird.f32 %v394
    %vm401 = vmor %vm399, %vm400
    %v402 = vsel %vm401, %v394, %v398
    %v403 = vand.u32 2147483647, %v393
    %vm404 = vcmp.eq.f32.partialorder %v403, 8.507059e+37
    %v405 = vand.u32 %v393, 2147483648
    %v406 = vor.u32 1.1754944e-38, %v405
    %v407 = vsel %vm404, %v406, %v402
    %v408 = vmul.f32 1.0, %v407
    %v409 = vmul.f32 %v388, 0.0
    %v410 = vmul.f32 %v369, %v389
    %v411 = vadd.f32 %v409, %v410
    %v412 = vtanh.pop %v411
    %v413 = vmul.f32 %v408, %v412
    %414 = vst [vmem:[#allocation2] sm:$0xff] %v413
    %s415 = scalar_lea.vmem [#allocation2], 8
    %v416 = vld [vmem:[%s415] sm:$0xff]
    %417 = vmatpush.msra.mxu0 %v112
    %418 = vmatpush.msra.mxu0 %v108
    %419 = vmatpush.msra.mxu0 %v104
    %420 = vmatpush.msra.mxu0 %v100
    %421 = vmatpush.msra.mxu0 %v96
    %422 = vmatpush.msra.mxu0 %v92
    %423 = vmatpush.msra.mxu0 %v88
    %424 = vmatpush.msra.mxu0 %v84
    %425 = vmatpush.msra.mxu0 %v80
    %426 = vmatpush.msra.mxu0 %v76
    %427 = vmatpush.msra.mxu0 %v72
    %428 = vmatpush.msra.mxu0 %v68
    %429 = vmatpush.msra.mxu0 %v64
    %430 = vmatpush.msra.mxu0 %v60
    %431 = vmatpush.msra.mxu0 %v56
    %432 = vmatpush.msra.mxu0 %v52
    %433 = vmatmul.f32.gmra.mxu0 %v416
    %v434 = vpop.f32.mrf.mxu0
    %v435 = vadd.f32 %v183, %v434
    %436 = vdwg.mxu0
    %437 = vmatpush.msra.mxu0 %v176
    %438 = vmatpush.msra.mxu0 %v172
    %439 = vmatpush.msra.mxu0 %v168
    %440 = vmatpush.msra.mxu0 %v164
    %441 = vmatpush.msra.mxu0 %v160
    %442 = vmatpush.msra.mxu0 %v156
    %443 = vmatpush.msra.mxu0 %v152
    %444 = vmatpush.msra.mxu0 %v148
    %445 = vmatpush.msra.mxu0 %v144
    %446 = vmatpush.msra.mxu0 %v140
    %447 = vmatpush.msra.mxu0 %v136
    %448 = vmatpush.msra.mxu0 %v132
    %449 = vmatpush.msra.mxu0 %v128
    %450 = vmatpush.msra.mxu0 %v124
    %451 = vmatpush.msra.mxu0 %v120
    %452 = vmatpush.msra.mxu0 %v116
    %453 = vmatmul.f32.gmra.mxu0 %v413
    %v454 = vpop.f32.mrf.mxu0
    %v455 = vadd.f32 %v435, %v454
    %456 = vdwg.mxu0
    %457 = vmatpush.msra.mxu0 %v113
    %458 = vmatpush.msra.mxu0 %v109
    %459 = vmatpush.msra.mxu0 %v105
    %460 = vmatpush.msra.mxu0 %v101
    %461 = vmatpush.msra.mxu0 %v97
    %462 = vmatpush.msra.mxu0 %v93
    %463 = vmatpush.msra.mxu0 %v89
    %464 = vmatpush.msra.mxu0 %v85
    %465 = vmatpush.msra.mxu0 %v81
    %466 = vmatpush.msra.mxu0 %v77
    %467 = vmatpush.msra.mxu0 %v73
    %468 = vmatpush.msra.mxu0 %v69
    %469 = vmatpush.msra.mxu0 %v65
    %470 = vmatpush.msra.mxu0 %v61
    %471 = vmatpush.msra.mxu0 %v57
    %472 = vmatpush.msra.mxu0 %v53
    %473 = vmatmul.f32.gmra.mxu0 %v416
    %v474 = vpop.f32.mrf.mxu0
    %v475 = vadd.f32 %v184, %v474
    %476 = vdwg.mxu0
    %477 = vmatpush.msra.mxu0 %v177
    %478 = vmatpush.msra.mxu0 %v173
    %479 = vmatpush.msra.mxu0 %v169
    %480 = vmatpush.msra.mxu0 %v165
    %481 = vmatpush.msra.mxu0 %v161
    %482 = vmatpush.msra.mxu0 %v157
    %483 = vmatpush.msra.mxu0 %v153
    %484 = vmatpush.msra.mxu0 %v149
    %485 = vmatpush.msra.mxu0 %v145
    %486 = vmatpush.msra.mxu0 %v141
    %487 = vmatpush.msra.mxu0 %v137
    %488 = vmatpush.msra.mxu0 %v133
    %489 = vmatpush.msra.mxu0 %v129
    %490 = vmatpush.msra.mxu0 %v125
    %491 = vmatpush.msra.mxu0 %v121
    %492 = vmatpush.msra.mxu0 %v117
    %493 = vmatmul.f32.gmra.mxu0 %v413
    %v494 = vpop.f32.mrf.mxu0
    %v495 = vadd.f32 %v475, %v494
    %496 = vdwg.mxu0
    %497 = vmatpush.msra.mxu0 %v114
    %498 = vmatpush.msra.mxu0 %v110
    %499 = vmatpush.msra.mxu0 %v106
    %500 = vmatpush.msra.mxu0 %v102
    %501 = vmatpush.msra.mxu0 %v98
    %502 = vmatpush.msra.mxu0 %v94
    %503 = vmatpush.msra.mxu0 %v90
    %504 = vmatpush.msra.mxu0 %v86
    %505 = vmatpush.msra.mxu0 %v82
    %506 = vmatpush.msra.mxu0 %v78
    %507 = vmatpush.msra.mxu0 %v74
    %508 = vmatpush.msra.mxu0 %v70
    %509 = vmatpush.msra.mxu0 %v66
    %510 = vmatpush.msra.mxu0 %v62
    %511 = vmatpush.msra.mxu0 %v58
    %512 = vmatpush.msra.mxu0 %v54
    %513 = vmatmul.f32.gmra.mxu0 %v416
    %v514 = vpop.f32.mrf.mxu0
    %v515 = vadd.f32 %v185, %v514
    %516 = vdwg.mxu0
    %517 = vmatpush.msra.mxu0 %v178
    %518 = vmatpush.msra.mxu0 %v174
    %519 = vmatpush.msra.mxu0 %v170
    %520 = vmatpush.msra.mxu0 %v166
    %521 = vmatpush.msra.mxu0 %v162
    %522 = vmatpush.msra.mxu0 %v158
    %523 = vmatpush.msra.mxu0 %v154
    %524 = vmatpush.msra.mxu0 %v150
    %525 = vmatpush.msra.mxu0 %v146
    %526 = vmatpush.msra.mxu0 %v142
    %527 = vmatpush.msra.mxu0 %v138
    %528 = vmatpush.msra.mxu0 %v134
    %529 = vmatpush.msra.mxu0 %v130
    %530 = vmatpush.msra.mxu0 %v126
    %531 = vmatpush.msra.mxu0 %v122
    %532 = vmatpush.msra.mxu0 %v118
    %533 = vmatmul.f32.gmra.mxu0 %v413
    %v534 = vpop.f32.mrf.mxu0
    %v535 = vadd.f32 %v515, %v534
    %536 = vdwg.mxu0
    %537 = vmatpush.msra.mxu0 %v115
    %538 = vmatpush.msra.mxu0 %v111
    %539 = vmatpush.msra.mxu0 %v107
    %540 = vmatpush.msra.mxu0 %v103
    %541 = vmatpush.msra.mxu0 %v99
    %542 = vmatpush.msra.mxu0 %v95
    %543 = vmatpush.msra.mxu0 %v91
    %544 = vmatpush.msra.mxu0 %v87
    %545 = vmatpush.msra.mxu0 %v83
    %546 = vmatpush.msra.mxu0 %v79
    %547 = vmatpush.msra.mxu0 %v75
    %548 = vmatpush.msra.mxu0 %v71
    %549 = vmatpush.msra.mxu0 %v67
    %550 = vmatpush.msra.mxu0 %v63
    %551 = vmatpush.msra.mxu0 %v59
    %552 = vmatpush.msra.mxu0 %v55
    %553 = vmatmul.f32.gmra.mxu0 %v416
    %v554 = vpop.f32.mrf.mxu0
    %v555 = vadd.f32 %v186, %v554
    %556 = vdwg.mxu0
    %557 = vmatpush.msra.mxu0 %v179
    %558 = vmatpush.msra.mxu0 %v175
    %559 = vmatpush.msra.mxu0 %v171
    %560 = vmatpush.msra.mxu0 %v167
    %561 = vmatpush.msra.mxu0 %v163
    %562 = vmatpush.msra.mxu0 %v159
    %563 = vmatpush.msra.mxu0 %v155
    %564 = vmatpush.msra.mxu0 %v151
    %565 = vmatpush.msra.mxu0 %v147
    %566 = vmatpush.msra.mxu0 %v143
    %567 = vmatpush.msra.mxu0 %v139
    %568 = vmatpush.msra.mxu0 %v135
    %569 = vmatpush.msra.mxu0 %v131
    %570 = vmatpush.msra.mxu0 %v127
    %571 = vmatpush.msra.mxu0 %v123
    %572 = vmatpush.msra.mxu0 %v119
    %573 = vmatmul.f32.gmra.mxu0 %v413
    %v574 = vpop.f32.mrf.mxu0
    %v575 = vadd.f32 %v555, %v574
    %576 = vdwg.mxu0
    %v577 = vxor.u32 %v455, 2147483648
    %v578 = vmul.f32 %v577, 1.442695
    %v579 = vpow.pop %v578
    %v580 = vadd.f32 %v579, 1.0
    %v581 = vrcp.pop %v580
    %v582 = vmul.f32 %v580, %v581
    %v583 = vsub.f32 1.0, %v582
    %v584 = vmul.f32 %v581, %v583
    %v585 = vadd.f32 %v581, %v584
    %vm586 = vweird.f32 %v580
    %vm587 = vweird.f32 %v581
    %vm588 = vmor %vm586, %vm587
    %v589 = vsel %vm588, %v581, %v585
    %v590 = vand.u32 2147483647, %v580
    %vm591 = vcmp.eq.f32.partialorder %v590, 8.507059e+37
    %v592 = vand.u32 %v580, 2147483648
    %v593 = vor.u32 1.1754944e-38, %v592
    %v594 = vsel %vm591, %v593, %v589
    %v595 = vmul.f32 1.0, %v594
    %v596 = vxor.u32 %v495, 2147483648
    %v597 = vmul.f32 %v596, 1.442695
    %v598 = vpow.pop %v597
    %v599 = vadd.f32 %v598, 1.0
    %v600 = vrcp.pop %v599
    %v601 = vmul.f32 %v599, %v600
    %v602 = vsub.f32 1.0, %v601
    %v603 = vmul.f32 %v600, %v602
    %v604 = vadd.f32 %v600, %v603
    %vm605 = vweird.f32 %v599
    %vm606 = vweird.f32 %v600
    %vm607 = vmor %vm605, %vm606
    %v608 = vsel %vm607, %v600, %v604
    %v609 = vand.u32 2147483647, %v599
    %vm610 = vcmp.eq.f32.partialorder %v609, 8.507059e+37
    %v611 = vand.u32 %v599, 2147483648
    %v612 = vor.u32 1.1754944e-38, %v611
    %v613 = vsel %vm610, %v612, %v608
    %v614 = vmul.f32 1.0, %v613
    %v615 = vtanh.pop %v535
    %v616 = vxor.u32 %v575, 2147483648
    %v617 = vmul.f32 %v616, 1.442695
    %v618 = vpow.pop %v617
    %v619 = vadd.f32 %v618, 1.0
    %v620 = vrcp.pop %v619
    %v621 = vmul.f32 %v619, %v620
    %v622 = vsub.f32 1.0, %v621
    %v623 = vmul.f32 %v620, %v622
    %v624 = vadd.f32 %v620, %v623
    %vm625 = vweird.f32 %v619
    %vm626 = vweird.f32 %v620
    %vm627 = vmor %vm625, %vm626
    %v628 = vsel %vm627, %v620, %v624
    %v629 = vand.u32 2147483647, %v619
    %vm630 = vcmp.eq.f32.partialorder %v629, 8.507059e+37
    %v631 = vand.u32 %v619, 2147483648
    %v632 = vor.u32 1.1754944e-38, %v631
    %v633 = vsel %vm630, %v632, %v628
    %v634 = vmul.f32 1.0, %v633
    %v635 = vmul.f32 %v614, %v411
    %v636 = vmul.f32 %v595, %v615
    %v637 = vadd.f32 %v635, %v636
    %v638 = vtanh.pop %v637
    %v639 = vmul.f32 %v634, %v638
    %640 = vst [vmem:[%s415] sm:$0xff] %v639
    %s641 = scalar_lea.vmem [#allocation2], 16
    %v642 = vld [vmem:[%s641] sm:$0xff]
    %643 = vmatpush.msra.mxu0 %v112
    %644 = vmatpush.msra.mxu0 %v108
    %645 = vmatpush.msra.mxu0 %v104
    %646 = vmatpush.msra.mxu0 %v100
    %647 = vmatpush.msra.mxu0 %v96
    %648 = vmatpush.msra.mxu0 %v92
    %649 = vmatpush.msra.mxu0 %v88
    %650 = vmatpush.msra.mxu0 %v84
    %651 = vmatpush.msra.mxu0 %v80
    %652 = vmatpush.msra.mxu0 %v76
    %653 = vmatpush.msra.mxu0 %v72
    %654 = vmatpush.msra.mxu0 %v68
    %655 = vmatpush.msra.mxu0 %v64
    %656 = vmatpush.msra.mxu0 %v60
    %657 = vmatpush.msra.mxu0 %v56
    %658 = vmatpush.msra.mxu0 %v52
    %659 = vmatmul.f32.gmra.mxu0 %v642
    %v660 = vpop.f32.mrf.mxu0
    %v661 = vadd.f32 %v183, %v660
    %662 = vdwg.mxu0
    %663 = vmatpush.msra.mxu0 %v176
    %664 = vmatpush.msra.mxu0 %v172
    %665 = vmatpush.msra.mxu0 %v168
    %666 = vmatpush.msra.mxu0 %v164
    %667 = vmatpush.msra.mxu0 %v160
    %668 = vmatpush.msra.mxu0 %v156
    %669 = vmatpush.msra.mxu0 %v152
    %670 = vmatpush.msra.mxu0 %v148
    %671 = vmatpush.msra.mxu0 %v144
    %672 = vmatpush.msra.mxu0 %v140
    %673 = vmatpush.msra.mxu0 %v136
    %674 = vmatpush.msra.mxu0 %v132
    %675 = vmatpush.msra.mxu0 %v128
    %676 = vmatpush.msra.mxu0 %v124
    %677 = vmatpush.msra.mxu0 %v120
    %678 = vmatpush.msra.mxu0 %v116
    %679 = vmatmul.f32.gmra.mxu0 %v639
    %v680 = vpop.f32.mrf.mxu0
    %v681 = vadd.f32 %v661, %v680
    %682 = vdwg.mxu0
    %683 = vmatpush.msra.mxu0 %v113
    %684 = vmatpush.msra.mxu0 %v109
    %685 = vmatpush.msra.mxu0 %v105
    %686 = vmatpush.msra.mxu0 %v101
    %687 = vmatpush.msra.mxu0 %v97
    %688 = vmatpush.msra.mxu0 %v93
    %689 = vmatpush.msra.mxu0 %v89
    %690 = vmatpush.msra.mxu0 %v85
    %691 = vmatpush.msra.mxu0 %v81
    %692 = vmatpush.msra.mxu0 %v77
    %693 = vmatpush.msra.mxu0 %v73
    %694 = vmatpush.msra.mxu0 %v69
    %695 = vmatpush.msra.mxu0 %v65
    %696 = vmatpush.msra.mxu0 %v61
    %697 = vmatpush.msra.mxu0 %v57
    %698 = vmatpush.msra.mxu0 %v53
    %699 = vmatmul.f32.gmra.mxu0 %v642
    %v700 = vpop.f32.mrf.mxu0
    %v701 = vadd.f32 %v184, %v700
    %702 = vdwg.mxu0
    %703 = vmatpush.msra.mxu0 %v177
    %704 = vmatpush.msra.mxu0 %v173
    %705 = vmatpush.msra.mxu0 %v169
    %706 = vmatpush.msra.mxu0 %v165
    %707 = vmatpush.msra.mxu0 %v161
    %708 = vmatpush.msra.mxu0 %v157
    %709 = vmatpush.msra.mxu0 %v153
    %710 = vmatpush.msra.mxu0 %v149
    %711 = vmatpush.msra.mxu0 %v145
    %712 = vmatpush.msra.mxu0 %v141
    %713 = vmatpush.msra.mxu0 %v137
    %714 = vmatpush.msra.mxu0 %v133
    %715 = vmatpush.msra.mxu0 %v129
    %716 = vmatpush.msra.mxu0 %v125
    %717 = vmatpush.msra.mxu0 %v121
    %718 = vmatpush.msra.mxu0 %v117
    %719 = vmatmul.f32.gmra.mxu0 %v639
    %v720 = vpop.f32.mrf.mxu0
    %v721 = vadd.f32 %v701, %v720
    %722 = vdwg.mxu0
    %723 = vmatpush.msra.mxu0 %v114
    %724 = vmatpush.msra.mxu0 %v110
    %725 = vmatpush.msra.mxu0 %v106
    %726 = vmatpush.msra.mxu0 %v102
    %727 = vmatpush.msra.mxu0 %v98
    %728 = vmatpush.msra.mxu0 %v94
    %729 = vmatpush.msra.mxu0 %v90
    %730 = vmatpush.msra.mxu0 %v86
    %731 = vmatpush.msra.mxu0 %v82
    %732 = vmatpush.msra.mxu0 %v78
    %733 = vmatpush.msra.mxu0 %v74
    %734 = vmatpush.msra.mxu0 %v70
    %735 = vmatpush.msra.mxu0 %v66
    %736 = vmatpush.msra.mxu0 %v62
    %737 = vmatpush.msra.mxu0 %v58
    %738 = vmatpush.msra.mxu0 %v54
    %739 = vmatmul.f32.gmra.mxu0 %v642
    %v740 = vpop.f32.mrf.mxu0
    %v741 = vadd.f32 %v185, %v740
    %742 = vdwg.mxu0
    %743 = vmatpush.msra.mxu0 %v178
    %744 = vmatpush.msra.mxu0 %v174
    %745 = vmatpush.msra.mxu0 %v170
    %746 = vmatpush.msra.mxu0 %v166
    %747 = vmatpush.msra.mxu0 %v162
    %748 = vmatpush.msra.mxu0 %v158
    %749 = vmatpush.msra.mxu0 %v154
    %750 = vmatpush.msra.mxu0 %v150
    %751 = vmatpush.msra.mxu0 %v146
    %752 = vmatpush.msra.mxu0 %v142
    %753 = vmatpush.msra.mxu0 %v138
    %754 = vmatpush.msra.mxu0 %v134
    %755 = vmatpush.msra.mxu0 %v130
    %756 = vmatpush.msra.mxu0 %v126
    %757 = vmatpush.msra.mxu0 %v122
    %758 = vmatpush.msra.mxu0 %v118
    %759 = vmatmul.f32.gmra.mxu0 %v639
    %v760 = vpop.f32.mrf.mxu0
    %v761 = vadd.f32 %v741, %v760
    %762 = vdwg.mxu0
    %763 = vmatpush.msra.mxu0 %v115
    %764 = vmatpush.msra.mxu0 %v111
    %765 = vmatpush.msra.mxu0 %v107
    %766 = vmatpush.msra.mxu0 %v103
    %767 = vmatpush.msra.mxu0 %v99
    %768 = vmatpush.msra.mxu0 %v95
    %769 = vmatpush.msra.mxu0 %v91
    %770 = vmatpush.msra.mxu0 %v87
    %771 = vmatpush.msra.mxu0 %v83
    %772 = vmatpush.msra.mxu0 %v79
    %773 = vmatpush.msra.mxu0 %v75
    %774 = vmatpush.msra.mxu0 %v71
    %775 = vmatpush.msra.mxu0 %v67
    %776 = vmatpush.msra.mxu0 %v63
    %777 = vmatpush.msra.mxu0 %v59
    %778 = vmatpush.msra.mxu0 %v55
    %779 = vmatmul.f32.gmra.mxu0 %v642
    %v780 = vpop.f32.mrf.mxu0
    %v781 = vadd.f32 %v186, %v780
    %782 = vdwg.mxu0
    %783 = vmatpush.msra.mxu0 %v179
    %784 = vmatpush.msra.mxu0 %v175
    %785 = vmatpush.msra.mxu0 %v171
    %786 = vmatpush.msra.mxu0 %v167
    %787 = vmatpush.msra.mxu0 %v163
    %788 = vmatpush.msra.mxu0 %v159
    %789 = vmatpush.msra.mxu0 %v155
    %790 = vmatpush.msra.mxu0 %v151
    %791 = vmatpush.msra.mxu0 %v147
    %792 = vmatpush.msra.mxu0 %v143
    %793 = vmatpush.msra.mxu0 %v139
    %794 = vmatpush.msra.mxu0 %v135
    %795 = vmatpush.msra.mxu0 %v131
    %796 = vmatpush.msra.mxu0 %v127
    %797 = vmatpush.msra.mxu0 %v123
    %798 = vmatpush.msra.mxu0 %v119
    %799 = vmatmul.f32.gmra.mxu0 %v639
    %v800 = vpop.f32.mrf.mxu0
    %v801 = vadd.f32 %v781, %v800
    %802 = vdwg.mxu0
    %v803 = vxor.u32 %v681, 2147483648
    %v804 = vmul.f32 %v803, 1.442695
    %v805 = vpow.pop %v804
    %v806 = vadd.f32 %v805, 1.0
    %v807 = vrcp.pop %v806
    %v808 = vmul.f32 %v806, %v807
    %v809 = vsub.f32 1.0, %v808
    %v810 = vmul.f32 %v807, %v809
    %v811 = vadd.f32 %v807, %v810
    %vm812 = vweird.f32 %v806
    %vm813 = vweird.f32 %v807
    %vm814 = vmor %vm812, %vm813
    %v815 = vsel %vm814, %v807, %v811
    %v816 = vand.u32 2147483647, %v806
    %vm817 = vcmp.eq.f32.partialorder %v816, 8.507059e+37
    %v818 = vand.u32 %v806, 2147483648
    %v819 = vor.u32 1.1754944e-38, %v818
    %v820 = vsel %vm817, %v819, %v815
    %v821 = vmul.f32 1.0, %v820
    %v822 = vxor.u32 %v721, 2147483648
    %v823 = vmul.f32 %v822, 1.442695
    %v824 = vpow.pop %v823
    %v825 = vadd.f32 %v824, 1.0
    %v826 = vrcp.pop %v825
    %v827 = vmul.f32 %v825, %v826
    %v828 = vsub.f32 1.0, %v827
    %v829 = vmul.f32 %v826, %v828
    %v830 = vadd.f32 %v826, %v829
    %vm831 = vweird.f32 %v825
    %vm832 = vweird.f32 %v826
    %vm833 = vmor %vm831, %vm832
    %v834 = vsel %vm833, %v826, %v830
    %v835 = vand.u32 2147483647, %v825
    %vm836 = vcmp.eq.f32.partialorder %v835, 8.507059e+37
    %v837 = vand.u32 %v825, 2147483648
    %v838 = vor.u32 1.1754944e-38, %v837
    %v839 = vsel %vm836, %v838, %v834
    %v840 = vmul.f32 1.0, %v839
    %v841 = vtanh.pop %v761
    %v842 = vxor.u32 %v801, 2147483648
    %v843 = vmul.f32 %v842, 1.442695
    %v844 = vpow.pop %v843
    %v845 = vadd.f32 %v844, 1.0
    %v846 = vrcp.pop %v845
    %v847 = vmul.f32 %v845, %v846
    %v848 = vsub.f32 1.0, %v847
    %v849 = vmul.f32 %v846, %v848
    %v850 = vadd.f32 %v846, %v849
    %vm851 = vweird.f32 %v845
    %vm852 = vweird.f32 %v846
    %vm853 = vmor %vm851, %vm852
    %v854 = vsel %vm853, %v846, %v850
    %v855 = vand.u32 2147483647, %v845
    %vm856 = vcmp.eq.f32.partialorder %v855, 8.507059e+37
    %v857 = vand.u32 %v845, 2147483648
    %v858 = vor.u32 1.1754944e-38, %v857
    %v859 = vsel %vm856, %v858, %v854
    %v860 = vmul.f32 1.0, %v859
    %v861 = vmul.f32 %v840, %v637
    %v862 = vmul.f32 %v821, %v841
    %v863 = vadd.f32 %v861, %v862
    %v864 = vtanh.pop %v863
    %v865 = vmul.f32 %v860, %v864
    %866 = vst [vmem:[%s641] sm:$0xff] %v865
    %s867 = scalar_lea.vmem [#allocation2], 24
    %v868 = vld [vmem:[%s867] sm:$0xff]
    %869 = vmatpush.msra.mxu0 %v112
    %870 = vmatpush.msra.mxu0 %v108
    %871 = vmatpush.msra.mxu0 %v104
    %872 = vmatpush.msra.mxu0 %v100
    %873 = vmatpush.msra.mxu0 %v96
    %874 = vmatpush.msra.mxu0 %v92
    %875 = vmatpush.msra.mxu0 %v88
    %876 = vmatpush.msra.mxu0 %v84
    %877 = vmatpush.msra.mxu0 %v80
    %878 = vmatpush.msra.mxu0 %v76
    %879 = vmatpush.msra.mxu0 %v72
    %880 = vmatpush.msra.mxu0 %v68
    %881 = vmatpush.msra.mxu0 %v64
    %882 = vmatpush.msra.mxu0 %v60
    %883 = vmatpush.msra.mxu0 %v56
    %884 = vmatpush.msra.mxu0 %v52
    %885 = vmatmul.f32.gmra.mxu0 %v868
    %v886 = vpop.f32.mrf.mxu0
    %v887 = vadd.f32 %v183, %v886
    %888 = vdwg.mxu0
    %889 = vmatpush.msra.mxu0 %v176
    %890 = vmatpush.msra.mxu0 %v172
    %891 = vmatpush.msra.mxu0 %v168
    %892 = vmatpush.msra.mxu0 %v164
    %893 = vmatpush.msra.mxu0 %v160
    %894 = vmatpush.msra.mxu0 %v156
    %895 = vmatpush.msra.mxu0 %v152
    %896 = vmatpush.msra.mxu0 %v148
    %897 = vmatpush.msra.mxu0 %v144
    %898 = vmatpush.msra.mxu0 %v140
    %899 = vmatpush.msra.mxu0 %v136
    %900 = vmatpush.msra.mxu0 %v132
    %901 = vmatpush.msra.mxu0 %v128
    %902 = vmatpush.msra.mxu0 %v124
    %903 = vmatpush.msra.mxu0 %v120
    %904 = vmatpush.msra.mxu0 %v116
    %905 = vmatmul.f32.gmra.mxu0 %v865
    %v906 = vpop.f32.mrf.mxu0
    %v907 = vadd.f32 %v887, %v906
    %908 = vdwg.mxu0
    %909 = vmatpush.msra.mxu0 %v113
    %910 = vmatpush.msra.mxu0 %v109
    %911 = vmatpush.msra.mxu0 %v105
    %912 = vmatpush.msra.mxu0 %v101
    %913 = vmatpush.msra.mxu0 %v97
    %914 = vmatpush.msra.mxu0 %v93
    %915 = vmatpush.msra.mxu0 %v89
    %916 = vmatpush.msra.mxu0 %v85
    %917 = vmatpush.msra.mxu0 %v81
    %918 = vmatpush.msra.mxu0 %v77
    %919 = vmatpush.msra.mxu0 %v73
    %920 = vmatpush.msra.mxu0 %v69
    %921 = vmatpush.msra.mxu0 %v65
    %922 = vmatpush.msra.mxu0 %v61
    %923 = vmatpush.msra.mxu0 %v57
    %924 = vmatpush.msra.mxu0 %v53
    %925 = vmatmul.f32.gmra.mxu0 %v868
    %v926 = vpop.f32.mrf.mxu0
    %v927 = vadd.f32 %v184, %v926
    %928 = vdwg.mxu0
    %929 = vmatpush.msra.mxu0 %v177
    %930 = vmatpush.msra.mxu0 %v173
    %931 = vmatpush.msra.mxu0 %v169
    %932 = vmatpush.msra.mxu0 %v165
    %933 = vmatpush.msra.mxu0 %v161
    %934 = vmatpush.msra.mxu0 %v157
    %935 = vmatpush.msra.mxu0 %v153
    %936 = vmatpush.msra.mxu0 %v149
    %937 = vmatpush.msra.mxu0 %v145
    %938 = vmatpush.msra.mxu0 %v141
    %939 = vmatpush.msra.mxu0 %v137
    %940 = vmatpush.msra.mxu0 %v133
    %941 = vmatpush.msra.mxu0 %v129
    %942 = vmatpush.msra.mxu0 %v125
    %943 = vmatpush.msra.mxu0 %v121
    %944 = vmatpush.msra.mxu0 %v117
    %945 = vmatmul.f32.gmra.mxu0 %v865
    %v946 = vpop.f32.mrf.mxu0
    %v947 = vadd.f32 %v927, %v946
    %948 = vdwg.mxu0
    %949 = vmatpush.msra.mxu0 %v114
    %950 = vmatpush.msra.mxu0 %v110
    %951 = vmatpush.msra.mxu0 %v106
    %952 = vmatpush.msra.mxu0 %v102
    %953 = vmatpush.msra.mxu0 %v98
    %954 = vmatpush.msra.mxu0 %v94
    %955 = vmatpush.msra.mxu0 %v90
    %956 = vmatpush.msra.mxu0 %v86
    %957 = vmatpush.msra.mxu0 %v82
    %958 = vmatpush.msra.mxu0 %v78
    %959 = vmatpush.msra.mxu0 %v74
    %960 = vmatpush.msra.mxu0 %v70
    %961 = vmatpush.msra.mxu0 %v66
    %962 = vmatpush.msra.mxu0 %v62
    %963 = vmatpush.msra.mxu0 %v58
    %964 = vmatpush.msra.mxu0 %v54
    %965 = vmatmul.f32.gmra.mxu0 %v868
    %v966 = vpop.f32.mrf.mxu0
    %v967 = vadd.f32 %v185, %v966
    %968 = vdwg.mxu0
    %969 = vmatpush.msra.mxu0 %v178
    %970 = vmatpush.msra.mxu0 %v174
    %971 = vmatpush.msra.mxu0 %v170
    %972 = vmatpush.msra.mxu0 %v166
    %973 = vmatpush.msra.mxu0 %v162
    %974 = vmatpush.msra.mxu0 %v158
    %975 = vmatpush.msra.mxu0 %v154
    %976 = vmatpush.msra.mxu0 %v150
    %977 = vmatpush.msra.mxu0 %v146
    %978 = vmatpush.msra.mxu0 %v142
    %979 = vmatpush.msra.mxu0 %v138
    %980 = vmatpush.msra.mxu0 %v134
    %981 = vmatpush.msra.mxu0 %v130
    %982 = vmatpush.msra.mxu0 %v126
    %983 = vmatpush.msra.mxu0 %v122
    %984 = vmatpush.msra.mxu0 %v118
    %985 = vmatmul.f32.gmra.mxu0 %v865
    %v986 = vpop.f32.mrf.mxu0
    %v987 = vadd.f32 %v967, %v986
    %988 = vdwg.mxu0
    %989 = vmatpush.msra.mxu0 %v115
    %990 = vmatpush.msra.mxu0 %v111
    %991 = vmatpush.msra.mxu0 %v107
    %992 = vmatpush.msra.mxu0 %v103
    %993 = vmatpush.msra.mxu0 %v99
    %994 = vmatpush.msra.mxu0 %v95
    %995 = vmatpush.msra.mxu0 %v91
    %996 = vmatpush.msra.mxu0 %v87
    %997 = vmatpush.msra.mxu0 %v83
    %998 = vmatpush.msra.mxu0 %v79
    %999 = vmatpush.msra.mxu0 %v75
    %1000 = vmatpush.msra.mxu0 %v71
    %1001 = vmatpush.msra.mxu0 %v67
    %1002 = vmatpush.msra.mxu0 %v63
    %1003 = vmatpush.msra.mxu0 %v59
    %1004 = vmatpush.msra.mxu0 %v55
    %1005 = vmatmul.f32.gmra.mxu0 %v868
    %v1006 = vpop.f32.mrf.mxu0
    %v1007 = vadd.f32 %v186, %v1006
    %1008 = vdwg.mxu0
    %1009 = vmatpush.msra.mxu0 %v179
    %1010 = vmatpush.msra.mxu0 %v175
    %1011 = vmatpush.msra.mxu0 %v171
    %1012 = vmatpush.msra.mxu0 %v167
    %1013 = vmatpush.msra.mxu0 %v163
    %1014 = vmatpush.msra.mxu0 %v159
    %1015 = vmatpush.msra.mxu0 %v155
    %1016 = vmatpush.msra.mxu0 %v151
    %1017 = vmatpush.msra.mxu0 %v147
    %1018 = vmatpush.msra.mxu0 %v143
    %1019 = vmatpush.msra.mxu0 %v139
    %1020 = vmatpush.msra.mxu0 %v135
    %1021 = vmatpush.msra.mxu0 %v131
    %1022 = vmatpush.msra.mxu0 %v127
    %1023 = vmatpush.msra.mxu0 %v123
    %1024 = vmatpush.msra.mxu0 %v119
    %1025 = vmatmul.f32.gmra.mxu0 %v865
    %v1026 = vpop.f32.mrf.mxu0
    %v1027 = vadd.f32 %v1007, %v1026
    %1028 = vdwg.mxu0
    %v1029 = vxor.u32 %v907, 2147483648
    %v1030 = vmul.f32 %v1029, 1.442695
    %v1031 = vpow.pop %v1030
    %v1032 = vadd.f32 %v1031, 1.0
    %v1033 = vrcp.pop %v1032
    %v1034 = vmul.f32 %v1032, %v1033
    %v1035 = vsub.f32 1.0, %v1034
    %v1036 = vmul.f32 %v1033, %v1035
    %v1037 = vadd.f32 %v1033, %v1036
    %vm1038 = vweird.f32 %v1032
    %vm1039 = vweird.f32 %v1033
    %vm1040 = vmor %vm1038, %vm1039
    %v1041 = vsel %vm1040, %v1033, %v1037
    %v1042 = vand.u32 2147483647, %v1032
    %vm1043 = vcmp.eq.f32.partialorder %v1042, 8.507059e+37
    %v1044 = vand.u32 %v1032, 2147483648
    %v1045 = vor.u32 1.1754944e-38, %v1044
    %v1046 = vsel %vm1043, %v1045, %v1041
    %v1047 = vmul.f32 1.0, %v1046
    %v1048 = vxor.u32 %v947, 2147483648
    %v1049 = vmul.f32 %v1048, 1.442695
    %v1050 = vpow.pop %v1049
    %v1051 = vadd.f32 %v1050, 1.0
    %v1052 = vrcp.pop %v1051
    %v1053 = vmul.f32 %v1051, %v1052
    %v1054 = vsub.f32 1.0, %v1053
    %v1055 = vmul.f32 %v1052, %v1054
    %v1056 = vadd.f32 %v1052, %v1055
    %vm1057 = vweird.f32 %v1051
    %vm1058 = vweird.f32 %v1052
    %vm1059 = vmor %vm1057, %vm1058
    %v1060 = vsel %vm1059, %v1052, %v1056
    %v1061 = vand.u32 2147483647, %v1051
    %vm1062 = vcmp.eq.f32.partialorder %v1061, 8.507059e+37
    %v1063 = vand.u32 %v1051, 2147483648
    %v1064 = vor.u32 1.1754944e-38, %v1063
    %v1065 = vsel %vm1062, %v1064, %v1060
    %v1066 = vmul.f32 1.0, %v1065
    %v1067 = vtanh.pop %v987
    %v1068 = vxor.u32 %v1027, 2147483648
    %v1069 = vmul.f32 %v1068, 1.442695
    %v1070 = vpow.pop %v1069
    %v1071 = vadd.f32 %v1070, 1.0
    %v1072 = vrcp.pop %v1071
    %v1073 = vmul.f32 %v1071, %v1072
    %v1074 = vsub.f32 1.0, %v1073
    %v1075 = vmul.f32 %v1072, %v1074
    %v1076 = vadd.f32 %v1072, %v1075
    %vm1077 = vweird.f32 %v1071
    %vm1078 = vweird.f32 %v1072
    %vm1079 = vmor %vm1077, %vm1078
    %v1080 = vsel %vm1079, %v1072, %v1076
    %v1081 = vand.u32 2147483647, %v1071
    %vm1082 = vcmp.eq.f32.partialorder %v1081, 8.507059e+37
    %v1083 = vand.u32 %v1071, 2147483648
    %v1084 = vor.u32 1.1754944e-38, %v1083
    %v1085 = vsel %vm1082, %v1084, %v1080
    %v1086 = vmul.f32 1.0, %v1085
    %v1087 = vmul.f32 %v1066, %v863
    %v1088 = vmul.f32 %v1047, %v1067
    %v1089 = vadd.f32 %v1087, %v1088
    %v1090 = vtanh.pop %v1089
    %v1091 = vmul.f32 %v1086, %v1090
    %1092 = vst [vmem:[%s867] sm:$0xff] %v1091
    %s1093 = scalar_lea.vmem [#allocation2], 32
    %v1094 = vld [vmem:[%s1093] sm:$0xff]
    %1095 = vmatpush.msra.mxu0 %v112
    %1096 = vmatpush.msra.mxu0 %v108
    %1097 = vmatpush.msra.mxu0 %v104
    %1098 = vmatpush.msra.mxu0 %v100
    %1099 = vmatpush.msra.mxu0 %v96
    %1100 = vmatpush.msra.mxu0 %v92
    %1101 = vmatpush.msra.mxu0 %v88
    %1102 = vmatpush.msra.mxu0 %v84
    %1103 = vmatpush.msra.mxu0 %v80
    %1104 = vmatpush.msra.mxu0 %v76
    %1105 = vmatpush.msra.mxu0 %v72
    %1106 = vmatpush.msra.mxu0 %v68
    %1107 = vmatpush.msra.mxu0 %v64
    %1108 = vmatpush.msra.mxu0 %v60
    %1109 = vmatpush.msra.mxu0 %v56
    %1110 = vmatpush.msra.mxu0 %v52
    %1111 = vmatmul.f32.gmra.mxu0 %v1094
    %v1112 = vpop.f32.mrf.mxu0
    %v1113 = vadd.f32 %v183, %v1112
    %1114 = vdwg.mxu0
    %1115 = vmatpush.msra.mxu0 %v176
    %1116 = vmatpush.msra.mxu0 %v172
    %1117 = vmatpush.msra.mxu0 %v168
    %1118 = vmatpush.msra.mxu0 %v164
    %1119 = vmatpush.msra.mxu0 %v160
    %1120 = vmatpush.msra.mxu0 %v156
    %1121 = vmatpush.msra.mxu0 %v152
    %1122 = vmatpush.msra.mxu0 %v148
    %1123 = vmatpush.msra.mxu0 %v144
    %1124 = vmatpush.msra.mxu0 %v140
    %1125 = vmatpush.msra.mxu0 %v136
    %1126 = vmatpush.msra.mxu0 %v132
    %1127 = vmatpush.msra.mxu0 %v128
    %1128 = vmatpush.msra.mxu0 %v124
    %1129 = vmatpush.msra.mxu0 %v120
    %1130 = vmatpush.msra.mxu0 %v116
    %1131 = vmatmul.f32.gmra.mxu0 %v1091
    %v1132 = vpop.f32.mrf.mxu0
    %v1133 = vadd.f32 %v1113, %v1132
    %1134 = vdwg.mxu0
    %1135 = vmatpush.msra.mxu0 %v113
    %1136 = vmatpush.msra.mxu0 %v109
    %1137 = vmatpush.msra.mxu0 %v105
    %1138 = vmatpush.msra.mxu0 %v101
    %1139 = vmatpush.msra.mxu0 %v97
    %1140 = vmatpush.msra.mxu0 %v93
    %1141 = vmatpush.msra.mxu0 %v89
    %1142 = vmatpush.msra.mxu0 %v85
    %1143 = vmatpush.msra.mxu0 %v81
    %1144 = vmatpush.msra.mxu0 %v77
    %1145 = vmatpush.msra.mxu0 %v73
    %1146 = vmatpush.msra.mxu0 %v69
    %1147 = vmatpush.msra.mxu0 %v65
    %1148 = vmatpush.msra.mxu0 %v61
    %1149 = vmatpush.msra.mxu0 %v57
    %1150 = vmatpush.msra.mxu0 %v53
    %1151 = vmatmul.f32.gmra.mxu0 %v1094
    %v1152 = vpop.f32.mrf.mxu0
    %v1153 = vadd.f32 %v184, %v1152
    %1154 = vdwg.mxu0
    %1155 = vmatpush.msra.mxu0 %v177
    %1156 = vmatpush.msra.mxu0 %v173
    %1157 = vmatpush.msra.mxu0 %v169
    %1158 = vmatpush.msra.mxu0 %v165
    %1159 = vmatpush.msra.mxu0 %v161
    %1160 = vmatpush.msra.mxu0 %v157
    %1161 = vmatpush.msra.mxu0 %v153
    %1162 = vmatpush.msra.mxu0 %v149
    %1163 = vmatpush.msra.mxu0 %v145
    %1164 = vmatpush.msra.mxu0 %v141
    %1165 = vmatpush.msra.mxu0 %v137
    %1166 = vmatpush.msra.mxu0 %v133
    %1167 = vmatpush.msra.mxu0 %v129
    %1168 = vmatpush.msra.mxu0 %v125
    %1169 = vmatpush.msra.mxu0 %v121
    %1170 = vmatpush.msra.mxu0 %v117
    %1171 = vmatmul.f32.gmra.mxu0 %v1091
    %v1172 = vpop.f32.mrf.mxu0
    %v1173 = vadd.f32 %v1153, %v1172
    %1174 = vdwg.mxu0
    %1175 = vmatpush.msra.mxu0 %v114
    %1176 = vmatpush.msra.mxu0 %v110
    %1177 = vmatpush.msra.mxu0 %v106
    %1178 = vmatpush.msra.mxu0 %v102
    %1179 = vmatpush.msra.mxu0 %v98
    %1180 = vmatpush.msra.mxu0 %v94
    %1181 = vmatpush.msra.mxu0 %v90
    %1182 = vmatpush.msra.mxu0 %v86
    %1183 = vmatpush.msra.mxu0 %v82
    %1184 = vmatpush.msra.mxu0 %v78
    %1185 = vmatpush.msra.mxu0 %v74
    %1186 = vmatpush.msra.mxu0 %v70
    %1187 = vmatpush.msra.mxu0 %v66
    %1188 = vmatpush.msra.mxu0 %v62
    %1189 = vmatpush.msra.mxu0 %v58
    %1190 = vmatpush.msra.mxu0 %v54
    %1191 = vmatmul.f32.gmra.mxu0 %v1094
    %v1192 = vpop.f32.mrf.mxu0
    %v1193 = vadd.f32 %v185, %v1192
    %1194 = vdwg.mxu0
    %1195 = vmatpush.msra.mxu0 %v178
    %1196 = vmatpush.msra.mxu0 %v174
    %1197 = vmatpush.msra.mxu0 %v170
    %1198 = vmatpush.msra.mxu0 %v166
    %1199 = vmatpush.msra.mxu0 %v162
    %1200 = vmatpush.msra.mxu0 %v158
    %1201 = vmatpush.msra.mxu0 %v154
    %1202 = vmatpush.msra.mxu0 %v150
    %1203 = vmatpush.msra.mxu0 %v146
    %1204 = vmatpush.msra.mxu0 %v142
    %1205 = vmatpush.msra.mxu0 %v138
    %1206 = vmatpush.msra.mxu0 %v134
    %1207 = vmatpush.msra.mxu0 %v130
    %1208 = vmatpush.msra.mxu0 %v126
    %1209 = vmatpush.msra.mxu0 %v122
    %1210 = vmatpush.msra.mxu0 %v118
    %1211 = vmatmul.f32.gmra.mxu0 %v1091
    %v1212 = vpop.f32.mrf.mxu0
    %v1213 = vadd.f32 %v1193, %v1212
    %1214 = vdwg.mxu0
    %1215 = vmatpush.msra.mxu0 %v115
    %1216 = vmatpush.msra.mxu0 %v111
    %1217 = vmatpush.msra.mxu0 %v107
    %1218 = vmatpush.msra.mxu0 %v103
    %1219 = vmatpush.msra.mxu0 %v99
    %1220 = vmatpush.msra.mxu0 %v95
    %1221 = vmatpush.msra.mxu0 %v91
    %1222 = vmatpush.msra.mxu0 %v87
    %1223 = vmatpush.msra.mxu0 %v83
    %1224 = vmatpush.msra.mxu0 %v79
    %1225 = vmatpush.msra.mxu0 %v75
    %1226 = vmatpush.msra.mxu0 %v71
    %1227 = vmatpush.msra.mxu0 %v67
    %1228 = vmatpush.msra.mxu0 %v63
    %1229 = vmatpush.msra.mxu0 %v59
    %1230 = vmatpush.msra.mxu0 %v55
    %1231 = vmatmul.f32.gmra.mxu0 %v1094
    %v1232 = vpop.f32.mrf.mxu0
    %v1233 = vadd.f32 %v186, %v1232
    %1234 = vdwg.mxu0
    %1235 = vmatpush.msra.mxu0 %v179
    %1236 = vmatpush.msra.mxu0 %v175
    %1237 = vmatpush.msra.mxu0 %v171
    %1238 = vmatpush.msra.mxu0 %v167
    %1239 = vmatpush.msra.mxu0 %v163
    %1240 = vmatpush.msra.mxu0 %v159
    %1241 = vmatpush.msra.mxu0 %v155
    %1242 = vmatpush.msra.mxu0 %v151
    %1243 = vmatpush.msra.mxu0 %v147
    %1244 = vmatpush.msra.mxu0 %v143
    %1245 = vmatpush.msra.mxu0 %v139
    %1246 = vmatpush.msra.mxu0 %v135
    %1247 = vmatpush.msra.mxu0 %v131
    %1248 = vmatpush.msra.mxu0 %v127
    %1249 = vmatpush.msra.mxu0 %v123
    %1250 = vmatpush.msra.mxu0 %v119
    %1251 = vmatmul.f32.gmra.mxu0 %v1091
    %v1252 = vpop.f32.mrf.mxu0
    %v1253 = vadd.f32 %v1233, %v1252
    %1254 = vdwg.mxu0
    %v1255 = vxor.u32 %v1133, 2147483648
    %v1256 = vmul.f32 %v1255, 1.442695
    %v1257 = vpow.pop %v1256
    %v1258 = vadd.f32 %v1257, 1.0
    %v1259 = vrcp.pop %v1258
    %v1260 = vmul.f32 %v1258, %v1259
    %v1261 = vsub.f32 1.0, %v1260
    %v1262 = vmul.f32 %v1259, %v1261
    %v1263 = vadd.f32 %v1259, %v1262
    %vm1264 = vweird.f32 %v1258
    %vm1265 = vweird.f32 %v1259
    %vm1266 = vmor %vm1264, %vm1265
    %v1267 = vsel %vm1266, %v1259, %v1263
    %v1268 = vand.u32 2147483647, %v1258
    %vm1269 = vcmp.eq.f32.partialorder %v1268, 8.507059e+37
    %v1270 = vand.u32 %v1258, 2147483648
    %v1271 = vor.u32 1.1754944e-38, %v1270
    %v1272 = vsel %vm1269, %v1271, %v1267
    %v1273 = vmul.f32 1.0, %v1272
    %v1274 = vxor.u32 %v1173, 2147483648
    %v1275 = vmul.f32 %v1274, 1.442695
    %v1276 = vpow.pop %v1275
    %v1277 = vadd.f32 %v1276, 1.0
    %v1278 = vrcp.pop %v1277
    %v1279 = vmul.f32 %v1277, %v1278
    %v1280 = vsub.f32 1.0, %v1279
    %v1281 = vmul.f32 %v1278, %v1280
    %v1282 = vadd.f32 %v1278, %v1281
    %vm1283 = vweird.f32 %v1277
    %vm1284 = vweird.f32 %v1278
    %vm1285 = vmor %vm1283, %vm1284
    %v1286 = vsel %vm1285, %v1278, %v1282
    %v1287 = vand.u32 2147483647, %v1277
    %vm1288 = vcmp.eq.f32.partialorder %v1287, 8.507059e+37
    %v1289 = vand.u32 %v1277, 2147483648
    %v1290 = vor.u32 1.1754944e-38, %v1289
    %v1291 = vsel %vm1288, %v1290, %v1286
    %v1292 = vmul.f32 1.0, %v1291
    %v1293 = vtanh.pop %v1213
    %v1294 = vxor.u32 %v1253, 2147483648
    %v1295 = vmul.f32 %v1294, 1.442695
    %v1296 = vpow.pop %v1295
    %v1297 = vadd.f32 %v1296, 1.0
    %v1298 = vrcp.pop %v1297
    %v1299 = vmul.f32 %v1297, %v1298
    %v1300 = vsub.f32 1.0, %v1299
    %v1301 = vmul.f32 %v1298, %v1300
    %v1302 = vadd.f32 %v1298, %v1301
    %vm1303 = vweird.f32 %v1297
    %vm1304 = vweird.f32 %v1298
    %vm1305 = vmor %vm1303, %vm1304
    %v1306 = vsel %vm1305, %v1298, %v1302
    %v1307 = vand.u32 2147483647, %v1297
    %vm1308 = vcmp.eq.f32.partialorder %v1307, 8.507059e+37
    %v1309 = vand.u32 %v1297, 2147483648
    %v1310 = vor.u32 1.1754944e-38, %v1309
    %v1311 = vsel %vm1308, %v1310, %v1306
    %v1312 = vmul.f32 1.0, %v1311
    %v1313 = vmul.f32 %v1292, %v1089
    %v1314 = vmul.f32 %v1273, %v1293
    %v1315 = vadd.f32 %v1313, %v1314
    %v1316 = vtanh.pop %v1315
    %v1317 = vmul.f32 %v1312, %v1316
    %1318 = vst [vmem:[%s1093] sm:$0xff] %v1317
    %s1319 = scalar_lea.vmem [#allocation2], 40
    %v1320 = vld [vmem:[%s1319] sm:$0xff]
    %1321 = vmatpush.msra.mxu0 %v112
    %1322 = vmatpush.msra.mxu0 %v108
    %1323 = vmatpush.msra.mxu0 %v104
    %1324 = vmatpush.msra.mxu0 %v100
    %1325 = vmatpush.msra.mxu0 %v96
    %1326 = vmatpush.msra.mxu0 %v92
    %1327 = vmatpush.msra.mxu0 %v88
    %1328 = vmatpush.msra.mxu0 %v84
    %1329 = vmatpush.msra.mxu0 %v80
    %1330 = vmatpush.msra.mxu0 %v76
    %1331 = vmatpush.msra.mxu0 %v72
    %1332 = vmatpush.msra.mxu0 %v68
    %1333 = vmatpush.msra.mxu0 %v64
    %1334 = vmatpush.msra.mxu0 %v60
    %1335 = vmatpush.msra.mxu0 %v56
    %1336 = vmatpush.msra.mxu0 %v52
    %1337 = vmatmul.f32.gmra.mxu0 %v1320
    %v1338 = vpop.f32.mrf.mxu0
    %v1339 = vadd.f32 %v183, %v1338
    %1340 = vdwg.mxu0
    %1341 = vmatpush.msra.mxu0 %v176
    %1342 = vmatpush.msra.mxu0 %v172
    %1343 = vmatpush.msra.mxu0 %v168
    %1344 = vmatpush.msra.mxu0 %v164
    %1345 = vmatpush.msra.mxu0 %v160
    %1346 = vmatpush.msra.mxu0 %v156
    %1347 = vmatpush.msra.mxu0 %v152
    %1348 = vmatpush.msra.mxu0 %v148
    %1349 = vmatpush.msra.mxu0 %v144
    %1350 = vmatpush.msra.mxu0 %v140
    %1351 = vmatpush.msra.mxu0 %v136
    %1352 = vmatpush.msra.mxu0 %v132
    %1353 = vmatpush.msra.mxu0 %v128
    %1354 = vmatpush.msra.mxu0 %v124
    %1355 = vmatpush.msra.mxu0 %v120
    %1356 = vmatpush.msra.mxu0 %v116
    %1357 = vmatmul.f32.gmra.mxu0 %v1317
    %v1358 = vpop.f32.mrf.mxu0
    %v1359 = vadd.f32 %v1339, %v1358
    %1360 = vdwg.mxu0
    %1361 = vmatpush.msra.mxu0 %v113
    %1362 = vmatpush.msra.mxu0 %v109
    %1363 = vmatpush.msra.mxu0 %v105
    %1364 = vmatpush.msra.mxu0 %v101
    %1365 = vmatpush.msra.mxu0 %v97
    %1366 = vmatpush.msra.mxu0 %v93
    %1367 = vmatpush.msra.mxu0 %v89
    %1368 = vmatpush.msra.mxu0 %v85
    %1369 = vmatpush.msra.mxu0 %v81
    %1370 = vmatpush.msra.mxu0 %v77
    %1371 = vmatpush.msra.mxu0 %v73
    %1372 = vmatpush.msra.mxu0 %v69
    %1373 = vmatpush.msra.mxu0 %v65
    %1374 = vmatpush.msra.mxu0 %v61
    %1375 = vmatpush.msra.mxu0 %v57
    %1376 = vmatpush.msra.mxu0 %v53
    %1377 = vmatmul.f32.gmra.mxu0 %v1320
    %v1378 = vpop.f32.mrf.mxu0
    %v1379 = vadd.f32 %v184, %v1378
    %1380 = vdwg.mxu0
    %1381 = vmatpush.msra.mxu0 %v177
    %1382 = vmatpush.msra.mxu0 %v173
    %1383 = vmatpush.msra.mxu0 %v169
    %1384 = vmatpush.msra.mxu0 %v165
    %1385 = vmatpush.msra.mxu0 %v161
    %1386 = vmatpush.msra.mxu0 %v157
    %1387 = vmatpush.msra.mxu0 %v153
    %1388 = vmatpush.msra.mxu0 %v149
    %1389 = vmatpush.msra.mxu0 %v145
    %1390 = vmatpush.msra.mxu0 %v141
    %1391 = vmatpush.msra.mxu0 %v137
    %1392 = vmatpush.msra.mxu0 %v133
    %1393 = vmatpush.msra.mxu0 %v129
    %1394 = vmatpush.msra.mxu0 %v125
    %1395 = vmatpush.msra.mxu0 %v121
    %1396 = vmatpush.msra.mxu0 %v117
    %1397 = vmatmul.f32.gmra.mxu0 %v1317
    %v1398 = vpop.f32.mrf.mxu0
    %v1399 = vadd.f32 %v1379, %v1398
    %1400 = vdwg.mxu0
    %1401 = vmatpush.msra.mxu0 %v114
    %1402 = vmatpush.msra.mxu0 %v110
    %1403 = vmatpush.msra.mxu0 %v106
    %1404 = vmatpush.msra.mxu0 %v102
    %1405 = vmatpush.msra.mxu0 %v98
    %1406 = vmatpush.msra.mxu0 %v94
    %1407 = vmatpush.msra.mxu0 %v90
    %1408 = vmatpush.msra.mxu0 %v86
    %1409 = vmatpush.msra.mxu0 %v82
    %1410 = vmatpush.msra.mxu0 %v78
    %1411 = vmatpush.msra.mxu0 %v74
    %1412 = vmatpush.msra.mxu0 %v70
    %1413 = vmatpush.msra.mxu0 %v66
    %1414 = vmatpush.msra.mxu0 %v62
    %1415 = vmatpush.msra.mxu0 %v58
    %1416 = vmatpush.msra.mxu0 %v54
    %1417 = vmatmul.f32.gmra.mxu0 %v1320
    %v1418 = vpop.f32.mrf.mxu0
    %v1419 = vadd.f32 %v185, %v1418
    %1420 = vdwg.mxu0
    %1421 = vmatpush.msra.mxu0 %v178
    %1422 = vmatpush.msra.mxu0 %v174
    %1423 = vmatpush.msra.mxu0 %v170
    %1424 = vmatpush.msra.mxu0 %v166
    %1425 = vmatpush.msra.mxu0 %v162
    %1426 = vmatpush.msra.mxu0 %v158
    %1427 = vmatpush.msra.mxu0 %v154
    %1428 = vmatpush.msra.mxu0 %v150
    %1429 = vmatpush.msra.mxu0 %v146
    %1430 = vmatpush.msra.mxu0 %v142
    %1431 = vmatpush.msra.mxu0 %v138
    %1432 = vmatpush.msra.mxu0 %v134
    %1433 = vmatpush.msra.mxu0 %v130
    %1434 = vmatpush.msra.mxu0 %v126
    %1435 = vmatpush.msra.mxu0 %v122
    %1436 = vmatpush.msra.mxu0 %v118
    %1437 = vmatmul.f32.gmra.mxu0 %v1317
    %v1438 = vpop.f32.mrf.mxu0
    %v1439 = vadd.f32 %v1419, %v1438
    %1440 = vdwg.mxu0
    %1441 = vmatpush.msra.mxu0 %v115
    %1442 = vmatpush.msra.mxu0 %v111
    %1443 = vmatpush.msra.mxu0 %v107
    %1444 = vmatpush.msra.mxu0 %v103
    %1445 = vmatpush.msra.mxu0 %v99
    %1446 = vmatpush.msra.mxu0 %v95
    %1447 = vmatpush.msra.mxu0 %v91
    %1448 = vmatpush.msra.mxu0 %v87
    %1449 = vmatpush.msra.mxu0 %v83
    %1450 = vmatpush.msra.mxu0 %v79
    %1451 = vmatpush.msra.mxu0 %v75
    %1452 = vmatpush.msra.mxu0 %v71
    %1453 = vmatpush.msra.mxu0 %v67
    %1454 = vmatpush.msra.mxu0 %v63
    %1455 = vmatpush.msra.mxu0 %v59
    %1456 = vmatpush.msra.mxu0 %v55
    %1457 = vmatmul.f32.gmra.mxu0 %v1320
    %v1458 = vpop.f32.mrf.mxu0
    %v1459 = vadd.f32 %v186, %v1458
    %1460 = vdwg.mxu0
    %1461 = vmatpush.msra.mxu0 %v179
    %1462 = vmatpush.msra.mxu0 %v175
    %1463 = vmatpush.msra.mxu0 %v171
    %1464 = vmatpush.msra.mxu0 %v167
    %1465 = vmatpush.msra.mxu0 %v163
    %1466 = vmatpush.msra.mxu0 %v159
    %1467 = vmatpush.msra.mxu0 %v155
    %1468 = vmatpush.msra.mxu0 %v151
    %1469 = vmatpush.msra.mxu0 %v147
    %1470 = vmatpush.msra.mxu0 %v143
    %1471 = vmatpush.msra.mxu0 %v139
    %1472 = vmatpush.msra.mxu0 %v135
    %1473 = vmatpush.msra.mxu0 %v131
    %1474 = vmatpush.msra.mxu0 %v127
    %1475 = vmatpush.msra.mxu0 %v123
    %1476 = vmatpush.msra.mxu0 %v119
    %1477 = vmatmul.f32.gmra.mxu0 %v1317
    %v1478 = vpop.f32.mrf.mxu0
    %v1479 = vadd.f32 %v1459, %v1478
    %1480 = vdwg.mxu0
    %v1481 = vxor.u32 %v1359, 2147483648
    %v1482 = vmul.f32 %v1481, 1.442695
    %v1483 = vpow.pop %v1482
    %v1484 = vadd.f32 %v1483, 1.0
    %v1485 = vrcp.pop %v1484
    %v1486 = vmul.f32 %v1484, %v1485
    %v1487 = vsub.f32 1.0, %v1486
    %v1488 = vmul.f32 %v1485, %v1487
    %v1489 = vadd.f32 %v1485, %v1488
    %vm1490 = vweird.f32 %v1484
    %vm1491 = vweird.f32 %v1485
    %vm1492 = vmor %vm1490, %vm1491
    %v1493 = vsel %vm1492, %v1485, %v1489
    %v1494 = vand.u32 2147483647, %v1484
    %vm1495 = vcmp.eq.f32.partialorder %v1494, 8.507059e+37
    %v1496 = vand.u32 %v1484, 2147483648
    %v1497 = vor.u32 1.1754944e-38, %v1496
    %v1498 = vsel %vm1495, %v1497, %v1493
    %v1499 = vmul.f32 1.0, %v1498
    %v1500 = vxor.u32 %v1399, 2147483648
    %v1501 = vmul.f32 %v1500, 1.442695
    %v1502 = vpow.pop %v1501
    %v1503 = vadd.f32 %v1502, 1.0
    %v1504 = vrcp.pop %v1503
    %v1505 = vmul.f32 %v1503, %v1504
    %v1506 = vsub.f32 1.0, %v1505
    %v1507 = vmul.f32 %v1504, %v1506
    %v1508 = vadd.f32 %v1504, %v1507
    %vm1509 = vweird.f32 %v1503
    %vm1510 = vweird.f32 %v1504
    %vm1511 = vmor %vm1509, %vm1510
    %v1512 = vsel %vm1511, %v1504, %v1508
    %v1513 = vand.u32 2147483647, %v1503
    %vm1514 = vcmp.eq.f32.partialorder %v1513, 8.507059e+37
    %v1515 = vand.u32 %v1503, 2147483648
    %v1516 = vor.u32 1.1754944e-38, %v1515
    %v1517 = vsel %vm1514, %v1516, %v1512
    %v1518 = vmul.f32 1.0, %v1517
    %v1519 = vtanh.pop %v1439
    %v1520 = vxor.u32 %v1479, 2147483648
    %v1521 = vmul.f32 %v1520, 1.442695
    %v1522 = vpow.pop %v1521
    %v1523 = vadd.f32 %v1522, 1.0
    %v1524 = vrcp.pop %v1523
    %v1525 = vmul.f32 %v1523, %v1524
    %v1526 = vsub.f32 1.0, %v1525
    %v1527 = vmul.f32 %v1524, %v1526
    %v1528 = vadd.f32 %v1524, %v1527
    %vm1529 = vweird.f32 %v1523
    %vm1530 = vweird.f32 %v1524
    %vm1531 = vmor %vm1529, %vm1530
    %v1532 = vsel %vm1531, %v1524, %v1528
    %v1533 = vand.u32 2147483647, %v1523
    %vm1534 = vcmp.eq.f32.partialorder %v1533, 8.507059e+37
    %v1535 = vand.u32 %v1523, 2147483648
    %v1536 = vor.u32 1.1754944e-38, %v1535
    %v1537 = vsel %vm1534, %v1536, %v1532
    %v1538 = vmul.f32 1.0, %v1537
    %v1539 = vmul.f32 %v1518, %v1315
    %v1540 = vmul.f32 %v1499, %v1519
    %v1541 = vadd.f32 %v1539, %v1540
    %v1542 = vtanh.pop %v1541
    %v1543 = vmul.f32 %v1538, %v1542
    %1544 = vst [vmem:[%s1319] sm:$0xff] %v1543
    %s1545 = scalar_lea.vmem [#allocation2], 48
    %v1546 = vld [vmem:[%s1545] sm:$0xff]
    %1547 = vmatpush.msra.mxu0 %v112
    %1548 = vmatpush.msra.mxu0 %v108
    %1549 = vmatpush.msra.mxu0 %v104
    %1550 = vmatpush.msra.mxu0 %v100
    %1551 = vmatpush.msra.mxu0 %v96
    %1552 = vmatpush.msra.mxu0 %v92
    %1553 = vmatpush.msra.mxu0 %v88
    %1554 = vmatpush.msra.mxu0 %v84
    %1555 = vmatpush.msra.mxu0 %v80
    %1556 = vmatpush.msra.mxu0 %v76
    %1557 = vmatpush.msra.mxu0 %v72
    %1558 = vmatpush.msra.mxu0 %v68
    %1559 = vmatpush.msra.mxu0 %v64
    %1560 = vmatpush.msra.mxu0 %v60
    %1561 = vmatpush.msra.mxu0 %v56
    %1562 = vmatpush.msra.mxu0 %v52
    %1563 = vmatmul.f32.gmra.mxu0 %v1546
    %v1564 = vpop.f32.mrf.mxu0
    %v1565 = vadd.f32 %v183, %v1564
    %1566 = vdwg.mxu0
    %1567 = vmatpush.msra.mxu0 %v176
    %1568 = vmatpush.msra.mxu0 %v172
    %1569 = vmatpush.msra.mxu0 %v168
    %1570 = vmatpush.msra.mxu0 %v164
    %1571 = vmatpush.msra.mxu0 %v160
    %1572 = vmatpush.msra.mxu0 %v156
    %1573 = vmatpush.msra.mxu0 %v152
    %1574 = vmatpush.msra.mxu0 %v148
    %1575 = vmatpush.msra.mxu0 %v144
    %1576 = vmatpush.msra.mxu0 %v140
    %1577 = vmatpush.msra.mxu0 %v136
    %1578 = vmatpush.msra.mxu0 %v132
    %1579 = vmatpush.msra.mxu0 %v128
    %1580 = vmatpush.msra.mxu0 %v124
    %1581 = vmatpush.msra.mxu0 %v120
    %1582 = vmatpush.msra.mxu0 %v116
    %1583 = vmatmul.f32.gmra.mxu0 %v1543
    %v1584 = vpop.f32.mrf.mxu0
    %v1585 = vadd.f32 %v1565, %v1584
    %1586 = vdwg.mxu0
    %1587 = vmatpush.msra.mxu0 %v113
    %1588 = vmatpush.msra.mxu0 %v109
    %1589 = vmatpush.msra.mxu0 %v105
    %1590 = vmatpush.msra.mxu0 %v101
    %1591 = vmatpush.msra.mxu0 %v97
    %1592 = vmatpush.msra.mxu0 %v93
    %1593 = vmatpush.msra.mxu0 %v89
    %1594 = vmatpush.msra.mxu0 %v85
    %1595 = vmatpush.msra.mxu0 %v81
    %1596 = vmatpush.msra.mxu0 %v77
    %1597 = vmatpush.msra.mxu0 %v73
    %1598 = vmatpush.msra.mxu0 %v69
    %1599 = vmatpush.msra.mxu0 %v65
    %1600 = vmatpush.msra.mxu0 %v61
    %1601 = vmatpush.msra.mxu0 %v57
    %1602 = vmatpush.msra.mxu0 %v53
    %1603 = vmatmul.f32.gmra.mxu0 %v1546
    %v1604 = vpop.f32.mrf.mxu0
    %v1605 = vadd.f32 %v184, %v1604
    %1606 = vdwg.mxu0
    %1607 = vmatpush.msra.mxu0 %v177
    %1608 = vmatpush.msra.mxu0 %v173
    %1609 = vmatpush.msra.mxu0 %v169
    %1610 = vmatpush.msra.mxu0 %v165
    %1611 = vmatpush.msra.mxu0 %v161
    %1612 = vmatpush.msra.mxu0 %v157
    %1613 = vmatpush.msra.mxu0 %v153
    %1614 = vmatpush.msra.mxu0 %v149
    %1615 = vmatpush.msra.mxu0 %v145
    %1616 = vmatpush.msra.mxu0 %v141
    %1617 = vmatpush.msra.mxu0 %v137
    %1618 = vmatpush.msra.mxu0 %v133
    %1619 = vmatpush.msra.mxu0 %v129
    %1620 = vmatpush.msra.mxu0 %v125
    %1621 = vmatpush.msra.mxu0 %v121
    %1622 = vmatpush.msra.mxu0 %v117
    %1623 = vmatmul.f32.gmra.mxu0 %v1543
    %v1624 = vpop.f32.mrf.mxu0
    %v1625 = vadd.f32 %v1605, %v1624
    %1626 = vdwg.mxu0
    %1627 = vmatpush.msra.mxu0 %v114
    %1628 = vmatpush.msra.mxu0 %v110
    %1629 = vmatpush.msra.mxu0 %v106
    %1630 = vmatpush.msra.mxu0 %v102
    %1631 = vmatpush.msra.mxu0 %v98
    %1632 = vmatpush.msra.mxu0 %v94
    %1633 = vmatpush.msra.mxu0 %v90
    %1634 = vmatpush.msra.mxu0 %v86
    %1635 = vmatpush.msra.mxu0 %v82
    %1636 = vmatpush.msra.mxu0 %v78
    %1637 = vmatpush.msra.mxu0 %v74
    %1638 = vmatpush.msra.mxu0 %v70
    %1639 = vmatpush.msra.mxu0 %v66
    %1640 = vmatpush.msra.mxu0 %v62
    %1641 = vmatpush.msra.mxu0 %v58
    %1642 = vmatpush.msra.mxu0 %v54
    %1643 = vmatmul.f32.gmra.mxu0 %v1546
    %v1644 = vpop.f32.mrf.mxu0
    %v1645 = vadd.f32 %v185, %v1644
    %1646 = vdwg.mxu0
    %1647 = vmatpush.msra.mxu0 %v178
    %1648 = vmatpush.msra.mxu0 %v174
    %1649 = vmatpush.msra.mxu0 %v170
    %1650 = vmatpush.msra.mxu0 %v166
    %1651 = vmatpush.msra.mxu0 %v162
    %1652 = vmatpush.msra.mxu0 %v158
    %1653 = vmatpush.msra.mxu0 %v154
    %1654 = vmatpush.msra.mxu0 %v150
    %1655 = vmatpush.msra.mxu0 %v146
    %1656 = vmatpush.msra.mxu0 %v142
    %1657 = vmatpush.msra.mxu0 %v138
    %1658 = vmatpush.msra.mxu0 %v134
    %1659 = vmatpush.msra.mxu0 %v130
    %1660 = vmatpush.msra.mxu0 %v126
    %1661 = vmatpush.msra.mxu0 %v122
    %1662 = vmatpush.msra.mxu0 %v118
    %1663 = vmatmul.f32.gmra.mxu0 %v1543
    %v1664 = vpop.f32.mrf.mxu0
    %v1665 = vadd.f32 %v1645, %v1664
    %1666 = vdwg.mxu0
    %1667 = vmatpush.msra.mxu0 %v115
    %1668 = vmatpush.msra.mxu0 %v111
    %1669 = vmatpush.msra.mxu0 %v107
    %1670 = vmatpush.msra.mxu0 %v103
    %1671 = vmatpush.msra.mxu0 %v99
    %1672 = vmatpush.msra.mxu0 %v95
    %1673 = vmatpush.msra.mxu0 %v91
    %1674 = vmatpush.msra.mxu0 %v87
    %1675 = vmatpush.msra.mxu0 %v83
    %1676 = vmatpush.msra.mxu0 %v79
    %1677 = vmatpush.msra.mxu0 %v75
    %1678 = vmatpush.msra.mxu0 %v71
    %1679 = vmatpush.msra.mxu0 %v67
    %1680 = vmatpush.msra.mxu0 %v63
    %1681 = vmatpush.msra.mxu0 %v59
    %1682 = vmatpush.msra.mxu0 %v55
    %1683 = vmatmul.f32.gmra.mxu0 %v1546
    %v1684 = vpop.f32.mrf.mxu0
    %v1685 = vadd.f32 %v186, %v1684
    %1686 = vdwg.mxu0
    %1687 = vmatpush.msra.mxu0 %v179
    %1688 = vmatpush.msra.mxu0 %v175
    %1689 = vmatpush.msra.mxu0 %v171
    %1690 = vmatpush.msra.mxu0 %v167
    %1691 = vmatpush.msra.mxu0 %v163
    %1692 = vmatpush.msra.mxu0 %v159
    %1693 = vmatpush.msra.mxu0 %v155
    %1694 = vmatpush.msra.mxu0 %v151
    %1695 = vmatpush.msra.mxu0 %v147
    %1696 = vmatpush.msra.mxu0 %v143
    %1697 = vmatpush.msra.mxu0 %v139
    %1698 = vmatpush.msra.mxu0 %v135
    %1699 = vmatpush.msra.mxu0 %v131
    %1700 = vmatpush.msra.mxu0 %v127
    %1701 = vmatpush.msra.mxu0 %v123
    %1702 = vmatpush.msra.mxu0 %v119
    %1703 = vmatmul.f32.gmra.mxu0 %v1543
    %v1704 = vpop.f32.mrf.mxu0
    %v1705 = vadd.f32 %v1685, %v1704
    %1706 = vdwg.mxu0
    %v1707 = vxor.u32 %v1585, 2147483648
    %v1708 = vmul.f32 %v1707, 1.442695
    %v1709 = vpow.pop %v1708
    %v1710 = vadd.f32 %v1709, 1.0
    %v1711 = vrcp.pop %v1710
    %v1712 = vmul.f32 %v1710, %v1711
    %v1713 = vsub.f32 1.0, %v1712
    %v1714 = vmul.f32 %v1711, %v1713
    %v1715 = vadd.f32 %v1711, %v1714
    %vm1716 = vweird.f32 %v1710
    %vm1717 = vweird.f32 %v1711
    %vm1718 = vmor %vm1716, %vm1717
    %v1719 = vsel %vm1718, %v1711, %v1715
    %v1720 = vand.u32 2147483647, %v1710
    %vm1721 = vcmp.eq.f32.partialorder %v1720, 8.507059e+37
    %v1722 = vand.u32 %v1710, 2147483648
    %v1723 = vor.u32 1.1754944e-38, %v1722
    %v1724 = vsel %vm1721, %v1723, %v1719
    %v1725 = vmul.f32 1.0, %v1724
    %v1726 = vxor.u32 %v1625, 2147483648
    %v1727 = vmul.f32 %v1726, 1.442695
    %v1728 = vpow.pop %v1727
    %v1729 = vadd.f32 %v1728, 1.0
    %v1730 = vrcp.pop %v1729
    %v1731 = vmul.f32 %v1729, %v1730
    %v1732 = vsub.f32 1.0, %v1731
    %v1733 = vmul.f32 %v1730, %v1732
    %v1734 = vadd.f32 %v1730, %v1733
    %vm1735 = vweird.f32 %v1729
    %vm1736 = vweird.f32 %v1730
    %vm1737 = vmor %vm1735, %vm1736
    %v1738 = vsel %vm1737, %v1730, %v1734
    %v1739 = vand.u32 2147483647, %v1729
    %vm1740 = vcmp.eq.f32.partialorder %v1739, 8.507059e+37
    %v1741 = vand.u32 %v1729, 2147483648
    %v1742 = vor.u32 1.1754944e-38, %v1741
    %v1743 = vsel %vm1740, %v1742, %v1738
    %v1744 = vmul.f32 1.0, %v1743
    %v1745 = vtanh.pop %v1665
    %v1746 = vxor.u32 %v1705, 2147483648
    %v1747 = vmul.f32 %v1746, 1.442695
    %v1748 = vpow.pop %v1747
    %v1749 = vadd.f32 %v1748, 1.0
    %v1750 = vrcp.pop %v1749
    %v1751 = vmul.f32 %v1749, %v1750
    %v1752 = vsub.f32 1.0, %v1751
    %v1753 = vmul.f32 %v1750, %v1752
    %v1754 = vadd.f32 %v1750, %v1753
    %vm1755 = vweird.f32 %v1749
    %vm1756 = vweird.f32 %v1750
    %vm1757 = vmor %vm1755, %vm1756
    %v1758 = vsel %vm1757, %v1750, %v1754
    %v1759 = vand.u32 2147483647, %v1749
    %vm1760 = vcmp.eq.f32.partialorder %v1759, 8.507059e+37
    %v1761 = vand.u32 %v1749, 2147483648
    %v1762 = vor.u32 1.1754944e-38, %v1761
    %v1763 = vsel %vm1760, %v1762, %v1758
    %v1764 = vmul.f32 1.0, %v1763
    %v1765 = vmul.f32 %v1744, %v1541
    %v1766 = vmul.f32 %v1725, %v1745
    %v1767 = vadd.f32 %v1765, %v1766
    %v1768 = vtanh.pop %v1767
    %v1769 = vmul.f32 %v1764, %v1768
    %1770 = vst [vmem:[%s1545] sm:$0xff] %v1769
    %s1771 = scalar_lea.vmem [#allocation2], 56
    %v1772 = vld [vmem:[%s1771] sm:$0xff]
    %1773 = vmatpush.msra.mxu0 %v112
    %1774 = vmatpush.msra.mxu0 %v108
    %1775 = vmatpush.msra.mxu0 %v104
    %1776 = vmatpush.msra.mxu0 %v100
    %1777 = vmatpush.msra.mxu0 %v96
    %1778 = vmatpush.msra.mxu0 %v92
    %1779 = vmatpush.msra.mxu0 %v88
    %1780 = vmatpush.msra.mxu0 %v84
    %1781 = vmatpush.msra.mxu0 %v80
    %1782 = vmatpush.msra.mxu0 %v76
    %1783 = vmatpush.msra.mxu0 %v72
    %1784 = vmatpush.msra.mxu0 %v68
    %1785 = vmatpush.msra.mxu0 %v64
    %1786 = vmatpush.msra.mxu0 %v60
    %1787 = vmatpush.msra.mxu0 %v56
    %1788 = vmatpush.msra.mxu0 %v52
    %1789 = vmatmul.f32.gmra.mxu0 %v1772
    %v1790 = vpop.f32.mrf.mxu0
    %v1791 = vadd.f32 %v183, %v1790
    %1792 = vdwg.mxu0
    %1793 = vmatpush.msra.mxu0 %v176
    %1794 = vmatpush.msra.mxu0 %v172
    %1795 = vmatpush.msra.mxu0 %v168
    %1796 = vmatpush.msra.mxu0 %v164
    %1797 = vmatpush.msra.mxu0 %v160
    %1798 = vmatpush.msra.mxu0 %v156
    %1799 = vmatpush.msra.mxu0 %v152
    %1800 = vmatpush.msra.mxu0 %v148
    %1801 = vmatpush.msra.mxu0 %v144
    %1802 = vmatpush.msra.mxu0 %v140
    %1803 = vmatpush.msra.mxu0 %v136
    %1804 = vmatpush.msra.mxu0 %v132
    %1805 = vmatpush.msra.mxu0 %v128
    %1806 = vmatpush.msra.mxu0 %v124
    %1807 = vmatpush.msra.mxu0 %v120
    %1808 = vmatpush.msra.mxu0 %v116
    %1809 = vmatmul.f32.gmra.mxu0 %v1769
    %v1810 = vpop.f32.mrf.mxu0
    %v1811 = vadd.f32 %v1791, %v1810
    %1812 = vdwg.mxu0
    %1813 = vmatpush.msra.mxu0 %v113
    %1814 = vmatpush.msra.mxu0 %v109
    %1815 = vmatpush.msra.mxu0 %v105
    %1816 = vmatpush.msra.mxu0 %v101
    %1817 = vmatpush.msra.mxu0 %v97
    %1818 = vmatpush.msra.mxu0 %v93
    %1819 = vmatpush.msra.mxu0 %v89
    %1820 = vmatpush.msra.mxu0 %v85
    %1821 = vmatpush.msra.mxu0 %v81
    %1822 = vmatpush.msra.mxu0 %v77
    %1823 = vmatpush.msra.mxu0 %v73
    %1824 = vmatpush.msra.mxu0 %v69
    %1825 = vmatpush.msra.mxu0 %v65
    %1826 = vmatpush.msra.mxu0 %v61
    %1827 = vmatpush.msra.mxu0 %v57
    %1828 = vmatpush.msra.mxu0 %v53
    %1829 = vmatmul.f32.gmra.mxu0 %v1772
    %v1830 = vpop.f32.mrf.mxu0
    %v1831 = vadd.f32 %v184, %v1830
    %1832 = vdwg.mxu0
    %1833 = vmatpush.msra.mxu0 %v177
    %1834 = vmatpush.msra.mxu0 %v173
    %1835 = vmatpush.msra.mxu0 %v169
    %1836 = vmatpush.msra.mxu0 %v165
    %1837 = vmatpush.msra.mxu0 %v161
    %1838 = vmatpush.msra.mxu0 %v157
    %1839 = vmatpush.msra.mxu0 %v153
    %1840 = vmatpush.msra.mxu0 %v149
    %1841 = vmatpush.msra.mxu0 %v145
    %1842 = vmatpush.msra.mxu0 %v141
    %1843 = vmatpush.msra.mxu0 %v137
    %1844 = vmatpush.msra.mxu0 %v133
    %1845 = vmatpush.msra.mxu0 %v129
    %1846 = vmatpush.msra.mxu0 %v125
    %1847 = vmatpush.msra.mxu0 %v121
    %1848 = vmatpush.msra.mxu0 %v117
    %1849 = vmatmul.f32.gmra.mxu0 %v1769
    %v1850 = vpop.f32.mrf.mxu0
    %v1851 = vadd.f32 %v1831, %v1850
    %1852 = vdwg.mxu0
    %1853 = vmatpush.msra.mxu0 %v114
    %1854 = vmatpush.msra.mxu0 %v110
    %1855 = vmatpush.msra.mxu0 %v106
    %1856 = vmatpush.msra.mxu0 %v102
    %1857 = vmatpush.msra.mxu0 %v98
    %1858 = vmatpush.msra.mxu0 %v94
    %1859 = vmatpush.msra.mxu0 %v90
    %1860 = vmatpush.msra.mxu0 %v86
    %1861 = vmatpush.msra.mxu0 %v82
    %1862 = vmatpush.msra.mxu0 %v78
    %1863 = vmatpush.msra.mxu0 %v74
    %1864 = vmatpush.msra.mxu0 %v70
    %1865 = vmatpush.msra.mxu0 %v66
    %1866 = vmatpush.msra.mxu0 %v62
    %1867 = vmatpush.msra.mxu0 %v58
    %1868 = vmatpush.msra.mxu0 %v54
    %1869 = vmatmul.f32.gmra.mxu0 %v1772
    %v1870 = vpop.f32.mrf.mxu0
    %v1871 = vadd.f32 %v185, %v1870
    %1872 = vdwg.mxu0
    %1873 = vmatpush.msra.mxu0 %v178
    %1874 = vmatpush.msra.mxu0 %v174
    %1875 = vmatpush.msra.mxu0 %v170
    %1876 = vmatpush.msra.mxu0 %v166
    %1877 = vmatpush.msra.mxu0 %v162
    %1878 = vmatpush.msra.mxu0 %v158
    %1879 = vmatpush.msra.mxu0 %v154
    %1880 = vmatpush.msra.mxu0 %v150
    %1881 = vmatpush.msra.mxu0 %v146
    %1882 = vmatpush.msra.mxu0 %v142
    %1883 = vmatpush.msra.mxu0 %v138
    %1884 = vmatpush.msra.mxu0 %v134
    %1885 = vmatpush.msra.mxu0 %v130
    %1886 = vmatpush.msra.mxu0 %v126
    %1887 = vmatpush.msra.mxu0 %v122
    %1888 = vmatpush.msra.mxu0 %v118
    %1889 = vmatmul.f32.gmra.mxu0 %v1769
    %v1890 = vpop.f32.mrf.mxu0
    %v1891 = vadd.f32 %v1871, %v1890
    %1892 = vdwg.mxu0
    %1893 = vmatpush.msra.mxu0 %v115
    %1894 = vmatpush.msra.mxu0 %v111
    %1895 = vmatpush.msra.mxu0 %v107
    %1896 = vmatpush.msra.mxu0 %v103
    %1897 = vmatpush.msra.mxu0 %v99
    %1898 = vmatpush.msra.mxu0 %v95
    %1899 = vmatpush.msra.mxu0 %v91
    %1900 = vmatpush.msra.mxu0 %v87
    %1901 = vmatpush.msra.mxu0 %v83
    %1902 = vmatpush.msra.mxu0 %v79
    %1903 = vmatpush.msra.mxu0 %v75
    %1904 = vmatpush.msra.mxu0 %v71
    %1905 = vmatpush.msra.mxu0 %v67
    %1906 = vmatpush.msra.mxu0 %v63
    %1907 = vmatpush.msra.mxu0 %v59
    %1908 = vmatpush.msra.mxu0 %v55
    %1909 = vmatmul.f32.gmra.mxu0 %v1772
    %v1910 = vpop.f32.mrf.mxu0
    %v1911 = vadd.f32 %v186, %v1910
    %1912 = vdwg.mxu0
    %1913 = vmatpush.msra.mxu0 %v179
    %1914 = vmatpush.msra.mxu0 %v175
    %1915 = vmatpush.msra.mxu0 %v171
    %1916 = vmatpush.msra.mxu0 %v167
    %1917 = vmatpush.msra.mxu0 %v163
    %1918 = vmatpush.msra.mxu0 %v159
    %1919 = vmatpush.msra.mxu0 %v155
    %1920 = vmatpush.msra.mxu0 %v151
    %1921 = vmatpush.msra.mxu0 %v147
    %1922 = vmatpush.msra.mxu0 %v143
    %1923 = vmatpush.msra.mxu0 %v139
    %1924 = vmatpush.msra.mxu0 %v135
    %1925 = vmatpush.msra.mxu0 %v131
    %1926 = vmatpush.msra.mxu0 %v127
    %1927 = vmatpush.msra.mxu0 %v123
    %1928 = vmatpush.msra.mxu0 %v119
    %1929 = vmatmul.f32.gmra.mxu0 %v1769
    %v1930 = vpop.f32.mrf.mxu0
    %v1931 = vadd.f32 %v1911, %v1930
    %1932 = vdwg.mxu0
    %v1933 = vxor.u32 %v1811, 2147483648
    %v1934 = vmul.f32 %v1933, 1.442695
    %v1935 = vpow.pop %v1934
    %v1936 = vadd.f32 %v1935, 1.0
    %v1937 = vrcp.pop %v1936
    %v1938 = vmul.f32 %v1936, %v1937
    %v1939 = vsub.f32 1.0, %v1938
    %v1940 = vmul.f32 %v1937, %v1939
    %v1941 = vadd.f32 %v1937, %v1940
    %vm1942 = vweird.f32 %v1936
    %vm1943 = vweird.f32 %v1937
    %vm1944 = vmor %vm1942, %vm1943
    %v1945 = vsel %vm1944, %v1937, %v1941
    %v1946 = vand.u32 2147483647, %v1936
    %vm1947 = vcmp.eq.f32.partialorder %v1946, 8.507059e+37
    %v1948 = vand.u32 %v1936, 2147483648
    %v1949 = vor.u32 1.1754944e-38, %v1948
    %v1950 = vsel %vm1947, %v1949, %v1945
    %v1951 = vmul.f32 1.0, %v1950
    %v1952 = vxor.u32 %v1851, 2147483648
    %v1953 = vmul.f32 %v1952, 1.442695
    %v1954 = vpow.pop %v1953
    %v1955 = vadd.f32 %v1954, 1.0
    %v1956 = vrcp.pop %v1955
    %v1957 = vmul.f32 %v1955, %v1956
    %v1958 = vsub.f32 1.0, %v1957
    %v1959 = vmul.f32 %v1956, %v1958
    %v1960 = vadd.f32 %v1956, %v1959
    %vm1961 = vweird.f32 %v1955
    %vm1962 = vweird.f32 %v1956
    %vm1963 = vmor %vm1961, %vm1962
    %v1964 = vsel %vm1963, %v1956, %v1960
    %v1965 = vand.u32 2147483647, %v1955
    %vm1966 = vcmp.eq.f32.partialorder %v1965, 8.507059e+37
    %v1967 = vand.u32 %v1955, 2147483648
    %v1968 = vor.u32 1.1754944e-38, %v1967
    %v1969 = vsel %vm1966, %v1968, %v1964
    %v1970 = vmul.f32 1.0, %v1969
    %v1971 = vtanh.pop %v1891
    %v1972 = vxor.u32 %v1931, 2147483648
    %v1973 = vmul.f32 %v1972, 1.442695
    %v1974 = vpow.pop %v1973
    %v1975 = vadd.f32 %v1974, 1.0
    %v1976 = vrcp.pop %v1975
    %v1977 = vmul.f32 %v1975, %v1976
    %v1978 = vsub.f32 1.0, %v1977
    %v1979 = vmul.f32 %v1976, %v1978
    %v1980 = vadd.f32 %v1976, %v1979
    %vm1981 = vweird.f32 %v1975
    %vm1982 = vweird.f32 %v1976
    %vm1983 = vmor %vm1981, %vm1982
    %v1984 = vsel %vm1983, %v1976, %v1980
    %v1985 = vand.u32 2147483647, %v1975
    %vm1986 = vcmp.eq.f32.partialorder %v1985, 8.507059e+37
    %v1987 = vand.u32 %v1975, 2147483648
    %v1988 = vor.u32 1.1754944e-38, %v1987
    %v1989 = vsel %vm1986, %v1988, %v1984
    %v1990 = vmul.f32 1.0, %v1989
    %v1991 = vmul.f32 %v1970, %v1767
    %v1992 = vmul.f32 %v1951, %v1971
    %v1993 = vadd.f32 %v1991, %v1992
    %v1994 = vtanh.pop %v1993
    %v1995 = vmul.f32 %v1990, %v1994
    %1996 = vst [vmem:[%s1771] sm:$0xff] %v1995
    %s1997 = scalar_lea.vmem [#allocation3], 1024
    %v1998 = vld [vmem:[%s1997] sm:$0xff]
    %v1999 = vld [vmem:[%s1997 + $0x8] sm:$0xff]
    %v2000 = vld [vmem:[%s1997 + $0x10] sm:$0xff]
    %v2001 = vld [vmem:[%s1997 + $0x18] sm:$0xff]
    %v2002 = vld [vmem:[%s1997 + $0x20] sm:$0xff]
    %v2003 = vld [vmem:[%s1997 + $0x28] sm:$0xff]
    %v2004 = vld [vmem:[%s1997 + $0x30] sm:$0xff]
    %v2005 = vld [vmem:[%s1997 + $0x38] sm:$0xff]
    %v2006 = vld [vmem:[%s1997 + $0x40] sm:$0xff]
    %v2007 = vld [vmem:[%s1997 + $0x48] sm:$0xff]
    %v2008 = vld [vmem:[%s1997 + $0x50] sm:$0xff]
    %v2009 = vld [vmem:[%s1997 + $0x58] sm:$0xff]
    %v2010 = vld [vmem:[%s1997 + $0x60] sm:$0xff]
    %v2011 = vld [vmem:[%s1997 + $0x68] sm:$0xff]
    %v2012 = vld [vmem:[%s1997 + $0x70] sm:$0xff]
    %v2013 = vld [vmem:[%s1997 + $0x78] sm:$0xff]
    %v2014 = vld [vmem:[%s1997 + $0x80] sm:$0xff]
    %v2015 = vld [vmem:[%s1997 + $0x88] sm:$0xff]
    %v2016 = vld [vmem:[%s1997 + $0x90] sm:$0xff]
    %v2017 = vld [vmem:[%s1997 + $0x98] sm:$0xff]
    %v2018 = vld [vmem:[%s1997 + $0xa0] sm:$0xff]
    %v2019 = vld [vmem:[%s1997 + $0xa8] sm:$0xff]
    %v2020 = vld [vmem:[%s1997 + $0xb0] sm:$0xff]
    %v2021 = vld [vmem:[%s1997 + $0xb8] sm:$0xff]
    %v2022 = vld [vmem:[%s1997 + $0xc0] sm:$0xff]
    %v2023 = vld [vmem:[%s1997 + $0xc8] sm:$0xff]
    %v2024 = vld [vmem:[%s1997 + $0xd0] sm:$0xff]
    %v2025 = vld [vmem:[%s1997 + $0xd8] sm:$0xff]
    %v2026 = vld [vmem:[%s1997 + $0xe0] sm:$0xff]
    %v2027 = vld [vmem:[%s1997 + $0xe8] sm:$0xff]
    %v2028 = vld [vmem:[%s1997 + $0xf0] sm:$0xff]
    %v2029 = vld [vmem:[%s1997 + $0xf8] sm:$0xff]
    %v2030 = vld [vmem:[%s1997 + $0x100] sm:$0xff]
    %v2031 = vld [vmem:[%s1997 + $0x108] sm:$0xff]
    %v2032 = vld [vmem:[%s1997 + $0x110] sm:$0xff]
    %v2033 = vld [vmem:[%s1997 + $0x118] sm:$0xff]
    %v2034 = vld [vmem:[%s1997 + $0x120] sm:$0xff]
    %v2035 = vld [vmem:[%s1997 + $0x128] sm:$0xff]
    %v2036 = vld [vmem:[%s1997 + $0x130] sm:$0xff]
    %v2037 = vld [vmem:[%s1997 + $0x138] sm:$0xff]
    %v2038 = vld [vmem:[%s1997 + $0x140] sm:$0xff]
    %v2039 = vld [vmem:[%s1997 + $0x148] sm:$0xff]
    %v2040 = vld [vmem:[%s1997 + $0x150] sm:$0xff]
    %v2041 = vld [vmem:[%s1997 + $0x158] sm:$0xff]
    %v2042 = vld [vmem:[%s1997 + $0x160] sm:$0xff]
    %v2043 = vld [vmem:[%s1997 + $0x168] sm:$0xff]
    %v2044 = vld [vmem:[%s1997 + $0x170] sm:$0xff]
    %v2045 = vld [vmem:[%s1997 + $0x178] sm:$0xff]
    %v2046 = vld [vmem:[%s1997 + $0x180] sm:$0xff]
    %v2047 = vld [vmem:[%s1997 + $0x188] sm:$0xff]
    %v2048 = vld [vmem:[%s1997 + $0x190] sm:$0xff]
    %v2049 = vld [vmem:[%s1997 + $0x198] sm:$0xff]
    %v2050 = vld [vmem:[%s1997 + $0x1a0] sm:$0xff]
    %v2051 = vld [vmem:[%s1997 + $0x1a8] sm:$0xff]
    %v2052 = vld [vmem:[%s1997 + $0x1b0] sm:$0xff]
    %v2053 = vld [vmem:[%s1997 + $0x1b8] sm:$0xff]
    %v2054 = vld [vmem:[%s1997 + $0x1c0] sm:$0xff]
    %v2055 = vld [vmem:[%s1997 + $0x1c8] sm:$0xff]
    %v2056 = vld [vmem:[%s1997 + $0x1d0] sm:$0xff]
    %v2057 = vld [vmem:[%s1997 + $0x1d8] sm:$0xff]
    %v2058 = vld [vmem:[%s1997 + $0x1e0] sm:$0xff]
    %v2059 = vld [vmem:[%s1997 + $0x1e8] sm:$0xff]
    %v2060 = vld [vmem:[%s1997 + $0x1f0] sm:$0xff]
    %v2061 = vld [vmem:[%s1997 + $0x1f8] sm:$0xff]
    %v2062 = vld [vmem:[%s1997 + $0x200] sm:$0xff]
    %v2063 = vld [vmem:[%s1997 + $0x208] sm:$0xff]
    %v2064 = vld [vmem:[%s1997 + $0x210] sm:$0xff]
    %v2065 = vld [vmem:[%s1997 + $0x218] sm:$0xff]
    %v2066 = vld [vmem:[%s1997 + $0x220] sm:$0xff]
    %v2067 = vld [vmem:[%s1997 + $0x228] sm:$0xff]
    %v2068 = vld [vmem:[%s1997 + $0x230] sm:$0xff]
    %v2069 = vld [vmem:[%s1997 + $0x238] sm:$0xff]
    %v2070 = vld [vmem:[%s1997 + $0x240] sm:$0xff]
    %v2071 = vld [vmem:[%s1997 + $0x248] sm:$0xff]
    %v2072 = vld [vmem:[%s1997 + $0x250] sm:$0xff]
    %v2073 = vld [vmem:[%s1997 + $0x258] sm:$0xff]
    %v2074 = vld [vmem:[%s1997 + $0x260] sm:$0xff]
    %v2075 = vld [vmem:[%s1997 + $0x268] sm:$0xff]
    %v2076 = vld [vmem:[%s1997 + $0x270] sm:$0xff]
    %v2077 = vld [vmem:[%s1997 + $0x278] sm:$0xff]
    %v2078 = vld [vmem:[%s1997 + $0x280] sm:$0xff]
    %v2079 = vld [vmem:[%s1997 + $0x288] sm:$0xff]
    %v2080 = vld [vmem:[%s1997 + $0x290] sm:$0xff]
    %v2081 = vld [vmem:[%s1997 + $0x298] sm:$0xff]
    %v2082 = vld [vmem:[%s1997 + $0x2a0] sm:$0xff]
    %v2083 = vld [vmem:[%s1997 + $0x2a8] sm:$0xff]
    %v2084 = vld [vmem:[%s1997 + $0x2b0] sm:$0xff]
    %v2085 = vld [vmem:[%s1997 + $0x2b8] sm:$0xff]
    %v2086 = vld [vmem:[%s1997 + $0x2c0] sm:$0xff]
    %v2087 = vld [vmem:[%s1997 + $0x2c8] sm:$0xff]
    %v2088 = vld [vmem:[%s1997 + $0x2d0] sm:$0xff]
    %v2089 = vld [vmem:[%s1997 + $0x2d8] sm:$0xff]
    %v2090 = vld [vmem:[%s1997 + $0x2e0] sm:$0xff]
    %v2091 = vld [vmem:[%s1997 + $0x2e8] sm:$0xff]
    %v2092 = vld [vmem:[%s1997 + $0x2f0] sm:$0xff]
    %v2093 = vld [vmem:[%s1997 + $0x2f8] sm:$0xff]
    %v2094 = vld [vmem:[%s1997 + $0x300] sm:$0xff]
    %v2095 = vld [vmem:[%s1997 + $0x308] sm:$0xff]
    %v2096 = vld [vmem:[%s1997 + $0x310] sm:$0xff]
    %v2097 = vld [vmem:[%s1997 + $0x318] sm:$0xff]
    %v2098 = vld [vmem:[%s1997 + $0x320] sm:$0xff]
    %v2099 = vld [vmem:[%s1997 + $0x328] sm:$0xff]
    %v2100 = vld [vmem:[%s1997 + $0x330] sm:$0xff]
    %v2101 = vld [vmem:[%s1997 + $0x338] sm:$0xff]
    %v2102 = vld [vmem:[%s1997 + $0x340] sm:$0xff]
    %v2103 = vld [vmem:[%s1997 + $0x348] sm:$0xff]
    %v2104 = vld [vmem:[%s1997 + $0x350] sm:$0xff]
    %v2105 = vld [vmem:[%s1997 + $0x358] sm:$0xff]
    %v2106 = vld [vmem:[%s1997 + $0x360] sm:$0xff]
    %v2107 = vld [vmem:[%s1997 + $0x368] sm:$0xff]
    %v2108 = vld [vmem:[%s1997 + $0x370] sm:$0xff]
    %v2109 = vld [vmem:[%s1997 + $0x378] sm:$0xff]
    %v2110 = vld [vmem:[%s1997 + $0x380] sm:$0xff]
    %v2111 = vld [vmem:[%s1997 + $0x388] sm:$0xff]
    %v2112 = vld [vmem:[%s1997 + $0x390] sm:$0xff]
    %v2113 = vld [vmem:[%s1997 + $0x398] sm:$0xff]
    %v2114 = vld [vmem:[%s1997 + $0x3a0] sm:$0xff]
    %v2115 = vld [vmem:[%s1997 + $0x3a8] sm:$0xff]
    %v2116 = vld [vmem:[%s1997 + $0x3b0] sm:$0xff]
    %v2117 = vld [vmem:[%s1997 + $0x3b8] sm:$0xff]
    %v2118 = vld [vmem:[%s1997 + $0x3c0] sm:$0xff]
    %v2119 = vld [vmem:[%s1997 + $0x3c8] sm:$0xff]
    %v2120 = vld [vmem:[%s1997 + $0x3d0] sm:$0xff]
    %v2121 = vld [vmem:[%s1997 + $0x3d8] sm:$0xff]
    %v2122 = vld [vmem:[%s1997 + $0x3e0] sm:$0xff]
    %v2123 = vld [vmem:[%s1997 + $0x3e8] sm:$0xff]
    %v2124 = vld [vmem:[%s1997 + $0x3f0] sm:$0xff]
    %v2125 = vld [vmem:[%s1997 + $0x3f8] sm:$0xff]
    %s2126 = scalar_lea.vmem %s2, 4
    %v2127 = vld [vmem:[%s2126] sm:$0xf]
    %v2128 = vld [vmem:[#allocation2] sm:$0xff]
    %v2130 = vperm.slane %v2127, 0
    %v2131 = vperm.slane %v2127, 1
    %v2132 = vperm.slane %v2127, 2
    %v2133 = vperm.slane %v2127, 3
    %2138 = vmatpush.msra.mxu0 %v2058
    %2139 = vmatpush.msra.mxu0 %v2054
    %2140 = vmatpush.msra.mxu0 %v2050
    %2141 = vmatpush.msra.mxu0 %v2046
    %2142 = vmatpush.msra.mxu0 %v2042
    %2143 = vmatpush.msra.mxu0 %v2038
    %2144 = vmatpush.msra.mxu0 %v2034
    %2145 = vmatpush.msra.mxu0 %v2030
    %2146 = vmatpush.msra.mxu0 %v2026
    %2147 = vmatpush.msra.mxu0 %v2022
    %2148 = vmatpush.msra.mxu0 %v2018
    %2149 = vmatpush.msra.mxu0 %v2014
    %2150 = vmatpush.msra.mxu0 %v2010
    %2151 = vmatpush.msra.mxu0 %v2006
    %2152 = vmatpush.msra.mxu0 %v2002
    %2153 = vmatpush.msra.mxu0 %v1998
    %2154 = vmatmul.f32.gmra.mxu0 %v2128
    %v2155 = vpop.f32.mrf.mxu0
    %v2156 = vadd.f32 %v2130, %v2155
    %2157 = vdwg.mxu0
    %2158 = vmatpush.msra.mxu0 %v2122
    %2159 = vmatpush.msra.mxu0 %v2118
    %2160 = vmatpush.msra.mxu0 %v2114
    %2161 = vmatpush.msra.mxu0 %v2110
    %2162 = vmatpush.msra.mxu0 %v2106
    %2163 = vmatpush.msra.mxu0 %v2102
    %2164 = vmatpush.msra.mxu0 %v2098
    %2165 = vmatpush.msra.mxu0 %v2094
    %2166 = vmatpush.msra.mxu0 %v2090
    %2167 = vmatpush.msra.mxu0 %v2086
    %2168 = vmatpush.msra.mxu0 %v2082
    %2169 = vmatpush.msra.mxu0 %v2078
    %2170 = vmatpush.msra.mxu0 %v2074
    %2171 = vmatpush.msra.mxu0 %v2070
    %2172 = vmatpush.msra.mxu0 %v2066
    %2173 = vmatpush.msra.mxu0 %v2062
    %2174 = vmatmul.f32.gmra.mxu0 0.0
    %v2175 = vpop.f32.mrf.mxu0
    %v2176 = vadd.f32 %v2156, %v2175
    %2177 = vdwg.mxu0
    %2178 = vmatpush.msra.mxu0 %v2059
    %2179 = vmatpush.msra.mxu0 %v2055
    %2180 = vmatpush.msra.mxu0 %v2051
    %2181 = vmatpush.msra.mxu0 %v2047
    %2182 = vmatpush.msra.mxu0 %v2043
    %2183 = vmatpush.msra.mxu0 %v2039
    %2184 = vmatpush.msra.mxu0 %v2035
    %2185 = vmatpush.msra.mxu0 %v2031
    %2186 = vmatpush.msra.mxu0 %v2027
    %2187 = vmatpush.msra.mxu0 %v2023
    %2188 = vmatpush.msra.mxu0 %v2019
    %2189 = vmatpush.msra.mxu0 %v2015
    %2190 = vmatpush.msra.mxu0 %v2011
    %2191 = vmatpush.msra.mxu0 %v2007
    %2192 = vmatpush.msra.mxu0 %v2003
    %2193 = vmatpush.msra.mxu0 %v1999
    %2194 = vmatmul.f32.gmra.mxu0 %v2128
    %v2195 = vpop.f32.mrf.mxu0
    %v2196 = vadd.f32 %v2131, %v2195
    %2197 = vdwg.mxu0
    %2198 = vmatpush.msra.mxu0 %v2123
    %2199 = vmatpush.msra.mxu0 %v2119
    %2200 = vmatpush.msra.mxu0 %v2115
    %2201 = vmatpush.msra.mxu0 %v2111
    %2202 = vmatpush.msra.mxu0 %v2107
    %2203 = vmatpush.msra.mxu0 %v2103
    %2204 = vmatpush.msra.mxu0 %v2099
    %2205 = vmatpush.msra.mxu0 %v2095
    %2206 = vmatpush.msra.mxu0 %v2091
    %2207 = vmatpush.msra.mxu0 %v2087
    %2208 = vmatpush.msra.mxu0 %v2083
    %2209 = vmatpush.msra.mxu0 %v2079
    %2210 = vmatpush.msra.mxu0 %v2075
    %2211 = vmatpush.msra.mxu0 %v2071
    %2212 = vmatpush.msra.mxu0 %v2067
    %2213 = vmatpush.msra.mxu0 %v2063
    %2214 = vmatmul.f32.gmra.mxu0 0.0
    %v2215 = vpop.f32.mrf.mxu0
    %v2216 = vadd.f32 %v2196, %v2215
    %2217 = vdwg.mxu0
    %2218 = vmatpush.msra.mxu0 %v2060
    %2219 = vmatpush.msra.mxu0 %v2056
    %2220 = vmatpush.msra.mxu0 %v2052
    %2221 = vmatpush.msra.mxu0 %v2048
    %2222 = vmatpush.msra.mxu0 %v2044
    %2223 = vmatpush.msra.mxu0 %v2040
    %2224 = vmatpush.msra.mxu0 %v2036
    %2225 = vmatpush.msra.mxu0 %v2032
    %2226 = vmatpush.msra.mxu0 %v2028
    %2227 = vmatpush.msra.mxu0 %v2024
    %2228 = vmatpush.msra.mxu0 %v2020
    %2229 = vmatpush.msra.mxu0 %v2016
    %2230 = vmatpush.msra.mxu0 %v2012
    %2231 = vmatpush.msra.mxu0 %v2008
    %2232 = vmatpush.msra.mxu0 %v2004
    %2233 = vmatpush.msra.mxu0 %v2000
    %2234 = vmatmul.f32.gmra.mxu0 %v2128
    %v2235 = vpop.f32.mrf.mxu0
    %v2236 = vadd.f32 %v2132, %v2235
    %2237 = vdwg.mxu0
    %2238 = vmatpush.msra.mxu0 %v2124
    %2239 = vmatpush.msra.mxu0 %v2120
    %2240 = vmatpush.msra.mxu0 %v2116
    %2241 = vmatpush.msra.mxu0 %v2112
    %2242 = vmatpush.msra.mxu0 %v2108
    %2243 = vmatpush.msra.mxu0 %v2104
    %2244 = vmatpush.msra.mxu0 %v2100
    %2245 = vmatpush.msra.mxu0 %v2096
    %2246 = vmatpush.msra.mxu0 %v2092
    %2247 = vmatpush.msra.mxu0 %v2088
    %2248 = vmatpush.msra.mxu0 %v2084
    %2249 = vmatpush.msra.mxu0 %v2080
    %2250 = vmatpush.msra.mxu0 %v2076
    %2251 = vmatpush.msra.mxu0 %v2072
    %2252 = vmatpush.msra.mxu0 %v2068
    %2253 = vmatpush.msra.mxu0 %v2064
    %2254 = vmatmul.f32.gmra.mxu0 0.0
    %v2255 = vpop.f32.mrf.mxu0
    %v2256 = vadd.f32 %v2236, %v2255
    %2257 = vdwg.mxu0
    %2258 = vmatpush.msra.mxu0 %v2061
    %2259 = vmatpush.msra.mxu0 %v2057
    %2260 = vmatpush.msra.mxu0 %v2053
    %2261 = vmatpush.msra.mxu0 %v2049
    %2262 = vmatpush.msra.mxu0 %v2045
    %2263 = vmatpush.msra.mxu0 %v2041
    %2264 = vmatpush.msra.mxu0 %v2037
    %2265 = vmatpush.msra.mxu0 %v2033
    %2266 = vmatpush.msra.mxu0 %v2029
    %2267 = vmatpush.msra.mxu0 %v2025
    %2268 = vmatpush.msra.mxu0 %v2021
    %2269 = vmatpush.msra.mxu0 %v2017
    %2270 = vmatpush.msra.mxu0 %v2013
    %2271 = vmatpush.msra.mxu0 %v2009
    %2272 = vmatpush.msra.mxu0 %v2005
    %2273 = vmatpush.msra.mxu0 %v2001
    %2274 = vmatmul.f32.gmra.mxu0 %v2128
    %v2275 = vpop.f32.mrf.mxu0
    %v2276 = vadd.f32 %v2133, %v2275
    %2277 = vdwg.mxu0
    %2278 = vmatpush.msra.mxu0 %v2125
    %2279 = vmatpush.msra.mxu0 %v2121
    %2280 = vmatpush.msra.mxu0 %v2117
    %2281 = vmatpush.msra.mxu0 %v2113
    %2282 = vmatpush.msra.mxu0 %v2109
    %2283 = vmatpush.msra.mxu0 %v2105
    %2284 = vmatpush.msra.mxu0 %v2101
    %2285 = vmatpush.msra.mxu0 %v2097
    %2286 = vmatpush.msra.mxu0 %v2093
    %2287 = vmatpush.msra.mxu0 %v2089
    %2288 = vmatpush.msra.mxu0 %v2085
    %2289 = vmatpush.msra.mxu0 %v2081
    %2290 = vmatpush.msra.mxu0 %v2077
    %2291 = vmatpush.msra.mxu0 %v2073
    %2292 = vmatpush.msra.mxu0 %v2069
    %2293 = vmatpush.msra.mxu0 %v2065
    %2294 = vmatmul.f32.gmra.mxu0 0.0
    %v2295 = vpop.f32.mrf.mxu0
    %v2296 = vadd.f32 %v2276, %v2295
    %2297 = vdwg.mxu0
    %v2298 = vxor.u32 %v2176, 2147483648
    %v2299 = vmul.f32 %v2298, 1.442695
    %v2300 = vpow.pop %v2299
    %v2301 = vadd.f32 %v2300, 1.0
    %v2302 = vrcp.pop %v2301
    %v2303 = vmul.f32 %v2301, %v2302
    %v2304 = vsub.f32 1.0, %v2303
    %v2305 = vmul.f32 %v2302, %v2304
    %v2306 = vadd.f32 %v2302, %v2305
    %vm2307 = vweird.f32 %v2301
    %vm2308 = vweird.f32 %v2302
    %vm2309 = vmor %vm2307, %vm2308
    %v2310 = vsel %vm2309, %v2302, %v2306
    %v2311 = vand.u32 2147483647, %v2301
    %vm2312 = vcmp.eq.f32.partialorder %v2311, 8.507059e+37
    %v2313 = vand.u32 %v2301, 2147483648
    %v2314 = vor.u32 1.1754944e-38, %v2313
    %v2315 = vsel %vm2312, %v2314, %v2310
    %v2316 = vmul.f32 1.0, %v2315
    %v2317 = vxor.u32 %v2216, 2147483648
    %v2318 = vmul.f32 %v2317, 1.442695
    %v2319 = vpow.pop %v2318
    %v2320 = vadd.f32 %v2319, 1.0
    %v2321 = vrcp.pop %v2320
    %v2322 = vmul.f32 %v2320, %v2321
    %v2323 = vsub.f32 1.0, %v2322
    %v2324 = vmul.f32 %v2321, %v2323
    %v2325 = vadd.f32 %v2321, %v2324
    %vm2326 = vweird.f32 %v2320
    %vm2327 = vweird.f32 %v2321
    %vm2328 = vmor %vm2326, %vm2327
    %v2329 = vsel %vm2328, %v2321, %v2325
    %v2330 = vand.u32 2147483647, %v2320
    %vm2331 = vcmp.eq.f32.partialorder %v2330, 8.507059e+37
    %v2332 = vand.u32 %v2320, 2147483648
    %v2333 = vor.u32 1.1754944e-38, %v2332
    %v2334 = vsel %vm2331, %v2333, %v2329
    %v2335 = vmul.f32 1.0, %v2334
    %v2336 = vtanh.pop %v2256
    %v2337 = vxor.u32 %v2296, 2147483648
    %v2338 = vmul.f32 %v2337, 1.442695
    %v2339 = vpow.pop %v2338
    %v2340 = vadd.f32 %v2339, 1.0
    %v2341 = vrcp.pop %v2340
    %v2342 = vmul.f32 %v2340, %v2341
    %v2343 = vsub.f32 1.0, %v2342
    %v2344 = vmul.f32 %v2341, %v2343
    %v2345 = vadd.f32 %v2341, %v2344
    %vm2346 = vweird.f32 %v2340
    %vm2347 = vweird.f32 %v2341
    %vm2348 = vmor %vm2346, %vm2347
    %v2349 = vsel %vm2348, %v2341, %v2345
    %v2350 = vand.u32 2147483647, %v2340
    %vm2351 = vcmp.eq.f32.partialorder %v2350, 8.507059e+37
    %v2352 = vand.u32 %v2340, 2147483648
    %v2353 = vor.u32 1.1754944e-38, %v2352
    %v2354 = vsel %vm2351, %v2353, %v2349
    %v2355 = vmul.f32 1.0, %v2354
    %v2356 = vmul.f32 %v2335, 0.0
    %v2357 = vmul.f32 %v2316, %v2336
    %v2358 = vadd.f32 %v2356, %v2357
    %v2359 = vtanh.pop %v2358
    %v2360 = vmul.f32 %v2355, %v2359
    %2361 = vst [vmem:[#allocation2] sm:$0xff] %v2360
    %v2362 = vld [vmem:[%s415] sm:$0xff]
    %2363 = vmatpush.msra.mxu0 %v2058
    %2364 = vmatpush.msra.mxu0 %v2054
    %2365 = vmatpush.msra.mxu0 %v2050
    %2366 = vmatpush.msra.mxu0 %v2046
    %2367 = vmatpush.msra.mxu0 %v2042
    %2368 = vmatpush.msra.mxu0 %v2038
    %2369 = vmatpush.msra.mxu0 %v2034
    %2370 = vmatpush.msra.mxu0 %v2030
    %2371 = vmatpush.msra.mxu0 %v2026
    %2372 = vmatpush.msra.mxu0 %v2022
    %2373 = vmatpush.msra.mxu0 %v2018
    %2374 = vmatpush.msra.mxu0 %v2014
    %2375 = vmatpush.msra.mxu0 %v2010
    %2376 = vmatpush.msra.mxu0 %v2006
    %2377 = vmatpush.msra.mxu0 %v2002
    %2378 = vmatpush.msra.mxu0 %v1998
    %2379 = vmatmul.f32.gmra.mxu0 %v2362
    %v2380 = vpop.f32.mrf.mxu0
    %v2381 = vadd.f32 %v2130, %v2380
    %2382 = vdwg.mxu0
    %2383 = vmatpush.msra.mxu0 %v2122
    %2384 = vmatpush.msra.mxu0 %v2118
    %2385 = vmatpush.msra.mxu0 %v2114
    %2386 = vmatpush.msra.mxu0 %v2110
    %2387 = vmatpush.msra.mxu0 %v2106
    %2388 = vmatpush.msra.mxu0 %v2102
    %2389 = vmatpush.msra.mxu0 %v2098
    %2390 = vmatpush.msra.mxu0 %v2094
    %2391 = vmatpush.msra.mxu0 %v2090
    %2392 = vmatpush.msra.mxu0 %v2086
    %2393 = vmatpush.msra.mxu0 %v2082
    %2394 = vmatpush.msra.mxu0 %v2078
    %2395 = vmatpush.msra.mxu0 %v2074
    %2396 = vmatpush.msra.mxu0 %v2070
    %2397 = vmatpush.msra.mxu0 %v2066
    %2398 = vmatpush.msra.mxu0 %v2062
    %2399 = vmatmul.f32.gmra.mxu0 %v2360
    %v2400 = vpop.f32.mrf.mxu0
    %v2401 = vadd.f32 %v2381, %v2400
    %2402 = vdwg.mxu0
    %2403 = vmatpush.msra.mxu0 %v2059
    %2404 = vmatpush.msra.mxu0 %v2055
    %2405 = vmatpush.msra.mxu0 %v2051
    %2406 = vmatpush.msra.mxu0 %v2047
    %2407 = vmatpush.msra.mxu0 %v2043
    %2408 = vmatpush.msra.mxu0 %v2039
    %2409 = vmatpush.msra.mxu0 %v2035
    %2410 = vmatpush.msra.mxu0 %v2031
    %2411 = vmatpush.msra.mxu0 %v2027
    %2412 = vmatpush.msra.mxu0 %v2023
    %2413 = vmatpush.msra.mxu0 %v2019
    %2414 = vmatpush.msra.mxu0 %v2015
    %2415 = vmatpush.msra.mxu0 %v2011
    %2416 = vmatpush.msra.mxu0 %v2007
    %2417 = vmatpush.msra.mxu0 %v2003
    %2418 = vmatpush.msra.mxu0 %v1999
    %2419 = vmatmul.f32.gmra.mxu0 %v2362
    %v2420 = vpop.f32.mrf.mxu0
    %v2421 = vadd.f32 %v2131, %v2420
    %2422 = vdwg.mxu0
    %2423 = vmatpush.msra.mxu0 %v2123
    %2424 = vmatpush.msra.mxu0 %v2119
    %2425 = vmatpush.msra.mxu0 %v2115
    %2426 = vmatpush.msra.mxu0 %v2111
    %2427 = vmatpush.msra.mxu0 %v2107
    %2428 = vmatpush.msra.mxu0 %v2103
    %2429 = vmatpush.msra.mxu0 %v2099
    %2430 = vmatpush.msra.mxu0 %v2095
    %2431 = vmatpush.msra.mxu0 %v2091
    %2432 = vmatpush.msra.mxu0 %v2087
    %2433 = vmatpush.msra.mxu0 %v2083
    %2434 = vmatpush.msra.mxu0 %v2079
    %2435 = vmatpush.msra.mxu0 %v2075
    %2436 = vmatpush.msra.mxu0 %v2071
    %2437 = vmatpush.msra.mxu0 %v2067
    %2438 = vmatpush.msra.mxu0 %v2063
    %2439 = vmatmul.f32.gmra.mxu0 %v2360
    %v2440 = vpop.f32.mrf.mxu0
    %v2441 = vadd.f32 %v2421, %v2440
    %2442 = vdwg.mxu0
    %2443 = vmatpush.msra.mxu0 %v2060
    %2444 = vmatpush.msra.mxu0 %v2056
    %2445 = vmatpush.msra.mxu0 %v2052
    %2446 = vmatpush.msra.mxu0 %v2048
    %2447 = vmatpush.msra.mxu0 %v2044
    %2448 = vmatpush.msra.mxu0 %v2040
    %2449 = vmatpush.msra.mxu0 %v2036
    %2450 = vmatpush.msra.mxu0 %v2032
    %2451 = vmatpush.msra.mxu0 %v2028
    %2452 = vmatpush.msra.mxu0 %v2024
    %2453 = vmatpush.msra.mxu0 %v2020
    %2454 = vmatpush.msra.mxu0 %v2016
    %2455 = vmatpush.msra.mxu0 %v2012
    %2456 = vmatpush.msra.mxu0 %v2008
    %2457 = vmatpush.msra.mxu0 %v2004
    %2458 = vmatpush.msra.mxu0 %v2000
    %2459 = vmatmul.f32.gmra.mxu0 %v2362
    %v2460 = vpop.f32.mrf.mxu0
    %v2461 = vadd.f32 %v2132, %v2460
    %2462 = vdwg.mxu0
    %2463 = vmatpush.msra.mxu0 %v2124
    %2464 = vmatpush.msra.mxu0 %v2120
    %2465 = vmatpush.msra.mxu0 %v2116
    %2466 = vmatpush.msra.mxu0 %v2112
    %2467 = vmatpush.msra.mxu0 %v2108
    %2468 = vmatpush.msra.mxu0 %v2104
    %2469 = vmatpush.msra.mxu0 %v2100
    %2470 = vmatpush.msra.mxu0 %v2096
    %2471 = vmatpush.msra.mxu0 %v2092
    %2472 = vmatpush.msra.mxu0 %v2088
    %2473 = vmatpush.msra.mxu0 %v2084
    %2474 = vmatpush.msra.mxu0 %v2080
    %2475 = vmatpush.msra.mxu0 %v2076
    %2476 = vmatpush.msra.mxu0 %v2072
    %2477 = vmatpush.msra.mxu0 %v2068
    %2478 = vmatpush.msra.mxu0 %v2064
    %2479 = vmatmul.f32.gmra.mxu0 %v2360
    %v2480 = vpop.f32.mrf.mxu0
    %v2481 = vadd.f32 %v2461, %v2480
    %2482 = vdwg.mxu0
    %2483 = vmatpush.msra.mxu0 %v2061
    %2484 = vmatpush.msra.mxu0 %v2057
    %2485 = vmatpush.msra.mxu0 %v2053
    %2486 = vmatpush.msra.mxu0 %v2049
    %2487 = vmatpush.msra.mxu0 %v2045
    %2488 = vmatpush.msra.mxu0 %v2041
    %2489 = vmatpush.msra.mxu0 %v2037
    %2490 = vmatpush.msra.mxu0 %v2033
    %2491 = vmatpush.msra.mxu0 %v2029
    %2492 = vmatpush.msra.mxu0 %v2025
    %2493 = vmatpush.msra.mxu0 %v2021
    %2494 = vmatpush.msra.mxu0 %v2017
    %2495 = vmatpush.msra.mxu0 %v2013
    %2496 = vmatpush.msra.mxu0 %v2009
    %2497 = vmatpush.msra.mxu0 %v2005
    %2498 = vmatpush.msra.mxu0 %v2001
    %2499 = vmatmul.f32.gmra.mxu0 %v2362
    %v2500 = vpop.f32.mrf.mxu0
    %v2501 = vadd.f32 %v2133, %v2500
    %2502 = vdwg.mxu0
    %2503 = vmatpush.msra.mxu0 %v2125
    %2504 = vmatpush.msra.mxu0 %v2121
    %2505 = vmatpush.msra.mxu0 %v2117
    %2506 = vmatpush.msra.mxu0 %v2113
    %2507 = vmatpush.msra.mxu0 %v2109
    %2508 = vmatpush.msra.mxu0 %v2105
    %2509 = vmatpush.msra.mxu0 %v2101
    %2510 = vmatpush.msra.mxu0 %v2097
    %2511 = vmatpush.msra.mxu0 %v2093
    %2512 = vmatpush.msra.mxu0 %v2089
    %2513 = vmatpush.msra.mxu0 %v2085
    %2514 = vmatpush.msra.mxu0 %v2081
    %2515 = vmatpush.msra.mxu0 %v2077
    %2516 = vmatpush.msra.mxu0 %v2073
    %2517 = vmatpush.msra.mxu0 %v2069
    %2518 = vmatpush.msra.mxu0 %v2065
    %2519 = vmatmul.f32.gmra.mxu0 %v2360
    %v2520 = vpop.f32.mrf.mxu0
    %v2521 = vadd.f32 %v2501, %v2520
    %2522 = vdwg.mxu0
    %v2523 = vxor.u32 %v2401, 2147483648
    %v2524 = vmul.f32 %v2523, 1.442695
    %v2525 = vpow.pop %v2524
    %v2526 = vadd.f32 %v2525, 1.0
    %v2527 = vrcp.pop %v2526
    %v2528 = vmul.f32 %v2526, %v2527
    %v2529 = vsub.f32 1.0, %v2528
    %v2530 = vmul.f32 %v2527, %v2529
    %v2531 = vadd.f32 %v2527, %v2530
    %vm2532 = vweird.f32 %v2526
    %vm2533 = vweird.f32 %v2527
    %vm2534 = vmor %vm2532, %vm2533
    %v2535 = vsel %vm2534, %v2527, %v2531
    %v2536 = vand.u32 2147483647, %v2526
    %vm2537 = vcmp.eq.f32.partialorder %v2536, 8.507059e+37
    %v2538 = vand.u32 %v2526, 2147483648
    %v2539 = vor.u32 1.1754944e-38, %v2538
    %v2540 = vsel %vm2537, %v2539, %v2535
    %v2541 = vmul.f32 1.0, %v2540
    %v2542 = vxor.u32 %v2441, 2147483648
    %v2543 = vmul.f32 %v2542, 1.442695
    %v2544 = vpow.pop %v2543
    %v2545 = vadd.f32 %v2544, 1.0
    %v2546 = vrcp.pop %v2545
    %v2547 = vmul.f32 %v2545, %v2546
    %v2548 = vsub.f32 1.0, %v2547
    %v2549 = vmul.f32 %v2546, %v2548
    %v2550 = vadd.f32 %v2546, %v2549
    %vm2551 = vweird.f32 %v2545
    %vm2552 = vweird.f32 %v2546
    %vm2553 = vmor %vm2551, %vm2552
    %v2554 = vsel %vm2553, %v2546, %v2550
    %v2555 = vand.u32 2147483647, %v2545
    %vm2556 = vcmp.eq.f32.partialorder %v2555, 8.507059e+37
    %v2557 = vand.u32 %v2545, 2147483648
    %v2558 = vor.u32 1.1754944e-38, %v2557
    %v2559 = vsel %vm2556, %v2558, %v2554
    %v2560 = vmul.f32 1.0, %v2559
    %v2561 = vtanh.pop %v2481
    %v2562 = vxor.u32 %v2521, 2147483648
    %v2563 = vmul.f32 %v2562, 1.442695
    %v2564 = vpow.pop %v2563
    %v2565 = vadd.f32 %v2564, 1.0
    %v2566 = vrcp.pop %v2565
    %v2567 = vmul.f32 %v2565, %v2566
    %v2568 = vsub.f32 1.0, %v2567
    %v2569 = vmul.f32 %v2566, %v2568
    %v2570 = vadd.f32 %v2566, %v2569
    %vm2571 = vweird.f32 %v2565
    %vm2572 = vweird.f32 %v2566
    %vm2573 = vmor %vm2571, %vm2572
    %v2574 = vsel %vm2573, %v2566, %v2570
    %v2575 = vand.u32 2147483647, %v2565
    %vm2576 = vcmp.eq.f32.partialorder %v2575, 8.507059e+37
    %v2577 = vand.u32 %v2565, 2147483648
    %v2578 = vor.u32 1.1754944e-38, %v2577
    %v2579 = vsel %vm2576, %v2578, %v2574
    %v2580 = vmul.f32 1.0, %v2579
    %v2581 = vmul.f32 %v2560, %v2358
    %v2582 = vmul.f32 %v2541, %v2561
    %v2583 = vadd.f32 %v2581, %v2582
    %v2584 = vtanh.pop %v2583
    %v2585 = vmul.f32 %v2580, %v2584
    %2586 = vst [vmem:[%s415] sm:$0xff] %v2585
    %v2587 = vld [vmem:[%s641] sm:$0xff]
    %2588 = vmatpush.msra.mxu0 %v2058
    %2589 = vmatpush.msra.mxu0 %v2054
    %2590 = vmatpush.msra.mxu0 %v2050
    %2591 = vmatpush.msra.mxu0 %v2046
    %2592 = vmatpush.msra.mxu0 %v2042
    %2593 = vmatpush.msra.mxu0 %v2038
    %2594 = vmatpush.msra.mxu0 %v2034
    %2595 = vmatpush.msra.mxu0 %v2030
    %2596 = vmatpush.msra.mxu0 %v2026
    %2597 = vmatpush.msra.mxu0 %v2022
    %2598 = vmatpush.msra.mxu0 %v2018
    %2599 = vmatpush.msra.mxu0 %v2014
    %2600 = vmatpush.msra.mxu0 %v2010
    %2601 = vmatpush.msra.mxu0 %v2006
    %2602 = vmatpush.msra.mxu0 %v2002
    %2603 = vmatpush.msra.mxu0 %v1998
    %2604 = vmatmul.f32.gmra.mxu0 %v2587
    %v2605 = vpop.f32.mrf.mxu0
    %v2606 = vadd.f32 %v2130, %v2605
    %2607 = vdwg.mxu0
    %2608 = vmatpush.msra.mxu0 %v2122
    %2609 = vmatpush.msra.mxu0 %v2118
    %2610 = vmatpush.msra.mxu0 %v2114
    %2611 = vmatpush.msra.mxu0 %v2110
    %2612 = vmatpush.msra.mxu0 %v2106
    %2613 = vmatpush.msra.mxu0 %v2102
    %2614 = vmatpush.msra.mxu0 %v2098
    %2615 = vmatpush.msra.mxu0 %v2094
    %2616 = vmatpush.msra.mxu0 %v2090
    %2617 = vmatpush.msra.mxu0 %v2086
    %2618 = vmatpush.msra.mxu0 %v2082
    %2619 = vmatpush.msra.mxu0 %v2078
    %2620 = vmatpush.msra.mxu0 %v2074
    %2621 = vmatpush.msra.mxu0 %v2070
    %2622 = vmatpush.msra.mxu0 %v2066
    %2623 = vmatpush.msra.mxu0 %v2062
    %2624 = vmatmul.f32.gmra.mxu0 %v2585
    %v2625 = vpop.f32.mrf.mxu0
    %v2626 = vadd.f32 %v2606, %v2625
    %2627 = vdwg.mxu0
    %2628 = vmatpush.msra.mxu0 %v2059
    %2629 = vmatpush.msra.mxu0 %v2055
    %2630 = vmatpush.msra.mxu0 %v2051
    %2631 = vmatpush.msra.mxu0 %v2047
    %2632 = vmatpush.msra.mxu0 %v2043
    %2633 = vmatpush.msra.mxu0 %v2039
    %2634 = vmatpush.msra.mxu0 %v2035
    %2635 = vmatpush.msra.mxu0 %v2031
    %2636 = vmatpush.msra.mxu0 %v2027
    %2637 = vmatpush.msra.mxu0 %v2023
    %2638 = vmatpush.msra.mxu0 %v2019
    %2639 = vmatpush.msra.mxu0 %v2015
    %2640 = vmatpush.msra.mxu0 %v2011
    %2641 = vmatpush.msra.mxu0 %v2007
    %2642 = vmatpush.msra.mxu0 %v2003
    %2643 = vmatpush.msra.mxu0 %v1999
    %2644 = vmatmul.f32.gmra.mxu0 %v2587
    %v2645 = vpop.f32.mrf.mxu0
    %v2646 = vadd.f32 %v2131, %v2645
    %2647 = vdwg.mxu0
    %2648 = vmatpush.msra.mxu0 %v2123
    %2649 = vmatpush.msra.mxu0 %v2119
    %2650 = vmatpush.msra.mxu0 %v2115
    %2651 = vmatpush.msra.mxu0 %v2111
    %2652 = vmatpush.msra.mxu0 %v2107
    %2653 = vmatpush.msra.mxu0 %v2103
    %2654 = vmatpush.msra.mxu0 %v2099
    %2655 = vmatpush.msra.mxu0 %v2095
    %2656 = vmatpush.msra.mxu0 %v2091
    %2657 = vmatpush.msra.mxu0 %v2087
    %2658 = vmatpush.msra.mxu0 %v2083
    %2659 = vmatpush.msra.mxu0 %v2079
    %2660 = vmatpush.msra.mxu0 %v2075
    %2661 = vmatpush.msra.mxu0 %v2071
    %2662 = vmatpush.msra.mxu0 %v2067
    %2663 = vmatpush.msra.mxu0 %v2063
    %2664 = vmatmul.f32.gmra.mxu0 %v2585
    %v2665 = vpop.f32.mrf.mxu0
    %v2666 = vadd.f32 %v2646, %v2665
    %2667 = vdwg.mxu0
    %2668 = vmatpush.msra.mxu0 %v2060
    %2669 = vmatpush.msra.mxu0 %v2056
    %2670 = vmatpush.msra.mxu0 %v2052
    %2671 = vmatpush.msra.mxu0 %v2048
    %2672 = vmatpush.msra.mxu0 %v2044
    %2673 = vmatpush.msra.mxu0 %v2040
    %2674 = vmatpush.msra.mxu0 %v2036
    %2675 = vmatpush.msra.mxu0 %v2032
    %2676 = vmatpush.msra.mxu0 %v2028
    %2677 = vmatpush.msra.mxu0 %v2024
    %2678 = vmatpush.msra.mxu0 %v2020
    %2679 = vmatpush.msra.mxu0 %v2016
    %2680 = vmatpush.msra.mxu0 %v2012
    %2681 = vmatpush.msra.mxu0 %v2008
    %2682 = vmatpush.msra.mxu0 %v2004
    %2683 = vmatpush.msra.mxu0 %v2000
    %2684 = vmatmul.f32.gmra.mxu0 %v2587
    %v2685 = vpop.f32.mrf.mxu0
    %v2686 = vadd.f32 %v2132, %v2685
    %2687 = vdwg.mxu0
    %2688 = vmatpush.msra.mxu0 %v2124
    %2689 = vmatpush.msra.mxu0 %v2120
    %2690 = vmatpush.msra.mxu0 %v2116
    %2691 = vmatpush.msra.mxu0 %v2112
    %2692 = vmatpush.msra.mxu0 %v2108
    %2693 = vmatpush.msra.mxu0 %v2104
    %2694 = vmatpush.msra.mxu0 %v2100
    %2695 = vmatpush.msra.mxu0 %v2096
    %2696 = vmatpush.msra.mxu0 %v2092
    %2697 = vmatpush.msra.mxu0 %v2088
    %2698 = vmatpush.msra.mxu0 %v2084
    %2699 = vmatpush.msra.mxu0 %v2080
    %2700 = vmatpush.msra.mxu0 %v2076
    %2701 = vmatpush.msra.mxu0 %v2072
    %2702 = vmatpush.msra.mxu0 %v2068
    %2703 = vmatpush.msra.mxu0 %v2064
    %2704 = vmatmul.f32.gmra.mxu0 %v2585
    %v2705 = vpop.f32.mrf.mxu0
    %v2706 = vadd.f32 %v2686, %v2705
    %2707 = vdwg.mxu0
    %2708 = vmatpush.msra.mxu0 %v2061
    %2709 = vmatpush.msra.mxu0 %v2057
    %2710 = vmatpush.msra.mxu0 %v2053
    %2711 = vmatpush.msra.mxu0 %v2049
    %2712 = vmatpush.msra.mxu0 %v2045
    %2713 = vmatpush.msra.mxu0 %v2041
    %2714 = vmatpush.msra.mxu0 %v2037
    %2715 = vmatpush.msra.mxu0 %v2033
    %2716 = vmatpush.msra.mxu0 %v2029
    %2717 = vmatpush.msra.mxu0 %v2025
    %2718 = vmatpush.msra.mxu0 %v2021
    %2719 = vmatpush.msra.mxu0 %v2017
    %2720 = vmatpush.msra.mxu0 %v2013
    %2721 = vmatpush.msra.mxu0 %v2009
    %2722 = vmatpush.msra.mxu0 %v2005
    %2723 = vmatpush.msra.mxu0 %v2001
    %2724 = vmatmul.f32.gmra.mxu0 %v2587
    %v2725 = vpop.f32.mrf.mxu0
    %v2726 = vadd.f32 %v2133, %v2725
    %2727 = vdwg.mxu0
    %2728 = vmatpush.msra.mxu0 %v2125
    %2729 = vmatpush.msra.mxu0 %v2121
    %2730 = vmatpush.msra.mxu0 %v2117
    %2731 = vmatpush.msra.mxu0 %v2113
    %2732 = vmatpush.msra.mxu0 %v2109
    %2733 = vmatpush.msra.mxu0 %v2105
    %2734 = vmatpush.msra.mxu0 %v2101
    %2735 = vmatpush.msra.mxu0 %v2097
    %2736 = vmatpush.msra.mxu0 %v2093
    %2737 = vmatpush.msra.mxu0 %v2089
    %2738 = vmatpush.msra.mxu0 %v2085
    %2739 = vmatpush.msra.mxu0 %v2081
    %2740 = vmatpush.msra.mxu0 %v2077
    %2741 = vmatpush.msra.mxu0 %v2073
    %2742 = vmatpush.msra.mxu0 %v2069
    %2743 = vmatpush.msra.mxu0 %v2065
    %2744 = vmatmul.f32.gmra.mxu0 %v2585
    %v2745 = vpop.f32.mrf.mxu0
    %v2746 = vadd.f32 %v2726, %v2745
    %2747 = vdwg.mxu0
    %v2748 = vxor.u32 %v2626, 2147483648
    %v2749 = vmul.f32 %v2748, 1.442695
    %v2750 = vpow.pop %v2749
    %v2751 = vadd.f32 %v2750, 1.0
    %v2752 = vrcp.pop %v2751
    %v2753 = vmul.f32 %v2751, %v2752
    %v2754 = vsub.f32 1.0, %v2753
    %v2755 = vmul.f32 %v2752, %v2754
    %v2756 = vadd.f32 %v2752, %v2755
    %vm2757 = vweird.f32 %v2751
    %vm2758 = vweird.f32 %v2752
    %vm2759 = vmor %vm2757, %vm2758
    %v2760 = vsel %vm2759, %v2752, %v2756
    %v2761 = vand.u32 2147483647, %v2751
    %vm2762 = vcmp.eq.f32.partialorder %v2761, 8.507059e+37
    %v2763 = vand.u32 %v2751, 2147483648
    %v2764 = vor.u32 1.1754944e-38, %v2763
    %v2765 = vsel %vm2762, %v2764, %v2760
    %v2766 = vmul.f32 1.0, %v2765
    %v2767 = vxor.u32 %v2666, 2147483648
    %v2768 = vmul.f32 %v2767, 1.442695
    %v2769 = vpow.pop %v2768
    %v2770 = vadd.f32 %v2769, 1.0
    %v2771 = vrcp.pop %v2770
    %v2772 = vmul.f32 %v2770, %v2771
    %v2773 = vsub.f32 1.0, %v2772
    %v2774 = vmul.f32 %v2771, %v2773
    %v2775 = vadd.f32 %v2771, %v2774
    %vm2776 = vweird.f32 %v2770
    %vm2777 = vweird.f32 %v2771
    %vm2778 = vmor %vm2776, %vm2777
    %v2779 = vsel %vm2778, %v2771, %v2775
    %v2780 = vand.u32 2147483647, %v2770
    %vm2781 = vcmp.eq.f32.partialorder %v2780, 8.507059e+37
    %v2782 = vand.u32 %v2770, 2147483648
    %v2783 = vor.u32 1.1754944e-38, %v2782
    %v2784 = vsel %vm2781, %v2783, %v2779
    %v2785 = vmul.f32 1.0, %v2784
    %v2786 = vtanh.pop %v2706
    %v2787 = vxor.u32 %v2746, 2147483648
    %v2788 = vmul.f32 %v2787, 1.442695
    %v2789 = vpow.pop %v2788
    %v2790 = vadd.f32 %v2789, 1.0
    %v2791 = vrcp.pop %v2790
    %v2792 = vmul.f32 %v2790, %v2791
    %v2793 = vsub.f32 1.0, %v2792
    %v2794 = vmul.f32 %v2791, %v2793
    %v2795 = vadd.f32 %v2791, %v2794
    %vm2796 = vweird.f32 %v2790
    %vm2797 = vweird.f32 %v2791
    %vm2798 = vmor %vm2796, %vm2797
    %v2799 = vsel %vm2798, %v2791, %v2795
    %v2800 = vand.u32 2147483647, %v2790
    %vm2801 = vcmp.eq.f32.partialorder %v2800, 8.507059e+37
    %v2802 = vand.u32 %v2790, 2147483648
    %v2803 = vor.u32 1.1754944e-38, %v2802
    %v2804 = vsel %vm2801, %v2803, %v2799
    %v2805 = vmul.f32 1.0, %v2804
    %v2806 = vmul.f32 %v2785, %v2583
    %v2807 = vmul.f32 %v2766, %v2786
    %v2808 = vadd.f32 %v2806, %v2807
    %v2809 = vtanh.pop %v2808
    %v2810 = vmul.f32 %v2805, %v2809
    %2811 = vst [vmem:[%s641] sm:$0xff] %v2810
    %v2812 = vld [vmem:[%s867] sm:$0xff]
    %2813 = vmatpush.msra.mxu0 %v2058
    %2814 = vmatpush.msra.mxu0 %v2054
    %2815 = vmatpush.msra.mxu0 %v2050
    %2816 = vmatpush.msra.mxu0 %v2046
    %2817 = vmatpush.msra.mxu0 %v2042
    %2818 = vmatpush.msra.mxu0 %v2038
    %2819 = vmatpush.msra.mxu0 %v2034
    %2820 = vmatpush.msra.mxu0 %v2030
    %2821 = vmatpush.msra.mxu0 %v2026
    %2822 = vmatpush.msra.mxu0 %v2022
    %2823 = vmatpush.msra.mxu0 %v2018
    %2824 = vmatpush.msra.mxu0 %v2014
    %2825 = vmatpush.msra.mxu0 %v2010
    %2826 = vmatpush.msra.mxu0 %v2006
    %2827 = vmatpush.msra.mxu0 %v2002
    %2828 = vmatpush.msra.mxu0 %v1998
    %2829 = vmatmul.f32.gmra.mxu0 %v2812
    %v2830 = vpop.f32.mrf.mxu0
    %v2831 = vadd.f32 %v2130, %v2830
    %2832 = vdwg.mxu0
    %2833 = vmatpush.msra.mxu0 %v2122
    %2834 = vmatpush.msra.mxu0 %v2118
    %2835 = vmatpush.msra.mxu0 %v2114
    %2836 = vmatpush.msra.mxu0 %v2110
    %2837 = vmatpush.msra.mxu0 %v2106
    %2838 = vmatpush.msra.mxu0 %v2102
    %2839 = vmatpush.msra.mxu0 %v2098
    %2840 = vmatpush.msra.mxu0 %v2094
    %2841 = vmatpush.msra.mxu0 %v2090
    %2842 = vmatpush.msra.mxu0 %v2086
    %2843 = vmatpush.msra.mxu0 %v2082
    %2844 = vmatpush.msra.mxu0 %v2078
    %2845 = vmatpush.msra.mxu0 %v2074
    %2846 = vmatpush.msra.mxu0 %v2070
    %2847 = vmatpush.msra.mxu0 %v2066
    %2848 = vmatpush.msra.mxu0 %v2062
    %2849 = vmatmul.f32.gmra.mxu0 %v2810
    %v2850 = vpop.f32.mrf.mxu0
    %v2851 = vadd.f32 %v2831, %v2850
    %2852 = vdwg.mxu0
    %2853 = vmatpush.msra.mxu0 %v2059
    %2854 = vmatpush.msra.mxu0 %v2055
    %2855 = vmatpush.msra.mxu0 %v2051
    %2856 = vmatpush.msra.mxu0 %v2047
    %2857 = vmatpush.msra.mxu0 %v2043
    %2858 = vmatpush.msra.mxu0 %v2039
    %2859 = vmatpush.msra.mxu0 %v2035
    %2860 = vmatpush.msra.mxu0 %v2031
    %2861 = vmatpush.msra.mxu0 %v2027
    %2862 = vmatpush.msra.mxu0 %v2023
    %2863 = vmatpush.msra.mxu0 %v2019
    %2864 = vmatpush.msra.mxu0 %v2015
    %2865 = vmatpush.msra.mxu0 %v2011
    %2866 = vmatpush.msra.mxu0 %v2007
    %2867 = vmatpush.msra.mxu0 %v2003
    %2868 = vmatpush.msra.mxu0 %v1999
    %2869 = vmatmul.f32.gmra.mxu0 %v2812
    %v2870 = vpop.f32.mrf.mxu0
    %v2871 = vadd.f32 %v2131, %v2870
    %2872 = vdwg.mxu0
    %2873 = vmatpush.msra.mxu0 %v2123
    %2874 = vmatpush.msra.mxu0 %v2119
    %2875 = vmatpush.msra.mxu0 %v2115
    %2876 = vmatpush.msra.mxu0 %v2111
    %2877 = vmatpush.msra.mxu0 %v2107
    %2878 = vmatpush.msra.mxu0 %v2103
    %2879 = vmatpush.msra.mxu0 %v2099
    %2880 = vmatpush.msra.mxu0 %v2095
    %2881 = vmatpush.msra.mxu0 %v2091
    %2882 = vmatpush.msra.mxu0 %v2087
    %2883 = vmatpush.msra.mxu0 %v2083
    %2884 = vmatpush.msra.mxu0 %v2079
    %2885 = vmatpush.msra.mxu0 %v2075
    %2886 = vmatpush.msra.mxu0 %v2071
    %2887 = vmatpush.msra.mxu0 %v2067
    %2888 = vmatpush.msra.mxu0 %v2063
    %2889 = vmatmul.f32.gmra.mxu0 %v2810
    %v2890 = vpop.f32.mrf.mxu0
    %v2891 = vadd.f32 %v2871, %v2890
    %2892 = vdwg.mxu0
    %2893 = vmatpush.msra.mxu0 %v2060
    %2894 = vmatpush.msra.mxu0 %v2056
    %2895 = vmatpush.msra.mxu0 %v2052
    %2896 = vmatpush.msra.mxu0 %v2048
    %2897 = vmatpush.msra.mxu0 %v2044
    %2898 = vmatpush.msra.mxu0 %v2040
    %2899 = vmatpush.msra.mxu0 %v2036
    %2900 = vmatpush.msra.mxu0 %v2032
    %2901 = vmatpush.msra.mxu0 %v2028
    %2902 = vmatpush.msra.mxu0 %v2024
    %2903 = vmatpush.msra.mxu0 %v2020
    %2904 = vmatpush.msra.mxu0 %v2016
    %2905 = vmatpush.msra.mxu0 %v2012
    %2906 = vmatpush.msra.mxu0 %v2008
    %2907 = vmatpush.msra.mxu0 %v2004
    %2908 = vmatpush.msra.mxu0 %v2000
    %2909 = vmatmul.f32.gmra.mxu0 %v2812
    %v2910 = vpop.f32.mrf.mxu0
    %v2911 = vadd.f32 %v2132, %v2910
    %2912 = vdwg.mxu0
    %2913 = vmatpush.msra.mxu0 %v2124
    %2914 = vmatpush.msra.mxu0 %v2120
    %2915 = vmatpush.msra.mxu0 %v2116
    %2916 = vmatpush.msra.mxu0 %v2112
    %2917 = vmatpush.msra.mxu0 %v2108
    %2918 = vmatpush.msra.mxu0 %v2104
    %2919 = vmatpush.msra.mxu0 %v2100
    %2920 = vmatpush.msra.mxu0 %v2096
    %2921 = vmatpush.msra.mxu0 %v2092
    %2922 = vmatpush.msra.mxu0 %v2088
    %2923 = vmatpush.msra.mxu0 %v2084
    %2924 = vmatpush.msra.mxu0 %v2080
    %2925 = vmatpush.msra.mxu0 %v2076
    %2926 = vmatpush.msra.mxu0 %v2072
    %2927 = vmatpush.msra.mxu0 %v2068
    %2928 = vmatpush.msra.mxu0 %v2064
    %2929 = vmatmul.f32.gmra.mxu0 %v2810
    %v2930 = vpop.f32.mrf.mxu0
    %v2931 = vadd.f32 %v2911, %v2930
    %2932 = vdwg.mxu0
    %2933 = vmatpush.msra.mxu0 %v2061
    %2934 = vmatpush.msra.mxu0 %v2057
    %2935 = vmatpush.msra.mxu0 %v2053
    %2936 = vmatpush.msra.mxu0 %v2049
    %2937 = vmatpush.msra.mxu0 %v2045
    %2938 = vmatpush.msra.mxu0 %v2041
    %2939 = vmatpush.msra.mxu0 %v2037
    %2940 = vmatpush.msra.mxu0 %v2033
    %2941 = vmatpush.msra.mxu0 %v2029
    %2942 = vmatpush.msra.mxu0 %v2025
    %2943 = vmatpush.msra.mxu0 %v2021
    %2944 = vmatpush.msra.mxu0 %v2017
    %2945 = vmatpush.msra.mxu0 %v2013
    %2946 = vmatpush.msra.mxu0 %v2009
    %2947 = vmatpush.msra.mxu0 %v2005
    %2948 = vmatpush.msra.mxu0 %v2001
    %2949 = vmatmul.f32.gmra.mxu0 %v2812
    %v2950 = vpop.f32.mrf.mxu0
    %v2951 = vadd.f32 %v2133, %v2950
    %2952 = vdwg.mxu0
    %2953 = vmatpush.msra.mxu0 %v2125
    %2954 = vmatpush.msra.mxu0 %v2121
    %2955 = vmatpush.msra.mxu0 %v2117
    %2956 = vmatpush.msra.mxu0 %v2113
    %2957 = vmatpush.msra.mxu0 %v2109
    %2958 = vmatpush.msra.mxu0 %v2105
    %2959 = vmatpush.msra.mxu0 %v2101
    %2960 = vmatpush.msra.mxu0 %v2097
    %2961 = vmatpush.msra.mxu0 %v2093
    %2962 = vmatpush.msra.mxu0 %v2089
    %2963 = vmatpush.msra.mxu0 %v2085
    %2964 = vmatpush.msra.mxu0 %v2081
    %2965 = vmatpush.msra.mxu0 %v2077
    %2966 = vmatpush.msra.mxu0 %v2073
    %2967 = vmatpush.msra.mxu0 %v2069
    %2968 = vmatpush.msra.mxu0 %v2065
    %2969 = vmatmul.f32.gmra.mxu0 %v2810
    %v2970 = vpop.f32.mrf.mxu0
    %v2971 = vadd.f32 %v2951, %v2970
    %2972 = vdwg.mxu0
    %v2973 = vxor.u32 %v2851, 2147483648
    %v2974 = vmul.f32 %v2973, 1.442695
    %v2975 = vpow.pop %v2974
    %v2976 = vadd.f32 %v2975, 1.0
    %v2977 = vrcp.pop %v2976
    %v2978 = vmul.f32 %v2976, %v2977
    %v2979 = vsub.f32 1.0, %v2978
    %v2980 = vmul.f32 %v2977, %v2979
    %v2981 = vadd.f32 %v2977, %v2980
    %vm2982 = vweird.f32 %v2976
    %vm2983 = vweird.f32 %v2977
    %vm2984 = vmor %vm2982, %vm2983
    %v2985 = vsel %vm2984, %v2977, %v2981
    %v2986 = vand.u32 2147483647, %v2976
    %vm2987 = vcmp.eq.f32.partialorder %v2986, 8.507059e+37
    %v2988 = vand.u32 %v2976, 2147483648
    %v2989 = vor.u32 1.1754944e-38, %v2988
    %v2990 = vsel %vm2987, %v2989, %v2985
    %v2991 = vmul.f32 1.0, %v2990
    %v2992 = vxor.u32 %v2891, 2147483648
    %v2993 = vmul.f32 %v2992, 1.442695
    %v2994 = vpow.pop %v2993
    %v2995 = vadd.f32 %v2994, 1.0
    %v2996 = vrcp.pop %v2995
    %v2997 = vmul.f32 %v2995, %v2996
    %v2998 = vsub.f32 1.0, %v2997
    %v2999 = vmul.f32 %v2996, %v2998
    %v3000 = vadd.f32 %v2996, %v2999
    %vm3001 = vweird.f32 %v2995
    %vm3002 = vweird.f32 %v2996
    %vm3003 = vmor %vm3001, %vm3002
    %v3004 = vsel %vm3003, %v2996, %v3000
    %v3005 = vand.u32 2147483647, %v2995
    %vm3006 = vcmp.eq.f32.partialorder %v3005, 8.507059e+37
    %v3007 = vand.u32 %v2995, 2147483648
    %v3008 = vor.u32 1.1754944e-38, %v3007
    %v3009 = vsel %vm3006, %v3008, %v3004
    %v3010 = vmul.f32 1.0, %v3009
    %v3011 = vtanh.pop %v2931
    %v3012 = vxor.u32 %v2971, 2147483648
    %v3013 = vmul.f32 %v3012, 1.442695
    %v3014 = vpow.pop %v3013
    %v3015 = vadd.f32 %v3014, 1.0
    %v3016 = vrcp.pop %v3015
    %v3017 = vmul.f32 %v3015, %v3016
    %v3018 = vsub.f32 1.0, %v3017
    %v3019 = vmul.f32 %v3016, %v3018
    %v3020 = vadd.f32 %v3016, %v3019
    %vm3021 = vweird.f32 %v3015
    %vm3022 = vweird.f32 %v3016
    %vm3023 = vmor %vm3021, %vm3022
    %v3024 = vsel %vm3023, %v3016, %v3020
    %v3025 = vand.u32 2147483647, %v3015
    %vm3026 = vcmp.eq.f32.partialorder %v3025, 8.507059e+37
    %v3027 = vand.u32 %v3015, 2147483648
    %v3028 = vor.u32 1.1754944e-38, %v3027
    %v3029 = vsel %vm3026, %v3028, %v3024
    %v3030 = vmul.f32 1.0, %v3029
    %v3031 = vmul.f32 %v3010, %v2808
    %v3032 = vmul.f32 %v2991, %v3011
    %v3033 = vadd.f32 %v3031, %v3032
    %v3034 = vtanh.pop %v3033
    %v3035 = vmul.f32 %v3030, %v3034
    %3036 = vst [vmem:[%s867] sm:$0xff] %v3035
    %v3037 = vld [vmem:[%s1093] sm:$0xff]
    %3038 = vmatpush.msra.mxu0 %v2058
    %3039 = vmatpush.msra.mxu0 %v2054
    %3040 = vmatpush.msra.mxu0 %v2050
    %3041 = vmatpush.msra.mxu0 %v2046
    %3042 = vmatpush.msra.mxu0 %v2042
    %3043 = vmatpush.msra.mxu0 %v2038
    %3044 = vmatpush.msra.mxu0 %v2034
    %3045 = vmatpush.msra.mxu0 %v2030
    %3046 = vmatpush.msra.mxu0 %v2026
    %3047 = vmatpush.msra.mxu0 %v2022
    %3048 = vmatpush.msra.mxu0 %v2018
    %3049 = vmatpush.msra.mxu0 %v2014
    %3050 = vmatpush.msra.mxu0 %v2010
    %3051 = vmatpush.msra.mxu0 %v2006
    %3052 = vmatpush.msra.mxu0 %v2002
    %3053 = vmatpush.msra.mxu0 %v1998
    %3054 = vmatmul.f32.gmra.mxu0 %v3037
    %v3055 = vpop.f32.mrf.mxu0
    %v3056 = vadd.f32 %v2130, %v3055
    %3057 = vdwg.mxu0
    %3058 = vmatpush.msra.mxu0 %v2122
    %3059 = vmatpush.msra.mxu0 %v2118
    %3060 = vmatpush.msra.mxu0 %v2114
    %3061 = vmatpush.msra.mxu0 %v2110
    %3062 = vmatpush.msra.mxu0 %v2106
    %3063 = vmatpush.msra.mxu0 %v2102
    %3064 = vmatpush.msra.mxu0 %v2098
    %3065 = vmatpush.msra.mxu0 %v2094
    %3066 = vmatpush.msra.mxu0 %v2090
    %3067 = vmatpush.msra.mxu0 %v2086
    %3068 = vmatpush.msra.mxu0 %v2082
    %3069 = vmatpush.msra.mxu0 %v2078
    %3070 = vmatpush.msra.mxu0 %v2074
    %3071 = vmatpush.msra.mxu0 %v2070
    %3072 = vmatpush.msra.mxu0 %v2066
    %3073 = vmatpush.msra.mxu0 %v2062
    %3074 = vmatmul.f32.gmra.mxu0 %v3035
    %v3075 = vpop.f32.mrf.mxu0
    %v3076 = vadd.f32 %v3056, %v3075
    %3077 = vdwg.mxu0
    %3078 = vmatpush.msra.mxu0 %v2059
    %3079 = vmatpush.msra.mxu0 %v2055
    %3080 = vmatpush.msra.mxu0 %v2051
    %3081 = vmatpush.msra.mxu0 %v2047
    %3082 = vmatpush.msra.mxu0 %v2043
    %3083 = vmatpush.msra.mxu0 %v2039
    %3084 = vmatpush.msra.mxu0 %v2035
    %3085 = vmatpush.msra.mxu0 %v2031
    %3086 = vmatpush.msra.mxu0 %v2027
    %3087 = vmatpush.msra.mxu0 %v2023
    %3088 = vmatpush.msra.mxu0 %v2019
    %3089 = vmatpush.msra.mxu0 %v2015
    %3090 = vmatpush.msra.mxu0 %v2011
    %3091 = vmatpush.msra.mxu0 %v2007
    %3092 = vmatpush.msra.mxu0 %v2003
    %3093 = vmatpush.msra.mxu0 %v1999
    %3094 = vmatmul.f32.gmra.mxu0 %v3037
    %v3095 = vpop.f32.mrf.mxu0
    %v3096 = vadd.f32 %v2131, %v3095
    %3097 = vdwg.mxu0
    %3098 = vmatpush.msra.mxu0 %v2123
    %3099 = vmatpush.msra.mxu0 %v2119
    %3100 = vmatpush.msra.mxu0 %v2115
    %3101 = vmatpush.msra.mxu0 %v2111
    %3102 = vmatpush.msra.mxu0 %v2107
    %3103 = vmatpush.msra.mxu0 %v2103
    %3104 = vmatpush.msra.mxu0 %v2099
    %3105 = vmatpush.msra.mxu0 %v2095
    %3106 = vmatpush.msra.mxu0 %v2091
    %3107 = vmatpush.msra.mxu0 %v2087
    %3108 = vmatpush.msra.mxu0 %v2083
    %3109 = vmatpush.msra.mxu0 %v2079
    %3110 = vmatpush.msra.mxu0 %v2075
    %3111 = vmatpush.msra.mxu0 %v2071
    %3112 = vmatpush.msra.mxu0 %v2067
    %3113 = vmatpush.msra.mxu0 %v2063
    %3114 = vmatmul.f32.gmra.mxu0 %v3035
    %v3115 = vpop.f32.mrf.mxu0
    %v3116 = vadd.f32 %v3096, %v3115
    %3117 = vdwg.mxu0
    %3118 = vmatpush.msra.mxu0 %v2060
    %3119 = vmatpush.msra.mxu0 %v2056
    %3120 = vmatpush.msra.mxu0 %v2052
    %3121 = vmatpush.msra.mxu0 %v2048
    %3122 = vmatpush.msra.mxu0 %v2044
    %3123 = vmatpush.msra.mxu0 %v2040
    %3124 = vmatpush.msra.mxu0 %v2036
    %3125 = vmatpush.msra.mxu0 %v2032
    %3126 = vmatpush.msra.mxu0 %v2028
    %3127 = vmatpush.msra.mxu0 %v2024
    %3128 = vmatpush.msra.mxu0 %v2020
    %3129 = vmatpush.msra.mxu0 %v2016
    %3130 = vmatpush.msra.mxu0 %v2012
    %3131 = vmatpush.msra.mxu0 %v2008
    %3132 = vmatpush.msra.mxu0 %v2004
    %3133 = vmatpush.msra.mxu0 %v2000
    %3134 = vmatmul.f32.gmra.mxu0 %v3037
    %v3135 = vpop.f32.mrf.mxu0
    %v3136 = vadd.f32 %v2132, %v3135
    %3137 = vdwg.mxu0
    %3138 = vmatpush.msra.mxu0 %v2124
    %3139 = vmatpush.msra.mxu0 %v2120
    %3140 = vmatpush.msra.mxu0 %v2116
    %3141 = vmatpush.msra.mxu0 %v2112
    %3142 = vmatpush.msra.mxu0 %v2108
    %3143 = vmatpush.msra.mxu0 %v2104
    %3144 = vmatpush.msra.mxu0 %v2100
    %3145 = vmatpush.msra.mxu0 %v2096
    %3146 = vmatpush.msra.mxu0 %v2092
    %3147 = vmatpush.msra.mxu0 %v2088
    %3148 = vmatpush.msra.mxu0 %v2084
    %3149 = vmatpush.msra.mxu0 %v2080
    %3150 = vmatpush.msra.mxu0 %v2076
    %3151 = vmatpush.msra.mxu0 %v2072
    %3152 = vmatpush.msra.mxu0 %v2068
    %3153 = vmatpush.msra.mxu0 %v2064
    %3154 = vmatmul.f32.gmra.mxu0 %v3035
    %v3155 = vpop.f32.mrf.mxu0
    %v3156 = vadd.f32 %v3136, %v3155
    %3157 = vdwg.mxu0
    %3158 = vmatpush.msra.mxu0 %v2061
    %3159 = vmatpush.msra.mxu0 %v2057
    %3160 = vmatpush.msra.mxu0 %v2053
    %3161 = vmatpush.msra.mxu0 %v2049
    %3162 = vmatpush.msra.mxu0 %v2045
    %3163 = vmatpush.msra.mxu0 %v2041
    %3164 = vmatpush.msra.mxu0 %v2037
    %3165 = vmatpush.msra.mxu0 %v2033
    %3166 = vmatpush.msra.mxu0 %v2029
    %3167 = vmatpush.msra.mxu0 %v2025
    %3168 = vmatpush.msra.mxu0 %v2021
    %3169 = vmatpush.msra.mxu0 %v2017
    %3170 = vmatpush.msra.mxu0 %v2013
    %3171 = vmatpush.msra.mxu0 %v2009
    %3172 = vmatpush.msra.mxu0 %v2005
    %3173 = vmatpush.msra.mxu0 %v2001
    %3174 = vmatmul.f32.gmra.mxu0 %v3037
    %v3175 = vpop.f32.mrf.mxu0
    %v3176 = vadd.f32 %v2133, %v3175
    %3177 = vdwg.mxu0
    %3178 = vmatpush.msra.mxu0 %v2125
    %3179 = vmatpush.msra.mxu0 %v2121
    %3180 = vmatpush.msra.mxu0 %v2117
    %3181 = vmatpush.msra.mxu0 %v2113
    %3182 = vmatpush.msra.mxu0 %v2109
    %3183 = vmatpush.msra.mxu0 %v2105
    %3184 = vmatpush.msra.mxu0 %v2101
    %3185 = vmatpush.msra.mxu0 %v2097
    %3186 = vmatpush.msra.mxu0 %v2093
    %3187 = vmatpush.msra.mxu0 %v2089
    %3188 = vmatpush.msra.mxu0 %v2085
    %3189 = vmatpush.msra.mxu0 %v2081
    %3190 = vmatpush.msra.mxu0 %v2077
    %3191 = vmatpush.msra.mxu0 %v2073
    %3192 = vmatpush.msra.mxu0 %v2069
    %3193 = vmatpush.msra.mxu0 %v2065
    %3194 = vmatmul.f32.gmra.mxu0 %v3035
    %v3195 = vpop.f32.mrf.mxu0
    %v3196 = vadd.f32 %v3176, %v3195
    %3197 = vdwg.mxu0
    %v3198 = vxor.u32 %v3076, 2147483648
    %v3199 = vmul.f32 %v3198, 1.442695
    %v3200 = vpow.pop %v3199
    %v3201 = vadd.f32 %v3200, 1.0
    %v3202 = vrcp.pop %v3201
    %v3203 = vmul.f32 %v3201, %v3202
    %v3204 = vsub.f32 1.0, %v3203
    %v3205 = vmul.f32 %v3202, %v3204
    %v3206 = vadd.f32 %v3202, %v3205
    %vm3207 = vweird.f32 %v3201
    %vm3208 = vweird.f32 %v3202
    %vm3209 = vmor %vm3207, %vm3208
    %v3210 = vsel %vm3209, %v3202, %v3206
    %v3211 = vand.u32 2147483647, %v3201
    %vm3212 = vcmp.eq.f32.partialorder %v3211, 8.507059e+37
    %v3213 = vand.u32 %v3201, 2147483648
    %v3214 = vor.u32 1.1754944e-38, %v3213
    %v3215 = vsel %vm3212, %v3214, %v3210
    %v3216 = vmul.f32 1.0, %v3215
    %v3217 = vxor.u32 %v3116, 2147483648
    %v3218 = vmul.f32 %v3217, 1.442695
    %v3219 = vpow.pop %v3218
    %v3220 = vadd.f32 %v3219, 1.0
    %v3221 = vrcp.pop %v3220
    %v3222 = vmul.f32 %v3220, %v3221
    %v3223 = vsub.f32 1.0, %v3222
    %v3224 = vmul.f32 %v3221, %v3223
    %v3225 = vadd.f32 %v3221, %v3224
    %vm3226 = vweird.f32 %v3220
    %vm3227 = vweird.f32 %v3221
    %vm3228 = vmor %vm3226, %vm3227
    %v3229 = vsel %vm3228, %v3221, %v3225
    %v3230 = vand.u32 2147483647, %v3220
    %vm3231 = vcmp.eq.f32.partialorder %v3230, 8.507059e+37
    %v3232 = vand.u32 %v3220, 2147483648
    %v3233 = vor.u32 1.1754944e-38, %v3232
    %v3234 = vsel %vm3231, %v3233, %v3229
    %v3235 = vmul.f32 1.0, %v3234
    %v3236 = vtanh.pop %v3156
    %v3237 = vxor.u32 %v3196, 2147483648
    %v3238 = vmul.f32 %v3237, 1.442695
    %v3239 = vpow.pop %v3238
    %v3240 = vadd.f32 %v3239, 1.0
    %v3241 = vrcp.pop %v3240
    %v3242 = vmul.f32 %v3240, %v3241
    %v3243 = vsub.f32 1.0, %v3242
    %v3244 = vmul.f32 %v3241, %v3243
    %v3245 = vadd.f32 %v3241, %v3244
    %vm3246 = vweird.f32 %v3240
    %vm3247 = vweird.f32 %v3241
    %vm3248 = vmor %vm3246, %vm3247
    %v3249 = vsel %vm3248, %v3241, %v3245
    %v3250 = vand.u32 2147483647, %v3240
    %vm3251 = vcmp.eq.f32.partialorder %v3250, 8.507059e+37
    %v3252 = vand.u32 %v3240, 2147483648
    %v3253 = vor.u32 1.1754944e-38, %v3252
    %v3254 = vsel %vm3251, %v3253, %v3249
    %v3255 = vmul.f32 1.0, %v3254
    %v3256 = vmul.f32 %v3235, %v3033
    %v3257 = vmul.f32 %v3216, %v3236
    %v3258 = vadd.f32 %v3256, %v3257
    %v3259 = vtanh.pop %v3258
    %v3260 = vmul.f32 %v3255, %v3259
    %3261 = vst [vmem:[%s1093] sm:$0xff] %v3260
    %v3262 = vld [vmem:[%s1319] sm:$0xff]
    %3263 = vmatpush.msra.mxu0 %v2058
    %3264 = vmatpush.msra.mxu0 %v2054
    %3265 = vmatpush.msra.mxu0 %v2050
    %3266 = vmatpush.msra.mxu0 %v2046
    %3267 = vmatpush.msra.mxu0 %v2042
    %3268 = vmatpush.msra.mxu0 %v2038
    %3269 = vmatpush.msra.mxu0 %v2034
    %3270 = vmatpush.msra.mxu0 %v2030
    %3271 = vmatpush.msra.mxu0 %v2026
    %3272 = vmatpush.msra.mxu0 %v2022
    %3273 = vmatpush.msra.mxu0 %v2018
    %3274 = vmatpush.msra.mxu0 %v2014
    %3275 = vmatpush.msra.mxu0 %v2010
    %3276 = vmatpush.msra.mxu0 %v2006
    %3277 = vmatpush.msra.mxu0 %v2002
    %3278 = vmatpush.msra.mxu0 %v1998
    %3279 = vmatmul.f32.gmra.mxu0 %v3262
    %v3280 = vpop.f32.mrf.mxu0
    %v3281 = vadd.f32 %v2130, %v3280
    %3282 = vdwg.mxu0
    %3283 = vmatpush.msra.mxu0 %v2122
    %3284 = vmatpush.msra.mxu0 %v2118
    %3285 = vmatpush.msra.mxu0 %v2114
    %3286 = vmatpush.msra.mxu0 %v2110
    %3287 = vmatpush.msra.mxu0 %v2106
    %3288 = vmatpush.msra.mxu0 %v2102
    %3289 = vmatpush.msra.mxu0 %v2098
    %3290 = vmatpush.msra.mxu0 %v2094
    %3291 = vmatpush.msra.mxu0 %v2090
    %3292 = vmatpush.msra.mxu0 %v2086
    %3293 = vmatpush.msra.mxu0 %v2082
    %3294 = vmatpush.msra.mxu0 %v2078
    %3295 = vmatpush.msra.mxu0 %v2074
    %3296 = vmatpush.msra.mxu0 %v2070
    %3297 = vmatpush.msra.mxu0 %v2066
    %3298 = vmatpush.msra.mxu0 %v2062
    %3299 = vmatmul.f32.gmra.mxu0 %v3260
    %v3300 = vpop.f32.mrf.mxu0
    %v3301 = vadd.f32 %v3281, %v3300
    %3302 = vdwg.mxu0
    %3303 = vmatpush.msra.mxu0 %v2059
    %3304 = vmatpush.msra.mxu0 %v2055
    %3305 = vmatpush.msra.mxu0 %v2051
    %3306 = vmatpush.msra.mxu0 %v2047
    %3307 = vmatpush.msra.mxu0 %v2043
    %3308 = vmatpush.msra.mxu0 %v2039
    %3309 = vmatpush.msra.mxu0 %v2035
    %3310 = vmatpush.msra.mxu0 %v2031
    %3311 = vmatpush.msra.mxu0 %v2027
    %3312 = vmatpush.msra.mxu0 %v2023
    %3313 = vmatpush.msra.mxu0 %v2019
    %3314 = vmatpush.msra.mxu0 %v2015
    %3315 = vmatpush.msra.mxu0 %v2011
    %3316 = vmatpush.msra.mxu0 %v2007
    %3317 = vmatpush.msra.mxu0 %v2003
    %3318 = vmatpush.msra.mxu0 %v1999
    %3319 = vmatmul.f32.gmra.mxu0 %v3262
    %v3320 = vpop.f32.mrf.mxu0
    %v3321 = vadd.f32 %v2131, %v3320
    %3322 = vdwg.mxu0
    %3323 = vmatpush.msra.mxu0 %v2123
    %3324 = vmatpush.msra.mxu0 %v2119
    %3325 = vmatpush.msra.mxu0 %v2115
    %3326 = vmatpush.msra.mxu0 %v2111
    %3327 = vmatpush.msra.mxu0 %v2107
    %3328 = vmatpush.msra.mxu0 %v2103
    %3329 = vmatpush.msra.mxu0 %v2099
    %3330 = vmatpush.msra.mxu0 %v2095
    %3331 = vmatpush.msra.mxu0 %v2091
    %3332 = vmatpush.msra.mxu0 %v2087
    %3333 = vmatpush.msra.mxu0 %v2083
    %3334 = vmatpush.msra.mxu0 %v2079
    %3335 = vmatpush.msra.mxu0 %v2075
    %3336 = vmatpush.msra.mxu0 %v2071
    %3337 = vmatpush.msra.mxu0 %v2067
    %3338 = vmatpush.msra.mxu0 %v2063
    %3339 = vmatmul.f32.gmra.mxu0 %v3260
    %v3340 = vpop.f32.mrf.mxu0
    %v3341 = vadd.f32 %v3321, %v3340
    %3342 = vdwg.mxu0
    %3343 = vmatpush.msra.mxu0 %v2060
    %3344 = vmatpush.msra.mxu0 %v2056
    %3345 = vmatpush.msra.mxu0 %v2052
    %3346 = vmatpush.msra.mxu0 %v2048
    %3347 = vmatpush.msra.mxu0 %v2044
    %3348 = vmatpush.msra.mxu0 %v2040
    %3349 = vmatpush.msra.mxu0 %v2036
    %3350 = vmatpush.msra.mxu0 %v2032
    %3351 = vmatpush.msra.mxu0 %v2028
    %3352 = vmatpush.msra.mxu0 %v2024
    %3353 = vmatpush.msra.mxu0 %v2020
    %3354 = vmatpush.msra.mxu0 %v2016
    %3355 = vmatpush.msra.mxu0 %v2012
    %3356 = vmatpush.msra.mxu0 %v2008
    %3357 = vmatpush.msra.mxu0 %v2004
    %3358 = vmatpush.msra.mxu0 %v2000
    %3359 = vmatmul.f32.gmra.mxu0 %v3262
    %v3360 = vpop.f32.mrf.mxu0
    %v3361 = vadd.f32 %v2132, %v3360
    %3362 = vdwg.mxu0
    %3363 = vmatpush.msra.mxu0 %v2124
    %3364 = vmatpush.msra.mxu0 %v2120
    %3365 = vmatpush.msra.mxu0 %v2116
    %3366 = vmatpush.msra.mxu0 %v2112
    %3367 = vmatpush.msra.mxu0 %v2108
    %3368 = vmatpush.msra.mxu0 %v2104
    %3369 = vmatpush.msra.mxu0 %v2100
    %3370 = vmatpush.msra.mxu0 %v2096
    %3371 = vmatpush.msra.mxu0 %v2092
    %3372 = vmatpush.msra.mxu0 %v2088
    %3373 = vmatpush.msra.mxu0 %v2084
    %3374 = vmatpush.msra.mxu0 %v2080
    %3375 = vmatpush.msra.mxu0 %v2076
    %3376 = vmatpush.msra.mxu0 %v2072
    %3377 = vmatpush.msra.mxu0 %v2068
    %3378 = vmatpush.msra.mxu0 %v2064
    %3379 = vmatmul.f32.gmra.mxu0 %v3260
    %v3380 = vpop.f32.mrf.mxu0
    %v3381 = vadd.f32 %v3361, %v3380
    %3382 = vdwg.mxu0
    %3383 = vmatpush.msra.mxu0 %v2061
    %3384 = vmatpush.msra.mxu0 %v2057
    %3385 = vmatpush.msra.mxu0 %v2053
    %3386 = vmatpush.msra.mxu0 %v2049
    %3387 = vmatpush.msra.mxu0 %v2045
    %3388 = vmatpush.msra.mxu0 %v2041
    %3389 = vmatpush.msra.mxu0 %v2037
    %3390 = vmatpush.msra.mxu0 %v2033
    %3391 = vmatpush.msra.mxu0 %v2029
    %3392 = vmatpush.msra.mxu0 %v2025
    %3393 = vmatpush.msra.mxu0 %v2021
    %3394 = vmatpush.msra.mxu0 %v2017
    %3395 = vmatpush.msra.mxu0 %v2013
    %3396 = vmatpush.msra.mxu0 %v2009
    %3397 = vmatpush.msra.mxu0 %v2005
    %3398 = vmatpush.msra.mxu0 %v2001
    %3399 = vmatmul.f32.gmra.mxu0 %v3262
    %v3400 = vpop.f32.mrf.mxu0
    %v3401 = vadd.f32 %v2133, %v3400
    %3402 = vdwg.mxu0
    %3403 = vmatpush.msra.mxu0 %v2125
    %3404 = vmatpush.msra.mxu0 %v2121
    %3405 = vmatpush.msra.mxu0 %v2117
    %3406 = vmatpush.msra.mxu0 %v2113
    %3407 = vmatpush.msra.mxu0 %v2109
    %3408 = vmatpush.msra.mxu0 %v2105
    %3409 = vmatpush.msra.mxu0 %v2101
    %3410 = vmatpush.msra.mxu0 %v2097
    %3411 = vmatpush.msra.mxu0 %v2093
    %3412 = vmatpush.msra.mxu0 %v2089
    %3413 = vmatpush.msra.mxu0 %v2085
    %3414 = vmatpush.msra.mxu0 %v2081
    %3415 = vmatpush.msra.mxu0 %v2077
    %3416 = vmatpush.msra.mxu0 %v2073
    %3417 = vmatpush.msra.mxu0 %v2069
    %3418 = vmatpush.msra.mxu0 %v2065
    %3419 = vmatmul.f32.gmra.mxu0 %v3260
    %v3420 = vpop.f32.mrf.mxu0
    %v3421 = vadd.f32 %v3401, %v3420
    %3422 = vdwg.mxu0
    %v3423 = vxor.u32 %v3301, 2147483648
    %v3424 = vmul.f32 %v3423, 1.442695
    %v3425 = vpow.pop %v3424
    %v3426 = vadd.f32 %v3425, 1.0
    %v3427 = vrcp.pop %v3426
    %v3428 = vmul.f32 %v3426, %v3427
    %v3429 = vsub.f32 1.0, %v3428
    %v3430 = vmul.f32 %v3427, %v3429
    %v3431 = vadd.f32 %v3427, %v3430
    %vm3432 = vweird.f32 %v3426
    %vm3433 = vweird.f32 %v3427
    %vm3434 = vmor %vm3432, %vm3433
    %v3435 = vsel %vm3434, %v3427, %v3431
    %v3436 = vand.u32 2147483647, %v3426
    %vm3437 = vcmp.eq.f32.partialorder %v3436, 8.507059e+37
    %v3438 = vand.u32 %v3426, 2147483648
    %v3439 = vor.u32 1.1754944e-38, %v3438
    %v3440 = vsel %vm3437, %v3439, %v3435
    %v3441 = vmul.f32 1.0, %v3440
    %v3442 = vxor.u32 %v3341, 2147483648
    %v3443 = vmul.f32 %v3442, 1.442695
    %v3444 = vpow.pop %v3443
    %v3445 = vadd.f32 %v3444, 1.0
    %v3446 = vrcp.pop %v3445
    %v3447 = vmul.f32 %v3445, %v3446
    %v3448 = vsub.f32 1.0, %v3447
    %v3449 = vmul.f32 %v3446, %v3448
    %v3450 = vadd.f32 %v3446, %v3449
    %vm3451 = vweird.f32 %v3445
    %vm3452 = vweird.f32 %v3446
    %vm3453 = vmor %vm3451, %vm3452
    %v3454 = vsel %vm3453, %v3446, %v3450
    %v3455 = vand.u32 2147483647, %v3445
    %vm3456 = vcmp.eq.f32.partialorder %v3455, 8.507059e+37
    %v3457 = vand.u32 %v3445, 2147483648
    %v3458 = vor.u32 1.1754944e-38, %v3457
    %v3459 = vsel %vm3456, %v3458, %v3454
    %v3460 = vmul.f32 1.0, %v3459
    %v3461 = vtanh.pop %v3381
    %v3462 = vxor.u32 %v3421, 2147483648
    %v3463 = vmul.f32 %v3462, 1.442695
    %v3464 = vpow.pop %v3463
    %v3465 = vadd.f32 %v3464, 1.0
    %v3466 = vrcp.pop %v3465
    %v3467 = vmul.f32 %v3465, %v3466
    %v3468 = vsub.f32 1.0, %v3467
    %v3469 = vmul.f32 %v3466, %v3468
    %v3470 = vadd.f32 %v3466, %v3469
    %vm3471 = vweird.f32 %v3465
    %vm3472 = vweird.f32 %v3466
    %vm3473 = vmor %vm3471, %vm3472
    %v3474 = vsel %vm3473, %v3466, %v3470
    %v3475 = vand.u32 2147483647, %v3465
    %vm3476 = vcmp.eq.f32.partialorder %v3475, 8.507059e+37
    %v3477 = vand.u32 %v3465, 2147483648
    %v3478 = vor.u32 1.1754944e-38, %v3477
    %v3479 = vsel %vm3476, %v3478, %v3474
    %v3480 = vmul.f32 1.0, %v3479
    %v3481 = vmul.f32 %v3460, %v3258
    %v3482 = vmul.f32 %v3441, %v3461
    %v3483 = vadd.f32 %v3481, %v3482
    %v3484 = vtanh.pop %v3483
    %v3485 = vmul.f32 %v3480, %v3484
    %3486 = vst [vmem:[%s1319] sm:$0xff] %v3485
    %v3487 = vld [vmem:[%s1545] sm:$0xff]
    %3488 = vmatpush.msra.mxu0 %v2058
    %3489 = vmatpush.msra.mxu0 %v2054
    %3490 = vmatpush.msra.mxu0 %v2050
    %3491 = vmatpush.msra.mxu0 %v2046
    %3492 = vmatpush.msra.mxu0 %v2042
    %3493 = vmatpush.msra.mxu0 %v2038
    %3494 = vmatpush.msra.mxu0 %v2034
    %3495 = vmatpush.msra.mxu0 %v2030
    %3496 = vmatpush.msra.mxu0 %v2026
    %3497 = vmatpush.msra.mxu0 %v2022
    %3498 = vmatpush.msra.mxu0 %v2018
    %3499 = vmatpush.msra.mxu0 %v2014
    %3500 = vmatpush.msra.mxu0 %v2010
    %3501 = vmatpush.msra.mxu0 %v2006
    %3502 = vmatpush.msra.mxu0 %v2002
    %3503 = vmatpush.msra.mxu0 %v1998
    %3504 = vmatmul.f32.gmra.mxu0 %v3487
    %v3505 = vpop.f32.mrf.mxu0
    %v3506 = vadd.f32 %v2130, %v3505
    %3507 = vdwg.mxu0
    %3508 = vmatpush.msra.mxu0 %v2122
    %3509 = vmatpush.msra.mxu0 %v2118
    %3510 = vmatpush.msra.mxu0 %v2114
    %3511 = vmatpush.msra.mxu0 %v2110
    %3512 = vmatpush.msra.mxu0 %v2106
    %3513 = vmatpush.msra.mxu0 %v2102
    %3514 = vmatpush.msra.mxu0 %v2098
    %3515 = vmatpush.msra.mxu0 %v2094
    %3516 = vmatpush.msra.mxu0 %v2090
    %3517 = vmatpush.msra.mxu0 %v2086
    %3518 = vmatpush.msra.mxu0 %v2082
    %3519 = vmatpush.msra.mxu0 %v2078
    %3520 = vmatpush.msra.mxu0 %v2074
    %3521 = vmatpush.msra.mxu0 %v2070
    %3522 = vmatpush.msra.mxu0 %v2066
    %3523 = vmatpush.msra.mxu0 %v2062
    %3524 = vmatmul.f32.gmra.mxu0 %v3485
    %v3525 = vpop.f32.mrf.mxu0
    %v3526 = vadd.f32 %v3506, %v3525
    %3527 = vdwg.mxu0
    %3528 = vmatpush.msra.mxu0 %v2059
    %3529 = vmatpush.msra.mxu0 %v2055
    %3530 = vmatpush.msra.mxu0 %v2051
    %3531 = vmatpush.msra.mxu0 %v2047
    %3532 = vmatpush.msra.mxu0 %v2043
    %3533 = vmatpush.msra.mxu0 %v2039
    %3534 = vmatpush.msra.mxu0 %v2035
    %3535 = vmatpush.msra.mxu0 %v2031
    %3536 = vmatpush.msra.mxu0 %v2027
    %3537 = vmatpush.msra.mxu0 %v2023
    %3538 = vmatpush.msra.mxu0 %v2019
    %3539 = vmatpush.msra.mxu0 %v2015
    %3540 = vmatpush.msra.mxu0 %v2011
    %3541 = vmatpush.msra.mxu0 %v2007
    %3542 = vmatpush.msra.mxu0 %v2003
    %3543 = vmatpush.msra.mxu0 %v1999
    %3544 = vmatmul.f32.gmra.mxu0 %v3487
    %v3545 = vpop.f32.mrf.mxu0
    %v3546 = vadd.f32 %v2131, %v3545
    %3547 = vdwg.mxu0
    %3548 = vmatpush.msra.mxu0 %v2123
    %3549 = vmatpush.msra.mxu0 %v2119
    %3550 = vmatpush.msra.mxu0 %v2115
    %3551 = vmatpush.msra.mxu0 %v2111
    %3552 = vmatpush.msra.mxu0 %v2107
    %3553 = vmatpush.msra.mxu0 %v2103
    %3554 = vmatpush.msra.mxu0 %v2099
    %3555 = vmatpush.msra.mxu0 %v2095
    %3556 = vmatpush.msra.mxu0 %v2091
    %3557 = vmatpush.msra.mxu0 %v2087
    %3558 = vmatpush.msra.mxu0 %v2083
    %3559 = vmatpush.msra.mxu0 %v2079
    %3560 = vmatpush.msra.mxu0 %v2075
    %3561 = vmatpush.msra.mxu0 %v2071
    %3562 = vmatpush.msra.mxu0 %v2067
    %3563 = vmatpush.msra.mxu0 %v2063
    %3564 = vmatmul.f32.gmra.mxu0 %v3485
    %v3565 = vpop.f32.mrf.mxu0
    %v3566 = vadd.f32 %v3546, %v3565
    %3567 = vdwg.mxu0
    %3568 = vmatpush.msra.mxu0 %v2060
    %3569 = vmatpush.msra.mxu0 %v2056
    %3570 = vmatpush.msra.mxu0 %v2052
    %3571 = vmatpush.msra.mxu0 %v2048
    %3572 = vmatpush.msra.mxu0 %v2044
    %3573 = vmatpush.msra.mxu0 %v2040
    %3574 = vmatpush.msra.mxu0 %v2036
    %3575 = vmatpush.msra.mxu0 %v2032
    %3576 = vmatpush.msra.mxu0 %v2028
    %3577 = vmatpush.msra.mxu0 %v2024
    %3578 = vmatpush.msra.mxu0 %v2020
    %3579 = vmatpush.msra.mxu0 %v2016
    %3580 = vmatpush.msra.mxu0 %v2012
    %3581 = vmatpush.msra.mxu0 %v2008
    %3582 = vmatpush.msra.mxu0 %v2004
    %3583 = vmatpush.msra.mxu0 %v2000
    %3584 = vmatmul.f32.gmra.mxu0 %v3487
    %v3585 = vpop.f32.mrf.mxu0
    %v3586 = vadd.f32 %v2132, %v3585
    %3587 = vdwg.mxu0
    %3588 = vmatpush.msra.mxu0 %v2124
    %3589 = vmatpush.msra.mxu0 %v2120
    %3590 = vmatpush.msra.mxu0 %v2116
    %3591 = vmatpush.msra.mxu0 %v2112
    %3592 = vmatpush.msra.mxu0 %v2108
    %3593 = vmatpush.msra.mxu0 %v2104
    %3594 = vmatpush.msra.mxu0 %v2100
    %3595 = vmatpush.msra.mxu0 %v2096
    %3596 = vmatpush.msra.mxu0 %v2092
    %3597 = vmatpush.msra.mxu0 %v2088
    %3598 = vmatpush.msra.mxu0 %v2084
    %3599 = vmatpush.msra.mxu0 %v2080
    %3600 = vmatpush.msra.mxu0 %v2076
    %3601 = vmatpush.msra.mxu0 %v2072
    %3602 = vmatpush.msra.mxu0 %v2068
    %3603 = vmatpush.msra.mxu0 %v2064
    %3604 = vmatmul.f32.gmra.mxu0 %v3485
    %v3605 = vpop.f32.mrf.mxu0
    %v3606 = vadd.f32 %v3586, %v3605
    %3607 = vdwg.mxu0
    %3608 = vmatpush.msra.mxu0 %v2061
    %3609 = vmatpush.msra.mxu0 %v2057
    %3610 = vmatpush.msra.mxu0 %v2053
    %3611 = vmatpush.msra.mxu0 %v2049
    %3612 = vmatpush.msra.mxu0 %v2045
    %3613 = vmatpush.msra.mxu0 %v2041
    %3614 = vmatpush.msra.mxu0 %v2037
    %3615 = vmatpush.msra.mxu0 %v2033
    %3616 = vmatpush.msra.mxu0 %v2029
    %3617 = vmatpush.msra.mxu0 %v2025
    %3618 = vmatpush.msra.mxu0 %v2021
    %3619 = vmatpush.msra.mxu0 %v2017
    %3620 = vmatpush.msra.mxu0 %v2013
    %3621 = vmatpush.msra.mxu0 %v2009
    %3622 = vmatpush.msra.mxu0 %v2005
    %3623 = vmatpush.msra.mxu0 %v2001
    %3624 = vmatmul.f32.gmra.mxu0 %v3487
    %v3625 = vpop.f32.mrf.mxu0
    %v3626 = vadd.f32 %v2133, %v3625
    %3627 = vdwg.mxu0
    %3628 = vmatpush.msra.mxu0 %v2125
    %3629 = vmatpush.msra.mxu0 %v2121
    %3630 = vmatpush.msra.mxu0 %v2117
    %3631 = vmatpush.msra.mxu0 %v2113
    %3632 = vmatpush.msra.mxu0 %v2109
    %3633 = vmatpush.msra.mxu0 %v2105
    %3634 = vmatpush.msra.mxu0 %v2101
    %3635 = vmatpush.msra.mxu0 %v2097
    %3636 = vmatpush.msra.mxu0 %v2093
    %3637 = vmatpush.msra.mxu0 %v2089
    %3638 = vmatpush.msra.mxu0 %v2085
    %3639 = vmatpush.msra.mxu0 %v2081
    %3640 = vmatpush.msra.mxu0 %v2077
    %3641 = vmatpush.msra.mxu0 %v2073
    %3642 = vmatpush.msra.mxu0 %v2069
    %3643 = vmatpush.msra.mxu0 %v2065
    %3644 = vmatmul.f32.gmra.mxu0 %v3485
    %v3645 = vpop.f32.mrf.mxu0
    %v3646 = vadd.f32 %v3626, %v3645
    %3647 = vdwg.mxu0
    %v3648 = vxor.u32 %v3526, 2147483648
    %v3649 = vmul.f32 %v3648, 1.442695
    %v3650 = vpow.pop %v3649
    %v3651 = vadd.f32 %v3650, 1.0
    %v3652 = vrcp.pop %v3651
    %v3653 = vmul.f32 %v3651, %v3652
    %v3654 = vsub.f32 1.0, %v3653
    %v3655 = vmul.f32 %v3652, %v3654
    %v3656 = vadd.f32 %v3652, %v3655
    %vm3657 = vweird.f32 %v3651
    %vm3658 = vweird.f32 %v3652
    %vm3659 = vmor %vm3657, %vm3658
    %v3660 = vsel %vm3659, %v3652, %v3656
    %v3661 = vand.u32 2147483647, %v3651
    %vm3662 = vcmp.eq.f32.partialorder %v3661, 8.507059e+37
    %v3663 = vand.u32 %v3651, 2147483648
    %v3664 = vor.u32 1.1754944e-38, %v3663
    %v3665 = vsel %vm3662, %v3664, %v3660
    %v3666 = vmul.f32 1.0, %v3665
    %v3667 = vxor.u32 %v3566, 2147483648
    %v3668 = vmul.f32 %v3667, 1.442695
    %v3669 = vpow.pop %v3668
    %v3670 = vadd.f32 %v3669, 1.0
    %v3671 = vrcp.pop %v3670
    %v3672 = vmul.f32 %v3670, %v3671
    %v3673 = vsub.f32 1.0, %v3672
    %v3674 = vmul.f32 %v3671, %v3673
    %v3675 = vadd.f32 %v3671, %v3674
    %vm3676 = vweird.f32 %v3670
    %vm3677 = vweird.f32 %v3671
    %vm3678 = vmor %vm3676, %vm3677
    %v3679 = vsel %vm3678, %v3671, %v3675
    %v3680 = vand.u32 2147483647, %v3670
    %vm3681 = vcmp.eq.f32.partialorder %v3680, 8.507059e+37
    %v3682 = vand.u32 %v3670, 2147483648
    %v3683 = vor.u32 1.1754944e-38, %v3682
    %v3684 = vsel %vm3681, %v3683, %v3679
    %v3685 = vmul.f32 1.0, %v3684
    %v3686 = vtanh.pop %v3606
    %v3687 = vxor.u32 %v3646, 2147483648
    %v3688 = vmul.f32 %v3687, 1.442695
    %v3689 = vpow.pop %v3688
    %v3690 = vadd.f32 %v3689, 1.0
    %v3691 = vrcp.pop %v3690
    %v3692 = vmul.f32 %v3690, %v3691
    %v3693 = vsub.f32 1.0, %v3692
    %v3694 = vmul.f32 %v3691, %v3693
    %v3695 = vadd.f32 %v3691, %v3694
    %vm3696 = vweird.f32 %v3690
    %vm3697 = vweird.f32 %v3691
    %vm3698 = vmor %vm3696, %vm3697
    %v3699 = vsel %vm3698, %v3691, %v3695
    %v3700 = vand.u32 2147483647, %v3690
    %vm3701 = vcmp.eq.f32.partialorder %v3700, 8.507059e+37
    %v3702 = vand.u32 %v3690, 2147483648
    %v3703 = vor.u32 1.1754944e-38, %v3702
    %v3704 = vsel %vm3701, %v3703, %v3699
    %v3705 = vmul.f32 1.0, %v3704
    %v3706 = vmul.f32 %v3685, %v3483
    %v3707 = vmul.f32 %v3666, %v3686
    %v3708 = vadd.f32 %v3706, %v3707
    %v3709 = vtanh.pop %v3708
    %v3710 = vmul.f32 %v3705, %v3709
    %3711 = vst [vmem:[%s1545] sm:$0xff] %v3710
    %v3712 = vld [vmem:[%s1771] sm:$0xff]
    %3713 = vmatpush.msra.mxu0 %v2058
    %3714 = vmatpush.msra.mxu0 %v2054
    %3715 = vmatpush.msra.mxu0 %v2050
    %3716 = vmatpush.msra.mxu0 %v2046
    %3717 = vmatpush.msra.mxu0 %v2042
    %3718 = vmatpush.msra.mxu0 %v2038
    %3719 = vmatpush.msra.mxu0 %v2034
    %3720 = vmatpush.msra.mxu0 %v2030
    %3721 = vmatpush.msra.mxu0 %v2026
    %3722 = vmatpush.msra.mxu0 %v2022
    %3723 = vmatpush.msra.mxu0 %v2018
    %3724 = vmatpush.msra.mxu0 %v2014
    %3725 = vmatpush.msra.mxu0 %v2010
    %3726 = vmatpush.msra.mxu0 %v2006
    %3727 = vmatpush.msra.mxu0 %v2002
    %3728 = vmatpush.msra.mxu0 %v1998
    %3729 = vmatmul.f32.gmra.mxu0 %v3712
    %v3730 = vpop.f32.mrf.mxu0
    %v3731 = vadd.f32 %v2130, %v3730
    %3732 = vdwg.mxu0
    %3733 = vmatpush.msra.mxu0 %v2122
    %3734 = vmatpush.msra.mxu0 %v2118
    %3735 = vmatpush.msra.mxu0 %v2114
    %3736 = vmatpush.msra.mxu0 %v2110
    %3737 = vmatpush.msra.mxu0 %v2106
    %3738 = vmatpush.msra.mxu0 %v2102
    %3739 = vmatpush.msra.mxu0 %v2098
    %3740 = vmatpush.msra.mxu0 %v2094
    %3741 = vmatpush.msra.mxu0 %v2090
    %3742 = vmatpush.msra.mxu0 %v2086
    %3743 = vmatpush.msra.mxu0 %v2082
    %3744 = vmatpush.msra.mxu0 %v2078
    %3745 = vmatpush.msra.mxu0 %v2074
    %3746 = vmatpush.msra.mxu0 %v2070
    %3747 = vmatpush.msra.mxu0 %v2066
    %3748 = vmatpush.msra.mxu0 %v2062
    %3749 = vmatmul.f32.gmra.mxu0 %v3710
    %v3750 = vpop.f32.mrf.mxu0
    %v3751 = vadd.f32 %v3731, %v3750
    %3752 = vdwg.mxu0
    %3753 = vmatpush.msra.mxu0 %v2059
    %3754 = vmatpush.msra.mxu0 %v2055
    %3755 = vmatpush.msra.mxu0 %v2051
    %3756 = vmatpush.msra.mxu0 %v2047
    %3757 = vmatpush.msra.mxu0 %v2043
    %3758 = vmatpush.msra.mxu0 %v2039
    %3759 = vmatpush.msra.mxu0 %v2035
    %3760 = vmatpush.msra.mxu0 %v2031
    %3761 = vmatpush.msra.mxu0 %v2027
    %3762 = vmatpush.msra.mxu0 %v2023
    %3763 = vmatpush.msra.mxu0 %v2019
    %3764 = vmatpush.msra.mxu0 %v2015
    %3765 = vmatpush.msra.mxu0 %v2011
    %3766 = vmatpush.msra.mxu0 %v2007
    %3767 = vmatpush.msra.mxu0 %v2003
    %3768 = vmatpush.msra.mxu0 %v1999
    %3769 = vmatmul.f32.gmra.mxu0 %v3712
    %v3770 = vpop.f32.mrf.mxu0
    %v3771 = vadd.f32 %v2131, %v3770
    %3772 = vdwg.mxu0
    %3773 = vmatpush.msra.mxu0 %v2123
    %3774 = vmatpush.msra.mxu0 %v2119
    %3775 = vmatpush.msra.mxu0 %v2115
    %3776 = vmatpush.msra.mxu0 %v2111
    %3777 = vmatpush.msra.mxu0 %v2107
    %3778 = vmatpush.msra.mxu0 %v2103
    %3779 = vmatpush.msra.mxu0 %v2099
    %3780 = vmatpush.msra.mxu0 %v2095
    %3781 = vmatpush.msra.mxu0 %v2091
    %3782 = vmatpush.msra.mxu0 %v2087
    %3783 = vmatpush.msra.mxu0 %v2083
    %3784 = vmatpush.msra.mxu0 %v2079
    %3785 = vmatpush.msra.mxu0 %v2075
    %3786 = vmatpush.msra.mxu0 %v2071
    %3787 = vmatpush.msra.mxu0 %v2067
    %3788 = vmatpush.msra.mxu0 %v2063
    %3789 = vmatmul.f32.gmra.mxu0 %v3710
    %v3790 = vpop.f32.mrf.mxu0
    %v3791 = vadd.f32 %v3771, %v3790
    %3792 = vdwg.mxu0
    %3793 = vmatpush.msra.mxu0 %v2060
    %3794 = vmatpush.msra.mxu0 %v2056
    %3795 = vmatpush.msra.mxu0 %v2052
    %3796 = vmatpush.msra.mxu0 %v2048
    %3797 = vmatpush.msra.mxu0 %v2044
    %3798 = vmatpush.msra.mxu0 %v2040
    %3799 = vmatpush.msra.mxu0 %v2036
    %3800 = vmatpush.msra.mxu0 %v2032
    %3801 = vmatpush.msra.mxu0 %v2028
    %3802 = vmatpush.msra.mxu0 %v2024
    %3803 = vmatpush.msra.mxu0 %v2020
    %3804 = vmatpush.msra.mxu0 %v2016
    %3805 = vmatpush.msra.mxu0 %v2012
    %3806 = vmatpush.msra.mxu0 %v2008
    %3807 = vmatpush.msra.mxu0 %v2004
    %3808 = vmatpush.msra.mxu0 %v2000
    %3809 = vmatmul.f32.gmra.mxu0 %v3712
    %v3810 = vpop.f32.mrf.mxu0
    %v3811 = vadd.f32 %v2132, %v3810
    %3812 = vdwg.mxu0
    %3813 = vmatpush.msra.mxu0 %v2124
    %3814 = vmatpush.msra.mxu0 %v2120
    %3815 = vmatpush.msra.mxu0 %v2116
    %3816 = vmatpush.msra.mxu0 %v2112
    %3817 = vmatpush.msra.mxu0 %v2108
    %3818 = vmatpush.msra.mxu0 %v2104
    %3819 = vmatpush.msra.mxu0 %v2100
    %3820 = vmatpush.msra.mxu0 %v2096
    %3821 = vmatpush.msra.mxu0 %v2092
    %3822 = vmatpush.msra.mxu0 %v2088
    %3823 = vmatpush.msra.mxu0 %v2084
    %3824 = vmatpush.msra.mxu0 %v2080
    %3825 = vmatpush.msra.mxu0 %v2076
    %3826 = vmatpush.msra.mxu0 %v2072
    %3827 = vmatpush.msra.mxu0 %v2068
    %3828 = vmatpush.msra.mxu0 %v2064
    %3829 = vmatmul.f32.gmra.mxu0 %v3710
    %v3830 = vpop.f32.mrf.mxu0
    %v3831 = vadd.f32 %v3811, %v3830
    %3832 = vdwg.mxu0
    %3833 = vmatpush.msra.mxu0 %v2061
    %3834 = vmatpush.msra.mxu0 %v2057
    %3835 = vmatpush.msra.mxu0 %v2053
    %3836 = vmatpush.msra.mxu0 %v2049
    %3837 = vmatpush.msra.mxu0 %v2045
    %3838 = vmatpush.msra.mxu0 %v2041
    %3839 = vmatpush.msra.mxu0 %v2037
    %3840 = vmatpush.msra.mxu0 %v2033
    %3841 = vmatpush.msra.mxu0 %v2029
    %3842 = vmatpush.msra.mxu0 %v2025
    %3843 = vmatpush.msra.mxu0 %v2021
    %3844 = vmatpush.msra.mxu0 %v2017
    %3845 = vmatpush.msra.mxu0 %v2013
    %3846 = vmatpush.msra.mxu0 %v2009
    %3847 = vmatpush.msra.mxu0 %v2005
    %3848 = vmatpush.msra.mxu0 %v2001
    %3849 = vmatmul.f32.gmra.mxu0 %v3712
    %v3850 = vpop.f32.mrf.mxu0
    %v3851 = vadd.f32 %v2133, %v3850
    %3852 = vdwg.mxu0
    %3853 = vmatpush.msra.mxu0 %v2125
    %3854 = vmatpush.msra.mxu0 %v2121
    %3855 = vmatpush.msra.mxu0 %v2117
    %3856 = vmatpush.msra.mxu0 %v2113
    %3857 = vmatpush.msra.mxu0 %v2109
    %3858 = vmatpush.msra.mxu0 %v2105
    %3859 = vmatpush.msra.mxu0 %v2101
    %3860 = vmatpush.msra.mxu0 %v2097
    %3861 = vmatpush.msra.mxu0 %v2093
    %3862 = vmatpush.msra.mxu0 %v2089
    %3863 = vmatpush.msra.mxu0 %v2085
    %3864 = vmatpush.msra.mxu0 %v2081
    %3865 = vmatpush.msra.mxu0 %v2077
    %3866 = vmatpush.msra.mxu0 %v2073
    %3867 = vmatpush.msra.mxu0 %v2069
    %3868 = vmatpush.msra.mxu0 %v2065
    %3869 = vmatmul.f32.gmra.mxu0 %v3710
    %v3870 = vpop.f32.mrf.mxu0
    %v3871 = vadd.f32 %v3851, %v3870
    %3872 = vdwg.mxu0
    %v3873 = vxor.u32 %v3751, 2147483648
    %v3874 = vmul.f32 %v3873, 1.442695
    %v3875 = vpow.pop %v3874
    %v3876 = vadd.f32 %v3875, 1.0
    %v3877 = vrcp.pop %v3876
    %v3878 = vmul.f32 %v3876, %v3877
    %v3879 = vsub.f32 1.0, %v3878
    %v3880 = vmul.f32 %v3877, %v3879
    %v3881 = vadd.f32 %v3877, %v3880
    %vm3882 = vweird.f32 %v3876
    %vm3883 = vweird.f32 %v3877
    %vm3884 = vmor %vm3882, %vm3883
    %v3885 = vsel %vm3884, %v3877, %v3881
    %v3886 = vand.u32 2147483647, %v3876
    %vm3887 = vcmp.eq.f32.partialorder %v3886, 8.507059e+37
    %v3888 = vand.u32 %v3876, 2147483648
    %v3889 = vor.u32 1.1754944e-38, %v3888
    %v3890 = vsel %vm3887, %v3889, %v3885
    %v3891 = vmul.f32 1.0, %v3890
    %v3892 = vxor.u32 %v3791, 2147483648
    %v3893 = vmul.f32 %v3892, 1.442695
    %v3894 = vpow.pop %v3893
    %v3895 = vadd.f32 %v3894, 1.0
    %v3896 = vrcp.pop %v3895
    %v3897 = vmul.f32 %v3895, %v3896
    %v3898 = vsub.f32 1.0, %v3897
    %v3899 = vmul.f32 %v3896, %v3898
    %v3900 = vadd.f32 %v3896, %v3899
    %vm3901 = vweird.f32 %v3895
    %vm3902 = vweird.f32 %v3896
    %vm3903 = vmor %vm3901, %vm3902
    %v3904 = vsel %vm3903, %v3896, %v3900
    %v3905 = vand.u32 2147483647, %v3895
    %vm3906 = vcmp.eq.f32.partialorder %v3905, 8.507059e+37
    %v3907 = vand.u32 %v3895, 2147483648
    %v3908 = vor.u32 1.1754944e-38, %v3907
    %v3909 = vsel %vm3906, %v3908, %v3904
    %v3910 = vmul.f32 1.0, %v3909
    %v3911 = vtanh.pop %v3831
    %v3912 = vxor.u32 %v3871, 2147483648
    %v3913 = vmul.f32 %v3912, 1.442695
    %v3914 = vpow.pop %v3913
    %v3915 = vadd.f32 %v3914, 1.0
    %v3916 = vrcp.pop %v3915
    %v3917 = vmul.f32 %v3915, %v3916
    %v3918 = vsub.f32 1.0, %v3917
    %v3919 = vmul.f32 %v3916, %v3918
    %v3920 = vadd.f32 %v3916, %v3919
    %vm3921 = vweird.f32 %v3915
    %vm3922 = vweird.f32 %v3916
    %vm3923 = vmor %vm3921, %vm3922
    %v3924 = vsel %vm3923, %v3916, %v3920
    %v3925 = vand.u32 2147483647, %v3915
    %vm3926 = vcmp.eq.f32.partialorder %v3925, 8.507059e+37
    %v3927 = vand.u32 %v3915, 2147483648
    %v3928 = vor.u32 1.1754944e-38, %v3927
    %v3929 = vsel %vm3926, %v3928, %v3924
    %v3930 = vmul.f32 1.0, %v3929
    %v3931 = vmul.f32 %v3910, %v3708
    %v3932 = vmul.f32 %v3891, %v3911
    %v3933 = vadd.f32 %v3931, %v3932
    %v3934 = vtanh.pop %v3933
    %v3935 = vmul.f32 %v3930, %v3934
    %3936 = vst [vmem:[%s1771] sm:$0xff] %v3935
    %v3937 = vld [vmem:[%s3] sm:$0xff]
    %v3938 = vld [vmem:[%s3 + $0x8] sm:$0xff]
    %v3939 = vld [vmem:[%s3 + $0x10] sm:$0xff]
    %v3940 = vld [vmem:[%s3 + $0x18] sm:$0xff]
    %v3941 = vld [vmem:[%s3 + $0x20] sm:$0xff]
    %v3942 = vld [vmem:[%s3 + $0x28] sm:$0xff]
    %v3943 = vld [vmem:[%s3 + $0x30] sm:$0xff]
    %v3944 = vld [vmem:[%s3 + $0x38] sm:$0xff]
    %v3945 = vld [vmem:[%s3 + $0x40] sm:$0xff]
    %v3946 = vld [vmem:[%s3 + $0x48] sm:$0xff]
    %v3947 = vld [vmem:[%s3 + $0x50] sm:$0xff]
    %v3948 = vld [vmem:[%s3 + $0x58] sm:$0xff]
    %v3949 = vld [vmem:[%s3 + $0x60] sm:$0xff]
    %v3950 = vld [vmem:[%s3 + $0x68] sm:$0xff]
    %v3951 = vld [vmem:[%s3 + $0x70] sm:$0xff]
    %v3952 = vld [vmem:[%s3 + $0x78] sm:$0xff]
    %v3953 = vld [vmem:[%s4] sm:$0x1]
    %v3955 = vperm.slane %v3953, 0
    %3957 = vmatpush.msra.mxu0 %v3952
    %3958 = vmatpush.msra.mxu0 %v3951
    %3959 = vmatpush.msra.mxu0 %v3950
    %3960 = vmatpush.msra.mxu0 %v3949
    %3961 = vmatpush.msra.mxu0 %v3948
    %3962 = vmatpush.msra.mxu0 %v3947
    %3963 = vmatpush.msra.mxu0 %v3946
    %3964 = vmatpush.msra.mxu0 %v3945
    %3965 = vmatpush.msra.mxu0 %v3944
    %3966 = vmatpush.msra.mxu0 %v3943
    %3967 = vmatpush.msra.mxu0 %v3942
    %3968 = vmatpush.msra.mxu0 %v3941
    %3969 = vmatpush.msra.mxu0 %v3940
    %3970 = vmatpush.msra.mxu0 %v3939
    %3971 = vmatpush.msra.mxu0 %v3938
    %3972 = vmatpush.msra.mxu0 %v3937
    %3973 = vmatmul.f32.gmra.mxu0 %v3935
    %v3974 = vpop.f32.mrf.mxu0
    %v3975 = vadd.f32 %v3955, %v3974
    %3976 = vdwg.mxu0
    %3977 = vst [vmem:[%s5] sm:$0xff] %v3975
    // Predicated region
    $region26: #{lstm_module_forward.1} parent=1 // pred_check
      _
    $region27: #{lstm_module_forward.1} parent=1 // pred_check_branch
      %3979 = sbr.rel (0) target = $region29
    $region28: #{lstm_module_forward.1} parent=1 // pred_region
      _
    $region29: #{lstm_module_forward.1} parent=1 // pred_fallthru
      _
    // Predicated region
    $region30: #{lstm_module_forward.1} parent=1 // pred_check
      _
    $region31: #{lstm_module_forward.1} parent=1 // pred_check_branch
      %3981 = sbr.rel (0) target = $region33
    $region32: #{lstm_module_forward.1} parent=1 // pred_region
      _
    $region33: #{lstm_module_forward.1} parent=1 // pred_fallthru
      _
    %3982 = vsyncpa [#allocation4], 1

</llo_original>
